<compile_context>
chip_gen: v7x
topology: tpu7x:2x2x1
jax: 0.10.0
libtpu: 0.0.40
codegen_flags: <defaults>
</compile_context>

<pallas_src>
import numpy as np

import jax
import jax.numpy as jnp
from jax.experimental import pallas as pl
from jax.experimental.pallas import tpu as pltpu


# ---------------------------------------------------------------------------
# Fixed geometry for 16x16 RGB inputs, B images lane-concatenated per step.
# ---------------------------------------------------------------------------
_C1, _C2, _NCLS = 8, 16, 10
_CIN_PAD = 8                     # input channels padded 3 -> 8 (sublane friendly)

_B = 8                           # images per grid step (16*_B = 128 gather lanes)
_PER = 360                       # lane span of one image: 20 rows x 18 cols
_HEAD = 40                       # zero lanes before image 0 (conv2 border reads)
_LBLK = ((_HEAD + _B * _PER + 48 + 127) // 128) * 128     # 3072, lane-dense block

# lane lengths of the (all-images-at-once) intermediates
_L1 = _LBLK - 40                 # conv1 out   (tap lane offsets go up to 38)
_L2 = _L1 - 20                   # pool1 out   (view shifts 0, 1, 18, 19)
_L3 = _L2 - 76                   # conv2 out   (tap lane offsets go up to 76)
_L4 = _L3 - 40                   # pool2 out   (view shifts 0, 2, 36, 38)

# conv tap offsets: layer 1 lives on the 18-wide padded grid, layer 2 on the
# stride-2 sparse grid that pool1 leaves behind (row stride 36, col stride 2).
_OFF1 = tuple(18 * ky + kx for ky in range(3) for kx in range(3))
_OFF2 = tuple(36 * ky + 2 * kx for ky in range(3) for kx in range(3))

# per-image lane coordinates (image b):
#   padded input (r, c)  -> _HEAD + 360*b + 18*r + c
#   conv1 out   (h, w)   -> _HEAD + 360*b + 18*h + w
#   pool1 out   (a, c)   -> _HEAD + 360*b + 36*a + 2*c
#   conv2 out   (ph, pw) ->     2 + 360*b + 36*ph + 2*pw
#   pool2 out   (qh, qw) ->     2 + 360*b + 72*qh + 4*qw
assert _L4 > 2 + _PER * (_B - 1) + 72 * 3 + 4 * 3   # last valid pooled lane in range


def _build_pool1_mask():
    # 1.0 exactly at the valid pool-1 output lanes of every image, 0.0 elsewhere.
    m = np.zeros((_LBLK,), np.float32)
    for b in range(_B):
        for a in range(8):
            for c in range(8):
                m[_HEAD + _PER * b + 36 * a + 2 * c] = 1.0
    return np.tile(m[None, :], (_CIN_PAD, 1))            # (8, _LBLK)


def _build_pool2_gather():
    # 0/1 matrix gathering, for every image b and position j = qh*4 + qw, the
    # pool-2 output lane into column j*_B + b of a dense (16, 128) tile.
    s = np.zeros((_L4, 16 * _B), np.float32)
    for b in range(_B):
        for qh in range(4):
            for qw in range(4):
                lane = 2 + _PER * b + 72 * qh + 4 * qw
                s[lane, (qh * 4 + qw) * _B + b] = 1.0
    return s


_MASK1 = _build_pool1_mask()      # (8, 3072)
_CSEL = _build_pool2_gather()     # (_L4, 128)


# ---------------------------------------------------------------------------
# Single fused Pallas kernel: B lane-concatenated images per grid step.
# ---------------------------------------------------------------------------
def _fused_convnet_kernel(x_ref, w1_ref, b1_ref, w2_ref, b2_ref,
                          mask_ref, csel_ref, gfc_ref, bfc_ref, o_ref):
    x = x_ref[0]                                              # (8, LBLK), B images on lanes

    # conv1 (3x3, pad 1) + bias + ReLU: ONE dot, K = 9 taps x 8 ch = 72.
    z1 = jnp.concatenate([x[:, o:o + _L1] for o in _OFF1], axis=0)        # (72, L1)
    y1 = jnp.maximum(
        jnp.dot(w1_ref[...], z1, preferred_element_type=jnp.float32) + b1_ref[...],
        0.0)                                                              # (8, L1)

    # maxpool1 2x2/2: max of 4 lane-shifted views; then zero every lane that is
    # not a valid pooled position (kills garbage AND provides conv2's padding).
    p1 = jnp.maximum(jnp.maximum(y1[:, 0:_L2], y1[:, 1:_L2 + 1]),
                     jnp.maximum(y1[:, 18:_L2 + 18], y1[:, 19:_L2 + 19]))
    p1 = p1 * mask_ref[...][:, 0:_L2]                                     # (8, L2)

    # conv2 (3x3, pad 1) on the stride-2 sparse lane grid: ONE dot, K = 72.
    z2 = jnp.concatenate([p1[:, o:o + _L3] for o in _OFF2], axis=0)       # (72, L3)
    y2 = jnp.maximum(
        jnp.dot(w2_ref[...], z2, preferred_element_type=jnp.float32) + b2_ref[...],
        0.0)                                                              # (16, L3)

    # maxpool2 2x2/2 on the sparse grid (shifts 0, 2, 36, 38).
    p2 = jnp.maximum(jnp.maximum(y2[:, 0:_L4], y2[:, 2:_L4 + 2]),
                     jnp.maximum(y2[:, 36:_L4 + 36], y2[:, 38:_L4 + 38])) # (16, L4)

    # gather the 16 valid pooled positions of all B images into one dense tile:
    # column j*_B + b = pooled position j of image b.
    p2c = jnp.dot(p2, csel_ref[...], preferred_element_type=jnp.float32)  # (16, 128)

    # fc(256 -> 10): stack (position, channel) pairs on sublanes -> ONE dot
    # with K = 256 (gfc/bfc are zero-padded to 16 output rows host-side).
    z3 = jnp.concatenate([p2c[:, j * _B:(j + 1) * _B] for j in range(16)],
                         axis=0)                                          # (256, B)
    logits = jnp.dot(gfc_ref[...], z3,
                     preferred_element_type=jnp.float32) + bfc_ref[...]   # (16, B)

    # one lane-dense, unmasked (16, 128) store: classes on sublanes, images on lanes.
    o_ref[0] = jnp.concatenate(
        [logits, jnp.zeros((16, 128 - _B), jnp.float32)], axis=1)


# ---------------------------------------------------------------------------
# Wrapper: weight-side prep (tiny, layout only) + one pallas_call.
# ---------------------------------------------------------------------------
def _prep_weights(params):
    w1, b1 = params["w1"], params["b1"]       # (8,3,3,3), (8,)     PyTorch OIHW
    w2, b2 = params["w2"], params["b2"]       # (16,8,3,3), (16,)
    wfc, bfc = params["wfc"], params["bfc"]   # (10,256), (10,)     PyTorch (out,in)

    # tap-stacked conv weights: W[co, (ky*3+kx)*Cin + ci]; Cin padded 3 -> 8.
    w1p = jnp.pad(w1, ((0, 0), (0, _CIN_PAD - 3), (0, 0), (0, 0)))        # (8,8,3,3)
    w1s = jnp.transpose(w1p, (0, 2, 3, 1)).reshape(_C1, 9 * _CIN_PAD)     # (8, 72)
    w2s = jnp.transpose(w2, (0, 2, 3, 1)).reshape(_C2, 9 * _C1)           # (16, 72)

    # fc weight re-indexed to the kernel's (position j, channel c) sublane order
    # (PyTorch NCHW flatten index = c*16 + j) and padded 10 -> 16 output rows.
    gs = wfc.reshape(_NCLS, _C2, 16).transpose(0, 2, 1).reshape(_NCLS, 256)
    gs = jnp.pad(gs, ((0, 16 - _NCLS), (0, 0)))                           # (16, 256)
    bfcp = jnp.pad(bfc.reshape(_NCLS, 1), ((0, 16 - _NCLS), (0, 0)))      # (16, 1)

    return (w1s.astype(jnp.float32), b1.reshape(_C1, 1).astype(jnp.float32),
            w2s.astype(jnp.float32), b2.reshape(_C2, 1).astype(jnp.float32),
            gs.astype(jnp.float32), bfcp.astype(jnp.float32))


@jax.jit
def myconvnet_forward(params, x_nchw):
    n = x_nchw.shape[0]
    g = -(-n // _B)                       # grid steps, B images each
    n_pad = g * _B
    w1s, b1c, w2s, b2c, gs, bfcc = _prep_weights(params)

    # activation-side prep (layout only): pad channels 3->8, H 16->20, W 16->18,
    # flatten H,W and lane-concatenate B images per block behind a zero HEAD.
    xp = jnp.pad(x_nchw.astype(jnp.float32),
                 ((0, n_pad - n), (0, _CIN_PAD - 3), (1, 3), (1, 1)))     # (n_pad,8,20,18)
    xp = xp.reshape(n_pad, _CIN_PAD, _PER)
    xb = xp.reshape(g, _B, _CIN_PAD, _PER).transpose(0, 2, 1, 3)
    xb = xb.reshape(g, _CIN_PAD, _B * _PER)
    xb = jnp.pad(xb, ((0, 0), (0, 0), (_HEAD, _LBLK - _HEAD - _B * _PER)))  # (g,8,LBLK)

    out = pl.pallas_call(
        _fused_convnet_kernel,
        out_shape=jax.ShapeDtypeStruct((g, 16, 128), jnp.float32),
        grid=(g,),
        in_specs=[
            pl.BlockSpec((1, _CIN_PAD, _LBLK), lambda i: (i, 0, 0)),   # x block
            pl.BlockSpec((_C1, 9 * _CIN_PAD), lambda i: (0, 0)),       # conv1 weights
            pl.BlockSpec((_C1, 1), lambda i: (0, 0)),                  # conv1 bias
            pl.BlockSpec((_C2, 9 * _C1), lambda i: (0, 0)),            # conv2 weights
            pl.BlockSpec((_C2, 1), lambda i: (0, 0)),                  # conv2 bias
            pl.BlockSpec((_CIN_PAD, _LBLK), lambda i: (0, 0)),         # pool1 mask
            pl.BlockSpec((_L4, 16 * _B), lambda i: (0, 0)),            # pool2 gather
            pl.BlockSpec((16, _C2 * 16), lambda i: (0, 0)),            # fc weights
            pl.BlockSpec((16, 1), lambda i: (0, 0)),                   # fc bias
        ],
        out_specs=pl.BlockSpec((1, 16, 128), lambda i: (i, 0, 0)),
        compiler_params=pltpu.CompilerParams(
            dimension_semantics=("parallel",),   # shard grid over v7x's 2 TCs
            vmem_limit_bytes=32 * 1024 * 1024,   # peak live use is a few MiB
        ),
    )(xb, w1s, b1c, w2s, b2c, jnp.asarray(_MASK1), jnp.asarray(_CSEL), gs, bfcc)

    # out[g, o, b] = logits of image g*_B + b, class o   ->   (N, 10)
    res = jnp.transpose(out[:, :_NCLS, :_B], (0, 2, 1)).reshape(n_pad, _NCLS)
    return res[:n]


# ---------------------------------------------------------------------------
# Pure-JAX (XLA) reference for the self-check - mirrors PyTorch semantics.
# ---------------------------------------------------------------------------
def _reference_forward(params, x_nchw):
    w1, b1 = params["w1"], params["b1"]
    w2, b2 = params["w2"], params["b2"]
    wfc, bfc = params["wfc"], params["bfc"]

    def conv_relu(a, w, b):                    # a: NHWC
        n, h, wd, cin = a.shape
        cout, _, kh, kw = w.shape
        ap = jnp.pad(a, ((0, 0), (1, 1), (1, 1), (0, 0)))
        cols = [ap[:, ky:ky + h, kx:kx + wd, :]
                for ky in range(kh) for kx in range(kw)]
        patches = jnp.concatenate(cols, axis=-1).reshape(n * h * wd, kh * kw * cin)
        w2d = jnp.transpose(w, (2, 3, 1, 0)).reshape(kh * kw * cin, cout)
        y = jnp.maximum(patches @ w2d + b, 0.0)
        return y.reshape(n, h, wd, cout)

    def pool(a):
        return jnp.maximum(
            jnp.maximum(a[:, 0::2, 0::2, :], a[:, 0::2, 1::2, :]),
            jnp.maximum(a[:, 1::2, 0::2, :], a[:, 1::2, 1::2, :]))

    a = jnp.transpose(x_nchw, (0, 2, 3, 1))
    a = pool(conv_relu(a, w1, b1))
    a = pool(conv_relu(a, w2, b2))
    a = jnp.transpose(a, (0, 3, 1, 2)).reshape(a.shape[0], -1)   # NCHW flatten
    return a @ wfc.T + bfc


# ---------------------------------------------------------------------------
# Parameters (PyTorch layouts: conv OIHW, linear (out, in)).
# ---------------------------------------------------------------------------
def init_params(key):
    k1, k2, k3, k4, k5, k6 = jax.random.split(key, 6)
    return {
        "w1": 0.1 * jax.random.normal(k1, (_C1, 3, 3, 3), jnp.float32),
        "b1": 0.05 * jax.random.normal(k2, (_C1,), jnp.float32),
        "w2": 0.1 * jax.random.normal(k3, (_C2, _C1, 3, 3), jnp.float32),
        "b2": 0.05 * jax.random.normal(k4, (_C2,), jnp.float32),
        "wfc": 0.1 * jax.random.normal(k5, (_NCLS, _C2 * 4 * 4), jnp.float32),
        "bfc": 0.05 * jax.random.normal(k6, (_NCLS,), jnp.float32),
    }


if __name__ == "__main__":
    key = jax.random.PRNGKey(0)
    kx_, kp = jax.random.split(key)
    x = jax.random.normal(kx_, (16, 3, 16, 16), jnp.float32)    # NCHW input, grid = 2
    params = init_params(kp)

    logits = myconvnet_forward(params, x)
    jax.block_until_ready(logits)
    assert logits.shape == (16, _NCLS) and logits.dtype == jnp.float32

    ref = _reference_forward(params, x)
    err = float(jnp.max(jnp.abs(logits - ref)))
    assert err < 2e-3, f"mismatch vs XLA reference: max abs err {err}"

    print("KERNEL_OK")
</pallas_src>

<mosaic_0001>
module attributes {stable_mosaic.version = 11 : i64} {
  func.func @_fused_convnet_kernel(%arg0: i32, %arg1: memref<1x8x3072xf32, #tpu.memory_space<vmem>>, %arg2: memref<8x72xf32, #tpu.memory_space<vmem>>, %arg3: memref<8x1xf32, #tpu.memory_space<vmem>>, %arg4: memref<16x72xf32, #tpu.memory_space<vmem>>, %arg5: memref<16x1xf32, #tpu.memory_space<vmem>>, %arg6: memref<8x3072xf32, #tpu.memory_space<vmem>>, %arg7: memref<2896x128xf32, #tpu.memory_space<vmem>>, %arg8: memref<16x256xf32, #tpu.memory_space<vmem>>, %arg9: memref<16x1xf32, #tpu.memory_space<vmem>>, %arg10: memref<1x16x128xf32, #tpu.memory_space<vmem>>) attributes {dimension_semantics = [#tpu.dimension_semantics<parallel>], iteration_bounds = array<i64: 2>, scalar_prefetch = 0 : i64, scratch_operands = 0 : i64, tpu.core_type = #tpu.core_type<tc>, window_params = [{transform_indices = @transform_0, window_bounds = array<i64: 1, 8, 3072>}, {pipeline_mode = #tpu.pipeline_mode<synchronous>, transform_indices = @transform_1, window_bounds = array<i64: 8, 72>}, {pipeline_mode = #tpu.pipeline_mode<synchronous>, transform_indices = @transform_2, window_bounds = array<i64: 8, 1>}, {pipeline_mode = #tpu.pipeline_mode<synchronous>, transform_indices = @transform_3, window_bounds = array<i64: 16, 72>}, {pipeline_mode = #tpu.pipeline_mode<synchronous>, transform_indices = @transform_4, window_bounds = array<i64: 16, 1>}, {pipeline_mode = #tpu.pipeline_mode<synchronous>, transform_indices = @transform_5, window_bounds = array<i64: 8, 3072>}, {pipeline_mode = #tpu.pipeline_mode<synchronous>, transform_indices = @transform_6, window_bounds = array<i64: 2896, 128>}, {pipeline_mode = #tpu.pipeline_mode<synchronous>, transform_indices = @transform_7, window_bounds = array<i64: 16, 256>}, {pipeline_mode = #tpu.pipeline_mode<synchronous>, transform_indices = @transform_8, window_bounds = array<i64: 16, 1>}, {transform_indices = @transform_9, window_bounds = array<i64: 1, 16, 128>}]} {
    %c0 = arith.constant 0 : index
    %c0_0 = arith.constant 0 : index
    %c0_1 = arith.constant 0 : index
    %0 = vector.load %arg1[%c0, %c0_0, %c0_1] : memref<1x8x3072xf32, #tpu.memory_space<vmem>>, vector<1x8x3072xf32>
    %1 = vector.shape_cast %0 : vector<1x8x3072xf32> to vector<8x3072xf32>
    %2 = vector.extract_strided_slice %1 {offsets = [0, 0], sizes = [8, 3032], strides = [1, 1]} : vector<8x3072xf32> to vector<8x3032xf32>
    %3 = vector.extract_strided_slice %1 {offsets = [0, 1], sizes = [8, 3032], strides = [1, 1]} : vector<8x3072xf32> to vector<8x3032xf32>
    %4 = vector.extract_strided_slice %1 {offsets = [0, 2], sizes = [8, 3032], strides = [1, 1]} : vector<8x3072xf32> to vector<8x3032xf32>
    %5 = vector.extract_strided_slice %1 {offsets = [0, 18], sizes = [8, 3032], strides = [1, 1]} : vector<8x3072xf32> to vector<8x3032xf32>
    %6 = vector.extract_strided_slice %1 {offsets = [0, 19], sizes = [8, 3032], strides = [1, 1]} : vector<8x3072xf32> to vector<8x3032xf32>
    %7 = vector.extract_strided_slice %1 {offsets = [0, 20], sizes = [8, 3032], strides = [1, 1]} : vector<8x3072xf32> to vector<8x3032xf32>
    %8 = vector.extract_strided_slice %1 {offsets = [0, 36], sizes = [8, 3032], strides = [1, 1]} : vector<8x3072xf32> to vector<8x3032xf32>
    %9 = vector.extract_strided_slice %1 {offsets = [0, 37], sizes = [8, 3032], strides = [1, 1]} : vector<8x3072xf32> to vector<8x3032xf32>
    %10 = vector.extract_strided_slice %1 {offsets = [0, 38], sizes = [8, 3032], strides = [1, 1]} : vector<8x3072xf32> to vector<8x3032xf32>
    %11 = tpu.concatenate %2, %3, %4, %5, %6, %7, %8, %9, %10 in 0 : vector<8x3032xf32>, vector<8x3032xf32>, vector<8x3032xf32>, vector<8x3032xf32>, vector<8x3032xf32>, vector<8x3032xf32>, vector<8x3032xf32>, vector<8x3032xf32>, vector<8x3032xf32> -> vector<72x3032xf32>
    %c0_2 = arith.constant 0 : index
    %c0_3 = arith.constant 0 : index
    %12 = vector.load %arg2[%c0_2, %c0_3] : memref<8x72xf32, #tpu.memory_space<vmem>>, vector<8x72xf32>
    %cst = arith.constant dense<0.000000e+00> : vector<8x3032xf32>
    %13 = tpu.matmul %12, %11, %cst {dimension_numbers = #tpu.dot_dimension_numbers<[1], [0], [0], [1], [0, 0, 1, 1], [], []>} : vector<8x72xf32>, vector<72x3032xf32>, vector<8x3032xf32> -> vector<8x3032xf32>
    %c0_4 = arith.constant 0 : index
    %c0_5 = arith.constant 0 : index
    %14 = vector.load %arg3[%c0_4, %c0_5] : memref<8x1xf32, #tpu.memory_space<vmem>>, vector<8x1xf32>
    %15 = vector.broadcast %14 : vector<8x1xf32> to vector<8x3032xf32>
    %16 = arith.addf %13, %15 : vector<8x3032xf32>
    %cst_6 = arith.constant 0.000000e+00 : f32
    %17 = vector.broadcast %cst_6 : f32 to vector<8x3032xf32>
    %18 = arith.maximumf %16, %17 : vector<8x3032xf32>
    %19 = vector.extract_strided_slice %18 {offsets = [0, 0], sizes = [8, 3012], strides = [1, 1]} : vector<8x3032xf32> to vector<8x3012xf32>
    %20 = vector.extract_strided_slice %18 {offsets = [0, 1], sizes = [8, 3012], strides = [1, 1]} : vector<8x3032xf32> to vector<8x3012xf32>
    %21 = arith.maximumf %19, %20 : vector<8x3012xf32>
    %22 = vector.extract_strided_slice %18 {offsets = [0, 18], sizes = [8, 3012], strides = [1, 1]} : vector<8x3032xf32> to vector<8x3012xf32>
    %23 = vector.extract_strided_slice %18 {offsets = [0, 19], sizes = [8, 3012], strides = [1, 1]} : vector<8x3032xf32> to vector<8x3012xf32>
    %24 = arith.maximumf %22, %23 : vector<8x3012xf32>
    %25 = arith.maximumf %21, %24 : vector<8x3012xf32>
    %c0_7 = arith.constant 0 : index
    %c0_8 = arith.constant 0 : index
    %26 = vector.load %arg6[%c0_7, %c0_8] : memref<8x3072xf32, #tpu.memory_space<vmem>>, vector<8x3072xf32>
    %27 = vector.extract_strided_slice %26 {offsets = [0, 0], sizes = [8, 3012], strides = [1, 1]} : vector<8x3072xf32> to vector<8x3012xf32>
    %28 = arith.mulf %25, %27 : vector<8x3012xf32>
    %29 = vector.extract_strided_slice %28 {offsets = [0, 0], sizes = [8, 2936], strides = [1, 1]} : vector<8x3012xf32> to vector<8x2936xf32>
    %30 = vector.extract_strided_slice %28 {offsets = [0, 2], sizes = [8, 2936], strides = [1, 1]} : vector<8x3012xf32> to vector<8x2936xf32>
    %31 = vector.extract_strided_slice %28 {offsets = [0, 4], sizes = [8, 2936], strides = [1, 1]} : vector<8x3012xf32> to vector<8x2936xf32>
    %32 = vector.extract_strided_slice %28 {offsets = [0, 36], sizes = [8, 2936], strides = [1, 1]} : vector<8x3012xf32> to vector<8x2936xf32>
    %33 = vector.extract_strided_slice %28 {offsets = [0, 38], sizes = [8, 2936], strides = [1, 1]} : vector<8x3012xf32> to vector<8x2936xf32>
    %34 = vector.extract_strided_slice %28 {offsets = [0, 40], sizes = [8, 2936], strides = [1, 1]} : vector<8x3012xf32> to vector<8x2936xf32>
    %35 = vector.extract_strided_slice %28 {offsets = [0, 72], sizes = [8, 2936], strides = [1, 1]} : vector<8x3012xf32> to vector<8x2936xf32>
    %36 = vector.extract_strided_slice %28 {offsets = [0, 74], sizes = [8, 2936], strides = [1, 1]} : vector<8x3012xf32> to vector<8x2936xf32>
    %37 = vector.extract_strided_slice %28 {offsets = [0, 76], sizes = [8, 2936], strides = [1, 1]} : vector<8x3012xf32> to vector<8x2936xf32>
    %38 = tpu.concatenate %29, %30, %31, %32, %33, %34, %35, %36, %37 in 0 : vector<8x2936xf32>, vector<8x2936xf32>, vector<8x2936xf32>, vector<8x2936xf32>, vector<8x2936xf32>, vector<8x2936xf32>, vector<8x2936xf32>, vector<8x2936xf32>, vector<8x2936xf32> -> vector<72x2936xf32>
    %c0_9 = arith.constant 0 : index
    %c0_10 = arith.constant 0 : index
    %39 = vector.load %arg4[%c0_9, %c0_10] : memref<16x72xf32, #tpu.memory_space<vmem>>, vector<16x72xf32>
    %cst_11 = arith.constant dense<0.000000e+00> : vector<16x2936xf32>
    %40 = tpu.matmul %39, %38, %cst_11 {dimension_numbers = #tpu.dot_dimension_numbers<[1], [0], [0], [1], [0, 0, 1, 1], [], []>} : vector<16x72xf32>, vector<72x2936xf32>, vector<16x2936xf32> -> vector<16x2936xf32>
    %c0_12 = arith.constant 0 : index
    %c0_13 = arith.constant 0 : index
    %41 = vector.load %arg5[%c0_12, %c0_13] : memref<16x1xf32, #tpu.memory_space<vmem>>, vector<16x1xf32>
    %42 = vector.broadcast %41 : vector<16x1xf32> to vector<16x2936xf32>
    %43 = arith.addf %40, %42 : vector<16x2936xf32>
    %cst_14 = arith.constant 0.000000e+00 : f32
    %44 = vector.broadcast %cst_14 : f32 to vector<16x2936xf32>
    %45 = arith.maximumf %43, %44 : vector<16x2936xf32>
    %46 = vector.extract_strided_slice %45 {offsets = [0, 0], sizes = [16, 2896], strides = [1, 1]} : vector<16x2936xf32> to vector<16x2896xf32>
    %47 = vector.extract_strided_slice %45 {offsets = [0, 2], sizes = [16, 2896], strides = [1, 1]} : vector<16x2936xf32> to vector<16x2896xf32>
    %48 = arith.maximumf %46, %47 : vector<16x2896xf32>
    %49 = vector.extract_strided_slice %45 {offsets = [0, 36], sizes = [16, 2896], strides = [1, 1]} : vector<16x2936xf32> to vector<16x2896xf32>
    %50 = vector.extract_strided_slice %45 {offsets = [0, 38], sizes = [16, 2896], strides = [1, 1]} : vector<16x2936xf32> to vector<16x2896xf32>
    %51 = arith.maximumf %49, %50 : vector<16x2896xf32>
    %52 = arith.maximumf %48, %51 : vector<16x2896xf32>
    %c0_15 = arith.constant 0 : index
    %c0_16 = arith.constant 0 : index
    %53 = vector.load %arg7[%c0_15, %c0_16] : memref<2896x128xf32, #tpu.memory_space<vmem>>, vector<2896x128xf32>
    %cst_17 = arith.constant dense<0.000000e+00> : vector<16x128xf32>
    %54 = tpu.matmul %52, %53, %cst_17 {dimension_numbers = #tpu.dot_dimension_numbers<[1], [0], [0], [1], [0, 0, 1, 1], [], []>} : vector<16x2896xf32>, vector<2896x128xf32>, vector<16x128xf32> -> vector<16x128xf32>
    %55 = vector.extract_strided_slice %54 {offsets = [0, 0], sizes = [16, 8], strides = [1, 1]} : vector<16x128xf32> to vector<16x8xf32>
    %56 = vector.extract_strided_slice %54 {offsets = [0, 8], sizes = [16, 8], strides = [1, 1]} : vector<16x128xf32> to vector<16x8xf32>
    %57 = vector.extract_strided_slice %54 {offsets = [0, 16], sizes = [16, 8], strides = [1, 1]} : vector<16x128xf32> to vector<16x8xf32>
    %58 = vector.extract_strided_slice %54 {offsets = [0, 24], sizes = [16, 8], strides = [1, 1]} : vector<16x128xf32> to vector<16x8xf32>
    %59 = vector.extract_strided_slice %54 {offsets = [0, 32], sizes = [16, 8], strides = [1, 1]} : vector<16x128xf32> to vector<16x8xf32>
    %60 = vector.extract_strided_slice %54 {offsets = [0, 40], sizes = [16, 8], strides = [1, 1]} : vector<16x128xf32> to vector<16x8xf32>
    %61 = vector.extract_strided_slice %54 {offsets = [0, 48], sizes = [16, 8], strides = [1, 1]} : vector<16x128xf32> to vector<16x8xf32>
    %62 = vector.extract_strided_slice %54 {offsets = [0, 56], sizes = [16, 8], strides = [1, 1]} : vector<16x128xf32> to vector<16x8xf32>
    %63 = vector.extract_strided_slice %54 {offsets = [0, 64], sizes = [16, 8], strides = [1, 1]} : vector<16x128xf32> to vector<16x8xf32>
    %64 = vector.extract_strided_slice %54 {offsets = [0, 72], sizes = [16, 8], strides = [1, 1]} : vector<16x128xf32> to vector<16x8xf32>
    %65 = vector.extract_strided_slice %54 {offsets = [0, 80], sizes = [16, 8], strides = [1, 1]} : vector<16x128xf32> to vector<16x8xf32>
    %66 = vector.extract_strided_slice %54 {offsets = [0, 88], sizes = [16, 8], strides = [1, 1]} : vector<16x128xf32> to vector<16x8xf32>
    %67 = vector.extract_strided_slice %54 {offsets = [0, 96], sizes = [16, 8], strides = [1, 1]} : vector<16x128xf32> to vector<16x8xf32>
    %68 = vector.extract_strided_slice %54 {offsets = [0, 104], sizes = [16, 8], strides = [1, 1]} : vector<16x128xf32> to vector<16x8xf32>
    %69 = vector.extract_strided_slice %54 {offsets = [0, 112], sizes = [16, 8], strides = [1, 1]} : vector<16x128xf32> to vector<16x8xf32>
    %70 = vector.extract_strided_slice %54 {offsets = [0, 120], sizes = [16, 8], strides = [1, 1]} : vector<16x128xf32> to vector<16x8xf32>
    %71 = tpu.concatenate %55, %56, %57, %58, %59, %60, %61, %62, %63, %64, %65, %66, %67, %68, %69, %70 in 0 : vector<16x8xf32>, vector<16x8xf32>, vector<16x8xf32>, vector<16x8xf32>, vector<16x8xf32>, vector<16x8xf32>, vector<16x8xf32>, vector<16x8xf32>, vector<16x8xf32>, vector<16x8xf32>, vector<16x8xf32>, vector<16x8xf32>, vector<16x8xf32>, vector<16x8xf32>, vector<16x8xf32>, vector<16x8xf32> -> vector<256x8xf32>
    %c0_18 = arith.constant 0 : index
    %c0_19 = arith.constant 0 : index
    %72 = vector.load %arg8[%c0_18, %c0_19] : memref<16x256xf32, #tpu.memory_space<vmem>>, vector<16x256xf32>
    %cst_20 = arith.constant dense<0.000000e+00> : vector<16x8xf32>
    %73 = tpu.matmul %72, %71, %cst_20 {dimension_numbers = #tpu.dot_dimension_numbers<[1], [0], [0], [1], [0, 0, 1, 1], [], []>} : vector<16x256xf32>, vector<256x8xf32>, vector<16x8xf32> -> vector<16x8xf32>
    %c0_21 = arith.constant 0 : index
    %c0_22 = arith.constant 0 : index
    %74 = vector.load %arg9[%c0_21, %c0_22] : memref<16x1xf32, #tpu.memory_space<vmem>>, vector<16x1xf32>
    %75 = vector.broadcast %74 : vector<16x1xf32> to vector<16x8xf32>
    %76 = arith.addf %73, %75 : vector<16x8xf32>
    %cst_23 = arith.constant 0.000000e+00 : f32
    %77 = vector.broadcast %cst_23 : f32 to vector<16x120xf32>
    %78 = tpu.concatenate %76, %77 in 1 : vector<16x8xf32>, vector<16x120xf32> -> vector<16x128xf32>
    %c0_24 = arith.constant 0 : index
    %c0_25 = arith.constant 0 : index
    %c0_26 = arith.constant 0 : index
    %79 = vector.load %arg10[%c0_24, %c0_25, %c0_26] : memref<1x16x128xf32, #tpu.memory_space<vmem>>, vector<1x16x128xf32>
    %80 = vector.shape_cast %79 : vector<1x16x128xf32> to vector<16x128xf32>
    %81 = vector.shape_cast %78 : vector<16x128xf32> to vector<1x16x128xf32>
    tpu.vector_store %arg10[%c0_24, %c0_25, %c0_26], %81 {strides = array<i32>} : memref<1x16x128xf32, #tpu.memory_space<vmem>>, vector<1x16x128xf32>,
    return
  }
  func.func @transform_0(%arg0: i32) -> (i32, i32, i32) {
    %c0_i32 = arith.constant 0 : i32
    %c0_i32_0 = arith.constant 0 : i32
    %c0_i32_1 = arith.constant 0 : i32
    return %arg0, %c0_i32, %c0_i32_0 : i32, i32, i32
  }
  func.func @transform_1(%arg0: i32) -> (i32, i32) {
    %c0_i32 = arith.constant 0 : i32
    %c0_i32_0 = arith.constant 0 : i32
    %c0_i32_1 = arith.constant 0 : i32
    return %c0_i32, %c0_i32_0 : i32, i32
  }
  func.func @transform_2(%arg0: i32) -> (i32, i32) {
    %c0_i32 = arith.constant 0 : i32
    %c0_i32_0 = arith.constant 0 : i32
    %c0_i32_1 = arith.constant 0 : i32
    return %c0_i32, %c0_i32_0 : i32, i32
  }
  func.func @transform_3(%arg0: i32) -> (i32, i32) {
    %c0_i32 = arith.constant 0 : i32
    %c0_i32_0 = arith.constant 0 : i32
    %c0_i32_1 = arith.constant 0 : i32
    return %c0_i32, %c0_i32_0 : i32, i32
  }
  func.func @transform_4(%arg0: i32) -> (i32, i32) {
    %c0_i32 = arith.constant 0 : i32
    %c0_i32_0 = arith.constant 0 : i32
    %c0_i32_1 = arith.constant 0 : i32
    return %c0_i32, %c0_i32_0 : i32, i32
  }
  func.func @transform_5(%arg0: i32) -> (i32, i32) {
    %c0_i32 = arith.constant 0 : i32
    %c0_i32_0 = arith.constant 0 : i32
    %c0_i32_1 = arith.constant 0 : i32
    return %c0_i32, %c0_i32_0 : i32, i32
  }
  func.func @transform_6(%arg0: i32) -> (i32, i32) {
    %c0_i32 = arith.constant 0 : i32
    %c0_i32_0 = arith.constant 0 : i32
    %c0_i32_1 = arith.constant 0 : i32
    return %c0_i32, %c0_i32_0 : i32, i32
  }
  func.func @transform_7(%arg0: i32) -> (i32, i32) {
    %c0_i32 = arith.constant 0 : i32
    %c0_i32_0 = arith.constant 0 : i32
    %c0_i32_1 = arith.constant 0 : i32
    return %c0_i32, %c0_i32_0 : i32, i32
  }
  func.func @transform_8(%arg0: i32) -> (i32, i32) {
    %c0_i32 = arith.constant 0 : i32
    %c0_i32_0 = arith.constant 0 : i32
    %c0_i32_1 = arith.constant 0 : i32
    return %c0_i32, %c0_i32_0 : i32, i32
  }
  func.func @transform_9(%arg0: i32) -> (i32, i32, i32) {
    %c0_i32 = arith.constant 0 : i32
    %c0_i32_0 = arith.constant 0 : i32
    %c0_i32_1 = arith.constant 0 : i32
    return %arg0, %c0_i32, %c0_i32_0 : i32, i32, i32
  }
}

</mosaic_0001>

<llo_original>
// kernel: myconvnet_forward.1
$region0: #{myconvnet_forward.1}
  #allocation0 [shape = 'u32[]', space=smem, size = 0x4, offset = 0x4, fixed_abs, tag = 'smem constant byte address 0x4 - core index']
  #allocation1 [shape = 'u32[144,128]{1,0:T(1,128)}', space=vmem, size = 0x12000, scoped, tag = 'internal scratch']
  %s0 = inlined_call_operand.vmem [shape: f32[2,8,3072], index: 0, kind: input, shape index: {}]
  %s1 = inlined_call_operand.vmem [shape: f32[8,72], index: 1, kind: input, shape index: {}]
  %s2 = inlined_call_operand.vmem [shape: f32[8,1], index: 2, kind: input, shape index: {}]
  %s3 = inlined_call_operand.vmem [shape: f32[16,72], index: 3, kind: input, shape index: {}]
  %s4 = inlined_call_operand.vmem [shape: f32[16,1], index: 4, kind: input, shape index: {}]
  %s5 = inlined_call_operand.vmem [shape: f32[8,3072], index: 5, kind: input, shape index: {}]
  %s6 = inlined_call_operand.vmem [shape: f32[2896,128], index: 6, kind: input, shape index: {}]
  %s7 = inlined_call_operand.vmem [shape: f32[16,256], index: 7, kind: input, shape index: {}]
  %s8 = inlined_call_operand.vmem [shape: f32[16,1], index: 8, kind: input, shape index: {}]
  %s9 = inlined_call_operand.vmem [shape: f32[2,16,128], index: 9, kind: output, shape index: {}]
  %s10 = sld [smem:[#allocation0]]
  $region69: #{myconvnet_forward.1} parent=0
    _
  %s12 = ssub.s32 1, %s10
  %s13 = scalar_select 0, %s12, %s10
  loop: start=0, step=1, limit=4
  $region2: #{myconvnet_forward.1} parent=0 // loop_pre_header
    _
  $region3: #{myconvnet_forward.1} parent=0 // loop_header
    %s15 = sphi 0, %s19
    %p16 = scmp.ge.s32.totalorder %s15, 4
    %s25 = sphi 0, %s27
    %s28 = sphi 0, %s25
    %s29 = sphi 0, %s28
    %s45 = sphi 0, %s29
    %s49 = sphi 0, %s49
    %s51 = sphi 0, %s49
    %s52 = sphi 0, %s51
    %s66 = sphi 0, %s52
    %s70 = sphi 0, %s70
    %s72 = sphi 0, %s70
    %s73 = sphi 0, %s72
    %s87 = sphi 0, %s73
    %s91 = sphi 0, %s91
    %s93 = sphi 0, %s91
    %s94 = sphi 0, %s93
    %s108 = sphi 0, %s94
    %s112 = sphi 0, %s112
    %s114 = sphi 0, %s112
    %s115 = sphi 0, %s114
    %s129 = sphi 0, %s115
    %s133 = sphi 0, %s133
    %s135 = sphi 0, %s133
    %s136 = sphi 0, %s135
    %s150 = sphi 0, %s136
    %s154 = sphi 0, %s154
    %s156 = sphi 0, %s154
    %s157 = sphi 0, %s156
    %s171 = sphi 0, %s157
    %s175 = sphi 0, %s175
    %s177 = sphi 0, %s175
    %s178 = sphi 0, %s177
    %s192 = sphi 0, %s178
    %s196 = sphi 0, %s196
    %s198 = sphi 0, %s196
    %s199 = sphi 0, %s198
    %s213 = sphi 0, %s199
    %s219 = sphi 0, %s221
    %s222 = sphi 0, %s219
    %s223 = sphi 0, %s222
    %s239 = sphi 0, %s223
  $region4: #{myconvnet_forward.1} parent=0 // loop_header_branch
    %18 = sbr.rel (%p16) target = $region8
  $region5: #{myconvnet_forward.1} parent=0 // loop_body
    %s20 = ssub.s32 %s15, 1
    %s21 = ssub.s32 %s15, 2
    %s22 = sadd.s32 %s15, 1
    %s23 = ssub.s32 %s15, %s22
    %p24 = scmp.eq.s32.totalorder %s23, 0
    %s26 = sadd.s32 %s25, 1
    %s27 = scalar_select %p24, %s25, %s26
    %p30 = pneg %p24
    %p31 = scmp.eq.s32.totalorder %s15, 1
    %p32 = por %p30, %p31
    %p33 = scmp.ne.s32.totalorder %s25, %s28
    %p34 = scmp.eq.s32.totalorder %s15, 0
    %p35 = por %p33, %p34
    %p36 = scmp.ne.s32.totalorder %s25, %s28
    %p37 = scmp.eq.s32.totalorder %s20, 1
    %p38 = por %p36, %p37
    %p39 = scmp.ne.s32.totalorder %s28, %s29
    %p40 = scmp.eq.s32.totalorder %s20, 0
    %p41 = por %p39, %p40
    %p42 = scmp.ne.s32.totalorder %s28, %s29
    %p43 = scmp.eq.s32.totalorder %s21, 1
    %p44 = por %p42, %p43
    %p46 = scmp.ne.s32.totalorder %s29, %s45
    %p47 = scmp.eq.s32.totalorder %s21, 0
    %p48 = por %p46, %p47
    %s50 = sadd.s32 %s49, 1
    %p53 = scmp.eq.s32.totalorder %s15, 1
    %p54 = scmp.ne.s32.totalorder %s49, %s51
    %p55 = scmp.eq.s32.totalorder %s15, 0
    %p56 = por %p54, %p55
    %p57 = scmp.ne.s32.totalorder %s49, %s51
    %p58 = scmp.eq.s32.totalorder %s20, 1
    %p59 = por %p57, %p58
    %p60 = scmp.ne.s32.totalorder %s51, %s52
    %p61 = scmp.eq.s32.totalorder %s20, 0
    %p62 = por %p60, %p61
    %p63 = scmp.ne.s32.totalorder %s51, %s52
    %p64 = scmp.eq.s32.totalorder %s21, 1
    %p65 = por %p63, %p64
    %p67 = scmp.ne.s32.totalorder %s52, %s66
    %p68 = scmp.eq.s32.totalorder %s21, 0
    %p69 = por %p67, %p68
    %s71 = sadd.s32 %s70, 1
    %p74 = scmp.eq.s32.totalorder %s15, 1
    %p75 = scmp.ne.s32.totalorder %s70, %s72
    %p76 = scmp.eq.s32.totalorder %s15, 0
    %p77 = por %p75, %p76
    %p78 = scmp.ne.s32.totalorder %s70, %s72
    %p79 = scmp.eq.s32.totalorder %s20, 1
    %p80 = por %p78, %p79
    %p81 = scmp.ne.s32.totalorder %s72, %s73
    %p82 = scmp.eq.s32.totalorder %s20, 0
    %p83 = por %p81, %p82
    %p84 = scmp.ne.s32.totalorder %s72, %s73
    %p85 = scmp.eq.s32.totalorder %s21, 1
    %p86 = por %p84, %p85
    %p88 = scmp.ne.s32.totalorder %s73, %s87
    %p89 = scmp.eq.s32.totalorder %s21, 0
    %p90 = por %p88, %p89
    %s92 = sadd.s32 %s91, 1
    %p95 = scmp.eq.s32.totalorder %s15, 1
    %p96 = scmp.ne.s32.totalorder %s91, %s93
    %p97 = scmp.eq.s32.totalorder %s15, 0
    %p98 = por %p96, %p97
    %p99 = scmp.ne.s32.totalorder %s91, %s93
    %p100 = scmp.eq.s32.totalorder %s20, 1
    %p101 = por %p99, %p100
    %p102 = scmp.ne.s32.totalorder %s93, %s94
    %p103 = scmp.eq.s32.totalorder %s20, 0
    %p104 = por %p102, %p103
    %p105 = scmp.ne.s32.totalorder %s93, %s94
    %p106 = scmp.eq.s32.totalorder %s21, 1
    %p107 = por %p105, %p106
    %p109 = scmp.ne.s32.totalorder %s94, %s108
    %p110 = scmp.eq.s32.totalorder %s21, 0
    %p111 = por %p109, %p110
    %s113 = sadd.s32 %s112, 1
    %p116 = scmp.eq.s32.totalorder %s15, 1
    %p117 = scmp.ne.s32.totalorder %s112, %s114
    %p118 = scmp.eq.s32.totalorder %s15, 0
    %p119 = por %p117, %p118
    %p120 = scmp.ne.s32.totalorder %s112, %s114
    %p121 = scmp.eq.s32.totalorder %s20, 1
    %p122 = por %p120, %p121
    %p123 = scmp.ne.s32.totalorder %s114, %s115
    %p124 = scmp.eq.s32.totalorder %s20, 0
    %p125 = por %p123, %p124
    %p126 = scmp.ne.s32.totalorder %s114, %s115
    %p127 = scmp.eq.s32.totalorder %s21, 1
    %p128 = por %p126, %p127
    %p130 = scmp.ne.s32.totalorder %s115, %s129
    %p131 = scmp.eq.s32.totalorder %s21, 0
    %p132 = por %p130, %p131
    %s134 = sadd.s32 %s133, 1
    %p137 = scmp.eq.s32.totalorder %s15, 1
    %p138 = scmp.ne.s32.totalorder %s133, %s135
    %p139 = scmp.eq.s32.totalorder %s15, 0
    %p140 = por %p138, %p139
    %p141 = scmp.ne.s32.totalorder %s133, %s135
    %p142 = scmp.eq.s32.totalorder %s20, 1
    %p143 = por %p141, %p142
    %p144 = scmp.ne.s32.totalorder %s135, %s136
    %p145 = scmp.eq.s32.totalorder %s20, 0
    %p146 = por %p144, %p145
    %p147 = scmp.ne.s32.totalorder %s135, %s136
    %p148 = scmp.eq.s32.totalorder %s21, 1
    %p149 = por %p147, %p148
    %p151 = scmp.ne.s32.totalorder %s136, %s150
    %p152 = scmp.eq.s32.totalorder %s21, 0
    %p153 = por %p151, %p152
    %s155 = sadd.s32 %s154, 1
    %p158 = scmp.eq.s32.totalorder %s15, 1
    %p159 = scmp.ne.s32.totalorder %s154, %s156
    %p160 = scmp.eq.s32.totalorder %s15, 0
    %p161 = por %p159, %p160
    %p162 = scmp.ne.s32.totalorder %s154, %s156
    %p163 = scmp.eq.s32.totalorder %s20, 1
    %p164 = por %p162, %p163
    %p165 = scmp.ne.s32.totalorder %s156, %s157
    %p166 = scmp.eq.s32.totalorder %s20, 0
    %p167 = por %p165, %p166
    %p168 = scmp.ne.s32.totalorder %s156, %s157
    %p169 = scmp.eq.s32.totalorder %s21, 1
    %p170 = por %p168, %p169
    %p172 = scmp.ne.s32.totalorder %s157, %s171
    %p173 = scmp.eq.s32.totalorder %s21, 0
    %p174 = por %p172, %p173
    %s176 = sadd.s32 %s175, 1
    %p179 = scmp.eq.s32.totalorder %s15, 1
    %p180 = scmp.ne.s32.totalorder %s175, %s177
    %p181 = scmp.eq.s32.totalorder %s15, 0
    %p182 = por %p180, %p181
    %p183 = scmp.ne.s32.totalorder %s175, %s177
    %p184 = scmp.eq.s32.totalorder %s20, 1
    %p185 = por %p183, %p184
    %p186 = scmp.ne.s32.totalorder %s177, %s178
    %p187 = scmp.eq.s32.totalorder %s20, 0
    %p188 = por %p186, %p187
    %p189 = scmp.ne.s32.totalorder %s177, %s178
    %p190 = scmp.eq.s32.totalorder %s21, 1
    %p191 = por %p189, %p190
    %p193 = scmp.ne.s32.totalorder %s178, %s192
    %p194 = scmp.eq.s32.totalorder %s21, 0
    %p195 = por %p193, %p194
    %s197 = sadd.s32 %s196, 1
    %p200 = scmp.eq.s32.totalorder %s15, 1
    %p201 = scmp.ne.s32.totalorder %s196, %s198
    %p202 = scmp.eq.s32.totalorder %s15, 0
    %p203 = por %p201, %p202
    %p204 = scmp.ne.s32.totalorder %s196, %s198
    %p205 = scmp.eq.s32.totalorder %s20, 1
    %p206 = por %p204, %p205
    %p207 = scmp.ne.s32.totalorder %s198, %s199
    %p208 = scmp.eq.s32.totalorder %s20, 0
    %p209 = por %p207, %p208
    %p210 = scmp.ne.s32.totalorder %s198, %s199
    %p211 = scmp.eq.s32.totalorder %s21, 1
    %p212 = por %p210, %p211
    %p214 = scmp.ne.s32.totalorder %s199, %s213
    %p215 = scmp.eq.s32.totalorder %s21, 0
    %p216 = por %p214, %p215
    %s217 = ssub.s32 %s15, %s22
    %p218 = scmp.eq.s32.totalorder %s217, 0
    %s220 = sadd.s32 %s219, 1
    %s221 = scalar_select %p218, %s219, %s220
    %p224 = pneg %p218
    %p225 = scmp.eq.s32.totalorder %s15, 1
    %p226 = por %p224, %p225
    %p227 = scmp.ne.s32.totalorder %s219, %s222
    %p228 = scmp.eq.s32.totalorder %s15, 0
    %p229 = por %p227, %p228
    %p230 = scmp.ne.s32.totalorder %s219, %s222
    %p231 = scmp.eq.s32.totalorder %s20, 1
    %p232 = por %p230, %p231
    %p233 = scmp.ne.s32.totalorder %s222, %s223
    %p234 = scmp.eq.s32.totalorder %s20, 0
    %p235 = por %p233, %p234
    %p236 = scmp.ne.s32.totalorder %s222, %s223
    %p237 = scmp.eq.s32.totalorder %s21, 1
    %p238 = por %p236, %p237
    %p240 = scmp.ne.s32.totalorder %s223, %s239
    %p241 = scmp.eq.s32.totalorder %s21, 0
    %p242 = por %p240, %p241
    %p243 = scmp.le.s32.totalorder 1, %s15
    %p244 = scmp.lt.s32.totalorder %s15, 3
    %p245 = pnand %p243, %p244
    %p246 = pneg %p245
    // Predicated region
    $region9: #{myconvnet_forward.1} parent=5 // pred_check
      _
    $region10: #{myconvnet_forward.1} parent=5 // pred_check_branch
      %248 = sbr.rel (%p245) target = $region12
    $region11: #{myconvnet_forward.1} parent=5 // pred_region
      %s249 = ssub.s32 %s15, 1
      // Predicated region
      $region13: #{myconvnet_forward.1} parent=11 // pred_check
        %p250 = pneg %p62
      $region14: #{myconvnet_forward.1} parent=11 // pred_check_branch
        %252 = sbr.rel (%p250) target = $region16
      $region15: #{myconvnet_forward.1} parent=11 // pred_region
        _
      $region16: #{myconvnet_forward.1} parent=11 // pred_fallthru
        _
      // Predicated region
      $region17: #{myconvnet_forward.1} parent=11 // pred_check
        %p253 = pneg %p83
      $region18: #{myconvnet_forward.1} parent=11 // pred_check_branch
        %255 = sbr.rel (%p253) target = $region20
      $region19: #{myconvnet_forward.1} parent=11 // pred_region
        _
      $region20: #{myconvnet_forward.1} parent=11 // pred_fallthru
        _
      // Predicated region
      $region21: #{myconvnet_forward.1} parent=11 // pred_check
        %p256 = pneg %p104
      $region22: #{myconvnet_forward.1} parent=11 // pred_check_branch
        %258 = sbr.rel (%p256) target = $region24
      $region23: #{myconvnet_forward.1} parent=11 // pred_region
        _
      $region24: #{myconvnet_forward.1} parent=11 // pred_fallthru
        _
      // Predicated region
      $region25: #{myconvnet_forward.1} parent=11 // pred_check
        %p259 = pneg %p125
      $region26: #{myconvnet_forward.1} parent=11 // pred_check_branch
        %261 = sbr.rel (%p259) target = $region28
      $region27: #{myconvnet_forward.1} parent=11 // pred_region
        _
      $region28: #{myconvnet_forward.1} parent=11 // pred_fallthru
        _
      // Predicated region
      $region29: #{myconvnet_forward.1} parent=11 // pred_check
        %p262 = pneg %p146
      $region30: #{myconvnet_forward.1} parent=11 // pred_check_branch
        %264 = sbr.rel (%p262) target = $region32
      $region31: #{myconvnet_forward.1} parent=11 // pred_region
        _
      $region32: #{myconvnet_forward.1} parent=11 // pred_fallthru
        _
      // Predicated region
      $region33: #{myconvnet_forward.1} parent=11 // pred_check
        %p265 = pneg %p167
      $region34: #{myconvnet_forward.1} parent=11 // pred_check_branch
        %267 = sbr.rel (%p265) target = $region36
      $region35: #{myconvnet_forward.1} parent=11 // pred_region
        _
      $region36: #{myconvnet_forward.1} parent=11 // pred_fallthru
        _
      // Predicated region
      $region37: #{myconvnet_forward.1} parent=11 // pred_check
        %p268 = pneg %p188
      $region38: #{myconvnet_forward.1} parent=11 // pred_check_branch
        %270 = sbr.rel (%p268) target = $region40
      $region39: #{myconvnet_forward.1} parent=11 // pred_region
        _
      $region40: #{myconvnet_forward.1} parent=11 // pred_fallthru
        _
      // Predicated region
      $region41: #{myconvnet_forward.1} parent=11 // pred_check
        %p271 = pneg %p209
      $region42: #{myconvnet_forward.1} parent=11 // pred_check_branch
        %273 = sbr.rel (%p271) target = $region44
      $region43: #{myconvnet_forward.1} parent=11 // pred_region
        _
      $region44: #{myconvnet_forward.1} parent=11 // pred_fallthru
        _
    $region12: #{myconvnet_forward.1} parent=5 // pred_fallthru
      _
    %p274 = scmp.lt.s32.totalorder %s15, 2
    // Predicated region
    $region45: #{myconvnet_forward.1} parent=5 // pred_check
      %p275 = pneg %p274
    $region46: #{myconvnet_forward.1} parent=5 // pred_check_branch
      %277 = sbr.rel (%p275) target = $region48
    $region47: #{myconvnet_forward.1} parent=5 // pred_region
      // Predicated region
      $region49: #{myconvnet_forward.1} parent=47 // pred_check
        %p278 = pneg %p35
      $region50: #{myconvnet_forward.1} parent=47 // pred_check_branch
        %280 = sbr.rel (%p278) target = $region52
      $region51: #{myconvnet_forward.1} parent=47 // pred_region
        %p281 = scmp.lt.s32.totalorder %s15, 1
        %s282 = scalar_select %p281, %s15, 1
        %s283 = smul.addr %s282, 24
        %s284 = smul.addr %s283, 8
        %s285 = scalar_lea.vmem %s0, %s284
      $region52: #{myconvnet_forward.1} parent=47 // pred_fallthru
        _
    $region48: #{myconvnet_forward.1} parent=5 // pred_fallthru
      _
    %p286 = scmp.le.s32.totalorder 1, %s15
    %p287 = scmp.lt.s32.totalorder %s15, 3
    %p288 = pnand %p286, %p287
    %p289 = pneg %p288
    // Predicated region
    $region53: #{myconvnet_forward.1} parent=5 // pred_check
      _
    $region54: #{myconvnet_forward.1} parent=5 // pred_check_branch
      %291 = sbr.rel (%p288) target = $region56
    $region55: #{myconvnet_forward.1} parent=5 // pred_region
      %s292 = ssub.s32 %s15, 1
      %p293 = scmp.lt.s32.totalorder %s20, 1
      %s294 = scalar_select %p293, %s20, 1
      %s295 = smul.addr %s294, 24
      %s296 = smul.addr %s295, 8
      %s297 = scalar_lea.vmem %s0, %s296
      %p298 = pneg %p41
      %p299 = pneg %p38
      %p300 = pneg %p62
      %p301 = pneg %p59
      %p302 = pneg %p83
      %p303 = pneg %p80
      %p304 = pneg %p104
      %p305 = pneg %p101
      %p306 = pneg %p125
      %p307 = pneg %p122
      %p308 = pneg %p146
      %p309 = pneg %p143
      %p310 = pneg %p167
      %p311 = pneg %p164
      %p312 = pneg %p188
      %p313 = pneg %p185
      %p314 = pneg %p209
      %p315 = pneg %p206
      %p316 = pneg %p235
      %p317 = pneg %p232
      %p318 = scmp.lt.s32.totalorder %s20, 1
      %s319 = scalar_select %p318, %s20, 1
      %s320 = smul.addr %s319, 2
      %s321 = smul.addr %s320, 8
      %s322 = scalar_lea.vmem %s9, %s321
      %p323 = scmp.lt.s32.totalorder %s20, 1
      %s324 = scalar_select %p323, %s20, 1
      %s325 = smul.addr %s324, 24
      %s326 = smul.addr %s325, 8
      %s327 = scalar_lea.vmem %s0, %s326
      %p328 = scmp.lt.s32.totalorder %s20, 1
      %s329 = scalar_select %p328, %s20, 1
      %s330 = smul.addr %s329, 2
      %s331 = smul.addr %s330, 8
      %s332 = scalar_lea.vmem %s9, %s331
      %v333 = vld [vmem:[%s327] sm:$0xff]
      %v334 = vld [vmem:[%s327 + $0x8] sm:$0xff]
      %v335 = vld [vmem:[%s327 + $0x10] sm:$0xff]
      %v336 = vld [vmem:[%s327 + $0x18] sm:$0xff]
      %v337 = vld [vmem:[%s327 + $0x20] sm:$0xff]
      %v338 = vld [vmem:[%s327 + $0x28] sm:$0xff]
      %v339 = vld [vmem:[%s327 + $0x30] sm:$0xff]
      %v340 = vld [vmem:[%s327 + $0x38] sm:$0xff]
      %v341 = vld [vmem:[%s327 + $0x40] sm:$0xff]
      %v342 = vld [vmem:[%s327 + $0x48] sm:$0xff]
      %v343 = vld [vmem:[%s327 + $0x50] sm:$0xff]
      %v344 = vld [vmem:[%s327 + $0x58] sm:$0xff]
      %v345 = vld [vmem:[%s327 + $0x60] sm:$0xff]
      %v346 = vld [vmem:[%s327 + $0x68] sm:$0xff]
      %v347 = vld [vmem:[%s327 + $0x70] sm:$0xff]
      %v348 = vld [vmem:[%s327 + $0x78] sm:$0xff]
      %v349 = vld [vmem:[%s327 + $0x80] sm:$0xff]
      %v350 = vld [vmem:[%s327 + $0x88] sm:$0xff]
      %v351 = vld [vmem:[%s327 + $0x90] sm:$0xff]
      %v352 = vld [vmem:[%s327 + $0x98] sm:$0xff]
      %v353 = vld [vmem:[%s327 + $0xa0] sm:$0xff]
      %v354 = vld [vmem:[%s327 + $0xa8] sm:$0xff]
      %v355 = vld [vmem:[%s327 + $0xb0] sm:$0xff]
      %v356 = vld [vmem:[%s327 + $0xb8] sm:$0xff]
      %381 = vrot.lane.b32.xlu0 %v333, 127
      %v382 = vpop.permute.xlu0 %381
      %383 = vrot.lane.b32.xlu0 %v334, 127
      %v384 = vpop.permute.xlu0 %383
      %385 = vrot.lane.b32.xlu0 %v335, 127
      %v386 = vpop.permute.xlu0 %385
      %387 = vrot.lane.b32.xlu0 %v336, 127
      %v388 = vpop.permute.xlu0 %387
      %389 = vrot.lane.b32.xlu0 %v337, 127
      %v390 = vpop.permute.xlu0 %389
      %391 = vrot.lane.b32.xlu0 %v338, 127
      %v392 = vpop.permute.xlu0 %391
      %393 = vrot.lane.b32.xlu0 %v339, 127
      %v394 = vpop.permute.xlu0 %393
      %395 = vrot.lane.b32.xlu0 %v340, 127
      %v396 = vpop.permute.xlu0 %395
      %397 = vrot.lane.b32.xlu0 %v341, 127
      %v398 = vpop.permute.xlu0 %397
      %399 = vrot.lane.b32.xlu0 %v342, 127
      %v400 = vpop.permute.xlu0 %399
      %401 = vrot.lane.b32.xlu0 %v343, 127
      %v402 = vpop.permute.xlu0 %401
      %403 = vrot.lane.b32.xlu0 %v344, 127
      %v404 = vpop.permute.xlu0 %403
      %405 = vrot.lane.b32.xlu0 %v345, 127
      %v406 = vpop.permute.xlu0 %405
      %407 = vrot.lane.b32.xlu0 %v346, 127
      %v408 = vpop.permute.xlu0 %407
      %409 = vrot.lane.b32.xlu0 %v347, 127
      %v410 = vpop.permute.xlu0 %409
      %411 = vrot.lane.b32.xlu0 %v348, 127
      %v412 = vpop.permute.xlu0 %411
      %413 = vrot.lane.b32.xlu0 %v349, 127
      %v414 = vpop.permute.xlu0 %413
      %415 = vrot.lane.b32.xlu0 %v350, 127
      %v416 = vpop.permute.xlu0 %415
      %417 = vrot.lane.b32.xlu0 %v351, 127
      %v418 = vpop.permute.xlu0 %417
      %419 = vrot.lane.b32.xlu0 %v352, 127
      %v420 = vpop.permute.xlu0 %419
      %421 = vrot.lane.b32.xlu0 %v353, 127
      %v422 = vpop.permute.xlu0 %421
      %423 = vrot.lane.b32.xlu0 %v354, 127
      %v424 = vpop.permute.xlu0 %423
      %425 = vrot.lane.b32.xlu0 %v355, 127
      %v426 = vpop.permute.xlu0 %425
      %427 = vrot.lane.b32.xlu0 %v356, 127
      %v428 = vpop.permute.xlu0 %427
      %vm429 = vcmask 1039360
      %v430 = vsel %vm429, %v382, %v384
      %v431 = vsel %vm429, %v384, %v386
      %v432 = vsel %vm429, %v386, %v388
      %v433 = vsel %vm429, %v388, %v390
      %v434 = vsel %vm429, %v390, %v392
      %v435 = vsel %vm429, %v392, %v394
      %v436 = vsel %vm429, %v394, %v396
      %v437 = vsel %vm429, %v396, %v398
      %v438 = vsel %vm429, %v398, %v400
      %v439 = vsel %vm429, %v400, %v402
      %v440 = vsel %vm429, %v402, %v404
      %v441 = vsel %vm429, %v404, %v406
      %v442 = vsel %vm429, %v406, %v408
      %v443 = vsel %vm429, %v408, %v410
      %v444 = vsel %vm429, %v410, %v412
      %v445 = vsel %vm429, %v412, %v414
      %v446 = vsel %vm429, %v414, %v416
      %v447 = vsel %vm429, %v416, %v418
      %v448 = vsel %vm429, %v418, %v420
      %v449 = vsel %vm429, %v420, %v422
      %v450 = vsel %vm429, %v422, %v424
      %v451 = vsel %vm429, %v424, %v426
      %v452 = vsel %vm429, %v426, %v428
      %477 = vrot.lane.b32.xlu0 %v333, 126
      %v478 = vpop.permute.xlu0 %477
      %479 = vrot.lane.b32.xlu0 %v334, 126
      %v480 = vpop.permute.xlu0 %479
      %481 = vrot.lane.b32.xlu0 %v335, 126
      %v482 = vpop.permute.xlu0 %481
      %483 = vrot.lane.b32.xlu0 %v336, 126
      %v484 = vpop.permute.xlu0 %483
      %485 = vrot.lane.b32.xlu0 %v337, 126
      %v486 = vpop.permute.xlu0 %485
      %487 = vrot.lane.b32.xlu0 %v338, 126
      %v488 = vpop.permute.xlu0 %487
      %489 = vrot.lane.b32.xlu0 %v339, 126
      %v490 = vpop.permute.xlu0 %489
      %491 = vrot.lane.b32.xlu0 %v340, 126
      %v492 = vpop.permute.xlu0 %491
      %493 = vrot.lane.b32.xlu0 %v341, 126
      %v494 = vpop.permute.xlu0 %493
      %495 = vrot.lane.b32.xlu0 %v342, 126
      %v496 = vpop.permute.xlu0 %495
      %497 = vrot.lane.b32.xlu0 %v343, 126
      %v498 = vpop.permute.xlu0 %497
      %499 = vrot.lane.b32.xlu0 %v344, 126
      %v500 = vpop.permute.xlu0 %499
      %501 = vrot.lane.b32.xlu0 %v345, 126
      %v502 = vpop.permute.xlu0 %501
      %503 = vrot.lane.b32.xlu0 %v346, 126
      %v504 = vpop.permute.xlu0 %503
      %505 = vrot.lane.b32.xlu0 %v347, 126
      %v506 = vpop.permute.xlu0 %505
      %507 = vrot.lane.b32.xlu0 %v348, 126
      %v508 = vpop.permute.xlu0 %507
      %509 = vrot.lane.b32.xlu0 %v349, 126
      %v510 = vpop.permute.xlu0 %509
      %511 = vrot.lane.b32.xlu0 %v350, 126
      %v512 = vpop.permute.xlu0 %511
      %513 = vrot.lane.b32.xlu0 %v351, 126
      %v514 = vpop.permute.xlu0 %513
      %515 = vrot.lane.b32.xlu0 %v352, 126
      %v516 = vpop.permute.xlu0 %515
      %517 = vrot.lane.b32.xlu0 %v353, 126
      %v518 = vpop.permute.xlu0 %517
      %519 = vrot.lane.b32.xlu0 %v354, 126
      %v520 = vpop.permute.xlu0 %519
      %521 = vrot.lane.b32.xlu0 %v355, 126
      %v522 = vpop.permute.xlu0 %521
      %523 = vrot.lane.b32.xlu0 %v356, 126
      %v524 = vpop.permute.xlu0 %523
      %vm525 = vcmask 1031168
      %v526 = vsel %vm525, %v478, %v480
      %v527 = vsel %vm525, %v480, %v482
      %v528 = vsel %vm525, %v482, %v484
      %v529 = vsel %vm525, %v484, %v486
      %v530 = vsel %vm525, %v486, %v488
      %v531 = vsel %vm525, %v488, %v490
      %v532 = vsel %vm525, %v490, %v492
      %v533 = vsel %vm525, %v492, %v494
      %v534 = vsel %vm525, %v494, %v496
      %v535 = vsel %vm525, %v496, %v498
      %v536 = vsel %vm525, %v498, %v500
      %v537 = vsel %vm525, %v500, %v502
      %v538 = vsel %vm525, %v502, %v504
      %v539 = vsel %vm525, %v504, %v506
      %v540 = vsel %vm525, %v506, %v508
      %v541 = vsel %vm525, %v508, %v510
      %v542 = vsel %vm525, %v510, %v512
      %v543 = vsel %vm525, %v512, %v514
      %v544 = vsel %vm525, %v514, %v516
      %v545 = vsel %vm525, %v516, %v518
      %v546 = vsel %vm525, %v518, %v520
      %v547 = vsel %vm525, %v520, %v522
      %v548 = vsel %vm525, %v522, %v524
      %573 = vrot.lane.b32.xlu0 %v333, 110
      %v574 = vpop.permute.xlu0 %573
      %575 = vrot.lane.b32.xlu0 %v334, 110
      %v576 = vpop.permute.xlu0 %575
      %577 = vrot.lane.b32.xlu0 %v335, 110
      %v578 = vpop.permute.xlu0 %577
      %579 = vrot.lane.b32.xlu0 %v336, 110
      %v580 = vpop.permute.xlu0 %579
      %581 = vrot.lane.b32.xlu0 %v337, 110
      %v582 = vpop.permute.xlu0 %581
      %583 = vrot.lane.b32.xlu0 %v338, 110
      %v584 = vpop.permute.xlu0 %583
      %585 = vrot.lane.b32.xlu0 %v339, 110
      %v586 = vpop.permute.xlu0 %585
      %587 = vrot.lane.b32.xlu0 %v340, 110
      %v588 = vpop.permute.xlu0 %587
      %589 = vrot.lane.b32.xlu0 %v341, 110
      %v590 = vpop.permute.xlu0 %589
      %591 = vrot.lane.b32.xlu0 %v342, 110
      %v592 = vpop.permute.xlu0 %591
      %593 = vrot.lane.b32.xlu0 %v343, 110
      %v594 = vpop.permute.xlu0 %593
      %595 = vrot.lane.b32.xlu0 %v344, 110
      %v596 = vpop.permute.xlu0 %595
      %597 = vrot.lane.b32.xlu0 %v345, 110
      %v598 = vpop.permute.xlu0 %597
      %599 = vrot.lane.b32.xlu0 %v346, 110
      %v600 = vpop.permute.xlu0 %599
      %601 = vrot.lane.b32.xlu0 %v347, 110
      %v602 = vpop.permute.xlu0 %601
      %603 = vrot.lane.b32.xlu0 %v348, 110
      %v604 = vpop.permute.xlu0 %603
      %605 = vrot.lane.b32.xlu0 %v349, 110
      %v606 = vpop.permute.xlu0 %605
      %607 = vrot.lane.b32.xlu0 %v350, 110
      %v608 = vpop.permute.xlu0 %607
      %609 = vrot.lane.b32.xlu0 %v351, 110
      %v610 = vpop.permute.xlu0 %609
      %611 = vrot.lane.b32.xlu0 %v352, 110
      %v612 = vpop.permute.xlu0 %611
      %613 = vrot.lane.b32.xlu0 %v353, 110
      %v614 = vpop.permute.xlu0 %613
      %615 = vrot.lane.b32.xlu0 %v354, 110
      %v616 = vpop.permute.xlu0 %615
      %617 = vrot.lane.b32.xlu0 %v355, 110
      %v618 = vpop.permute.xlu0 %617
      %619 = vrot.lane.b32.xlu0 %v356, 110
      %v620 = vpop.permute.xlu0 %619
      %vm621 = vcmask 900096
      %v622 = vsel %vm621, %v574, %v576
      %v623 = vsel %vm621, %v576, %v578
      %v624 = vsel %vm621, %v578, %v580
      %v625 = vsel %vm621, %v580, %v582
      %v626 = vsel %vm621, %v582, %v584
      %v627 = vsel %vm621, %v584, %v586
      %v628 = vsel %vm621, %v586, %v588
      %v629 = vsel %vm621, %v588, %v590
      %v630 = vsel %vm621, %v590, %v592
      %v631 = vsel %vm621, %v592, %v594
      %v632 = vsel %vm621, %v594, %v596
      %v633 = vsel %vm621, %v596, %v598
      %v634 = vsel %vm621, %v598, %v600
      %v635 = vsel %vm621, %v600, %v602
      %v636 = vsel %vm621, %v602, %v604
      %v637 = vsel %vm621, %v604, %v606
      %v638 = vsel %vm621, %v606, %v608
      %v639 = vsel %vm621, %v608, %v610
      %v640 = vsel %vm621, %v610, %v612
      %v641 = vsel %vm621, %v612, %v614
      %v642 = vsel %vm621, %v614, %v616
      %v643 = vsel %vm621, %v616, %v618
      %v644 = vsel %vm621, %v618, %v620
      %669 = vrot.lane.b32.xlu0 %v333, 109
      %v670 = vpop.permute.xlu0 %669
      %671 = vrot.lane.b32.xlu0 %v334, 109
      %v672 = vpop.permute.xlu0 %671
      %673 = vrot.lane.b32.xlu0 %v335, 109
      %v674 = vpop.permute.xlu0 %673
      %675 = vrot.lane.b32.xlu0 %v336, 109
      %v676 = vpop.permute.xlu0 %675
      %677 = vrot.lane.b32.xlu0 %v337, 109
      %v678 = vpop.permute.xlu0 %677
      %679 = vrot.lane.b32.xlu0 %v338, 109
      %v680 = vpop.permute.xlu0 %679
      %681 = vrot.lane.b32.xlu0 %v339, 109
      %v682 = vpop.permute.xlu0 %681
      %683 = vrot.lane.b32.xlu0 %v340, 109
      %v684 = vpop.permute.xlu0 %683
      %685 = vrot.lane.b32.xlu0 %v341, 109
      %v686 = vpop.permute.xlu0 %685
      %687 = vrot.lane.b32.xlu0 %v342, 109
      %v688 = vpop.permute.xlu0 %687
      %689 = vrot.lane.b32.xlu0 %v343, 109
      %v690 = vpop.permute.xlu0 %689
      %691 = vrot.lane.b32.xlu0 %v344, 109
      %v692 = vpop.permute.xlu0 %691
      %693 = vrot.lane.b32.xlu0 %v345, 109
      %v694 = vpop.permute.xlu0 %693
      %695 = vrot.lane.b32.xlu0 %v346, 109
      %v696 = vpop.permute.xlu0 %695
      %697 = vrot.lane.b32.xlu0 %v347, 109
      %v698 = vpop.permute.xlu0 %697
      %699 = vrot.lane.b32.xlu0 %v348, 109
      %v700 = vpop.permute.xlu0 %699
      %701 = vrot.lane.b32.xlu0 %v349, 109
      %v702 = vpop.permute.xlu0 %701
      %703 = vrot.lane.b32.xlu0 %v350, 109
      %v704 = vpop.permute.xlu0 %703
      %705 = vrot.lane.b32.xlu0 %v351, 109
      %v706 = vpop.permute.xlu0 %705
      %707 = vrot.lane.b32.xlu0 %v352, 109
      %v708 = vpop.permute.xlu0 %707
      %709 = vrot.lane.b32.xlu0 %v353, 109
      %v710 = vpop.permute.xlu0 %709
      %711 = vrot.lane.b32.xlu0 %v354, 109
      %v712 = vpop.permute.xlu0 %711
      %713 = vrot.lane.b32.xlu0 %v355, 109
      %v714 = vpop.permute.xlu0 %713
      %715 = vrot.lane.b32.xlu0 %v356, 109
      %v716 = vpop.permute.xlu0 %715
      %vm717 = vcmask 891904
      %v718 = vsel %vm717, %v670, %v672
      %v719 = vsel %vm717, %v672, %v674
      %v720 = vsel %vm717, %v674, %v676
      %v721 = vsel %vm717, %v676, %v678
      %v722 = vsel %vm717, %v678, %v680
      %v723 = vsel %vm717, %v680, %v682
      %v724 = vsel %vm717, %v682, %v684
      %v725 = vsel %vm717, %v684, %v686
      %v726 = vsel %vm717, %v686, %v688
      %v727 = vsel %vm717, %v688, %v690
      %v728 = vsel %vm717, %v690, %v692
      %v729 = vsel %vm717, %v692, %v694
      %v730 = vsel %vm717, %v694, %v696
      %v731 = vsel %vm717, %v696, %v698
      %v732 = vsel %vm717, %v698, %v700
      %v733 = vsel %vm717, %v700, %v702
      %v734 = vsel %vm717, %v702, %v704
      %v735 = vsel %vm717, %v704, %v706
      %v736 = vsel %vm717, %v706, %v708
      %v737 = vsel %vm717, %v708, %v710
      %v738 = vsel %vm717, %v710, %v712
      %v739 = vsel %vm717, %v712, %v714
      %v740 = vsel %vm717, %v714, %v716
      %765 = vrot.lane.b32.xlu0 %v333, 108
      %v766 = vpop.permute.xlu0 %765
      %767 = vrot.lane.b32.xlu0 %v334, 108
      %v768 = vpop.permute.xlu0 %767
      %769 = vrot.lane.b32.xlu0 %v335, 108
      %v770 = vpop.permute.xlu0 %769
      %771 = vrot.lane.b32.xlu0 %v336, 108
      %v772 = vpop.permute.xlu0 %771
      %773 = vrot.lane.b32.xlu0 %v337, 108
      %v774 = vpop.permute.xlu0 %773
      %775 = vrot.lane.b32.xlu0 %v338, 108
      %v776 = vpop.permute.xlu0 %775
      %777 = vrot.lane.b32.xlu0 %v339, 108
      %v778 = vpop.permute.xlu0 %777
      %779 = vrot.lane.b32.xlu0 %v340, 108
      %v780 = vpop.permute.xlu0 %779
      %781 = vrot.lane.b32.xlu0 %v341, 108
      %v782 = vpop.permute.xlu0 %781
      %783 = vrot.lane.b32.xlu0 %v342, 108
      %v784 = vpop.permute.xlu0 %783
      %785 = vrot.lane.b32.xlu0 %v343, 108
      %v786 = vpop.permute.xlu0 %785
      %787 = vrot.lane.b32.xlu0 %v344, 108
      %v788 = vpop.permute.xlu0 %787
      %789 = vrot.lane.b32.xlu0 %v345, 108
      %v790 = vpop.permute.xlu0 %789
      %791 = vrot.lane.b32.xlu0 %v346, 108
      %v792 = vpop.permute.xlu0 %791
      %793 = vrot.lane.b32.xlu0 %v347, 108
      %v794 = vpop.permute.xlu0 %793
      %795 = vrot.lane.b32.xlu0 %v348, 108
      %v796 = vpop.permute.xlu0 %795
      %797 = vrot.lane.b32.xlu0 %v349, 108
      %v798 = vpop.permute.xlu0 %797
      %799 = vrot.lane.b32.xlu0 %v350, 108
      %v800 = vpop.permute.xlu0 %799
      %801 = vrot.lane.b32.xlu0 %v351, 108
      %v802 = vpop.permute.xlu0 %801
      %803 = vrot.lane.b32.xlu0 %v352, 108
      %v804 = vpop.permute.xlu0 %803
      %805 = vrot.lane.b32.xlu0 %v353, 108
      %v806 = vpop.permute.xlu0 %805
      %807 = vrot.lane.b32.xlu0 %v354, 108
      %v808 = vpop.permute.xlu0 %807
      %809 = vrot.lane.b32.xlu0 %v355, 108
      %v810 = vpop.permute.xlu0 %809
      %811 = vrot.lane.b32.xlu0 %v356, 108
      %v812 = vpop.permute.xlu0 %811
      %vm813 = vcmask 883712
      %v814 = vsel %vm813, %v766, %v768
      %v815 = vsel %vm813, %v768, %v770
      %v816 = vsel %vm813, %v770, %v772
      %v817 = vsel %vm813, %v772, %v774
      %v818 = vsel %vm813, %v774, %v776
      %v819 = vsel %vm813, %v776, %v778
      %v820 = vsel %vm813, %v778, %v780
      %v821 = vsel %vm813, %v780, %v782
      %v822 = vsel %vm813, %v782, %v784
      %v823 = vsel %vm813, %v784, %v786
      %v824 = vsel %vm813, %v786, %v788
      %v825 = vsel %vm813, %v788, %v790
      %v826 = vsel %vm813, %v790, %v792
      %v827 = vsel %vm813, %v792, %v794
      %v828 = vsel %vm813, %v794, %v796
      %v829 = vsel %vm813, %v796, %v798
      %v830 = vsel %vm813, %v798, %v800
      %v831 = vsel %vm813, %v800, %v802
      %v832 = vsel %vm813, %v802, %v804
      %v833 = vsel %vm813, %v804, %v806
      %v834 = vsel %vm813, %v806, %v808
      %v835 = vsel %vm813, %v808, %v810
      %v836 = vsel %vm813, %v810, %v812
      %861 = vrot.lane.b32.xlu0 %v333, 92
      %v862 = vpop.permute.xlu0 %861
      %863 = vrot.lane.b32.xlu0 %v334, 92
      %v864 = vpop.permute.xlu0 %863
      %865 = vrot.lane.b32.xlu0 %v335, 92
      %v866 = vpop.permute.xlu0 %865
      %867 = vrot.lane.b32.xlu0 %v336, 92
      %v868 = vpop.permute.xlu0 %867
      %869 = vrot.lane.b32.xlu0 %v337, 92
      %v870 = vpop.permute.xlu0 %869
      %871 = vrot.lane.b32.xlu0 %v338, 92
      %v872 = vpop.permute.xlu0 %871
      %873 = vrot.lane.b32.xlu0 %v339, 92
      %v874 = vpop.permute.xlu0 %873
      %875 = vrot.lane.b32.xlu0 %v340, 92
      %v876 = vpop.permute.xlu0 %875
      %877 = vrot.lane.b32.xlu0 %v341, 92
      %v878 = vpop.permute.xlu0 %877
      %879 = vrot.lane.b32.xlu0 %v342, 92
      %v880 = vpop.permute.xlu0 %879
      %881 = vrot.lane.b32.xlu0 %v343, 92
      %v882 = vpop.permute.xlu0 %881
      %883 = vrot.lane.b32.xlu0 %v344, 92
      %v884 = vpop.permute.xlu0 %883
      %885 = vrot.lane.b32.xlu0 %v345, 92
      %v886 = vpop.permute.xlu0 %885
      %887 = vrot.lane.b32.xlu0 %v346, 92
      %v888 = vpop.permute.xlu0 %887
      %889 = vrot.lane.b32.xlu0 %v347, 92
      %v890 = vpop.permute.xlu0 %889
      %891 = vrot.lane.b32.xlu0 %v348, 92
      %v892 = vpop.permute.xlu0 %891
      %893 = vrot.lane.b32.xlu0 %v349, 92
      %v894 = vpop.permute.xlu0 %893
      %895 = vrot.lane.b32.xlu0 %v350, 92
      %v896 = vpop.permute.xlu0 %895
      %897 = vrot.lane.b32.xlu0 %v351, 92
      %v898 = vpop.permute.xlu0 %897
      %899 = vrot.lane.b32.xlu0 %v352, 92
      %v900 = vpop.permute.xlu0 %899
      %901 = vrot.lane.b32.xlu0 %v353, 92
      %v902 = vpop.permute.xlu0 %901
      %903 = vrot.lane.b32.xlu0 %v354, 92
      %v904 = vpop.permute.xlu0 %903
      %905 = vrot.lane.b32.xlu0 %v355, 92
      %v906 = vpop.permute.xlu0 %905
      %907 = vrot.lane.b32.xlu0 %v356, 92
      %v908 = vpop.permute.xlu0 %907
      %vm909 = vcmask 752640
      %v910 = vsel %vm909, %v862, %v864
      %v911 = vsel %vm909, %v864, %v866
      %v912 = vsel %vm909, %v866, %v868
      %v913 = vsel %vm909, %v868, %v870
      %v914 = vsel %vm909, %v870, %v872
      %v915 = vsel %vm909, %v872, %v874
      %v916 = vsel %vm909, %v874, %v876
      %v917 = vsel %vm909, %v876, %v878
      %v918 = vsel %vm909, %v878, %v880
      %v919 = vsel %vm909, %v880, %v882
      %v920 = vsel %vm909, %v882, %v884
      %v921 = vsel %vm909, %v884, %v886
      %v922 = vsel %vm909, %v886, %v888
      %v923 = vsel %vm909, %v888, %v890
      %v924 = vsel %vm909, %v890, %v892
      %v925 = vsel %vm909, %v892, %v894
      %v926 = vsel %vm909, %v894, %v896
      %v927 = vsel %vm909, %v896, %v898
      %v928 = vsel %vm909, %v898, %v900
      %v929 = vsel %vm909, %v900, %v902
      %v930 = vsel %vm909, %v902, %v904
      %v931 = vsel %vm909, %v904, %v906
      %v932 = vsel %vm909, %v906, %v908
      %957 = vrot.lane.b32.xlu0 %v333, 91
      %v958 = vpop.permute.xlu0 %957
      %959 = vrot.lane.b32.xlu0 %v334, 91
      %v960 = vpop.permute.xlu0 %959
      %961 = vrot.lane.b32.xlu0 %v335, 91
      %v962 = vpop.permute.xlu0 %961
      %963 = vrot.lane.b32.xlu0 %v336, 91
      %v964 = vpop.permute.xlu0 %963
      %965 = vrot.lane.b32.xlu0 %v337, 91
      %v966 = vpop.permute.xlu0 %965
      %967 = vrot.lane.b32.xlu0 %v338, 91
      %v968 = vpop.permute.xlu0 %967
      %969 = vrot.lane.b32.xlu0 %v339, 91
      %v970 = vpop.permute.xlu0 %969
      %971 = vrot.lane.b32.xlu0 %v340, 91
      %v972 = vpop.permute.xlu0 %971
      %973 = vrot.lane.b32.xlu0 %v341, 91
      %v974 = vpop.permute.xlu0 %973
      %975 = vrot.lane.b32.xlu0 %v342, 91
      %v976 = vpop.permute.xlu0 %975
      %977 = vrot.lane.b32.xlu0 %v343, 91
      %v978 = vpop.permute.xlu0 %977
      %979 = vrot.lane.b32.xlu0 %v344, 91
      %v980 = vpop.permute.xlu0 %979
      %981 = vrot.lane.b32.xlu0 %v345, 91
      %v982 = vpop.permute.xlu0 %981
      %983 = vrot.lane.b32.xlu0 %v346, 91
      %v984 = vpop.permute.xlu0 %983
      %985 = vrot.lane.b32.xlu0 %v347, 91
      %v986 = vpop.permute.xlu0 %985
      %987 = vrot.lane.b32.xlu0 %v348, 91
      %v988 = vpop.permute.xlu0 %987
      %989 = vrot.lane.b32.xlu0 %v349, 91
      %v990 = vpop.permute.xlu0 %989
      %991 = vrot.lane.b32.xlu0 %v350, 91
      %v992 = vpop.permute.xlu0 %991
      %993 = vrot.lane.b32.xlu0 %v351, 91
      %v994 = vpop.permute.xlu0 %993
      %995 = vrot.lane.b32.xlu0 %v352, 91
      %v996 = vpop.permute.xlu0 %995
      %997 = vrot.lane.b32.xlu0 %v353, 91
      %v998 = vpop.permute.xlu0 %997
      %999 = vrot.lane.b32.xlu0 %v354, 91
      %v1000 = vpop.permute.xlu0 %999
      %1001 = vrot.lane.b32.xlu0 %v355, 91
      %v1002 = vpop.permute.xlu0 %1001
      %1003 = vrot.lane.b32.xlu0 %v356, 91
      %v1004 = vpop.permute.xlu0 %1003
      %vm1005 = vcmask 744448
      %v1006 = vsel %vm1005, %v958, %v960
      %v1007 = vsel %vm1005, %v960, %v962
      %v1008 = vsel %vm1005, %v962, %v964
      %v1009 = vsel %vm1005, %v964, %v966
      %v1010 = vsel %vm1005, %v966, %v968
      %v1011 = vsel %vm1005, %v968, %v970
      %v1012 = vsel %vm1005, %v970, %v972
      %v1013 = vsel %vm1005, %v972, %v974
      %v1014 = vsel %vm1005, %v974, %v976
      %v1015 = vsel %vm1005, %v976, %v978
      %v1016 = vsel %vm1005, %v978, %v980
      %v1017 = vsel %vm1005, %v980, %v982
      %v1018 = vsel %vm1005, %v982, %v984
      %v1019 = vsel %vm1005, %v984, %v986
      %v1020 = vsel %vm1005, %v986, %v988
      %v1021 = vsel %vm1005, %v988, %v990
      %v1022 = vsel %vm1005, %v990, %v992
      %v1023 = vsel %vm1005, %v992, %v994
      %v1024 = vsel %vm1005, %v994, %v996
      %v1025 = vsel %vm1005, %v996, %v998
      %v1026 = vsel %vm1005, %v998, %v1000
      %v1027 = vsel %vm1005, %v1000, %v1002
      %v1028 = vsel %vm1005, %v1002, %v1004
      %1053 = vrot.lane.b32.xlu0 %v333, 90
      %v1054 = vpop.permute.xlu0 %1053
      %1055 = vrot.lane.b32.xlu0 %v334, 90
      %v1056 = vpop.permute.xlu0 %1055
      %1057 = vrot.lane.b32.xlu0 %v335, 90
      %v1058 = vpop.permute.xlu0 %1057
      %1059 = vrot.lane.b32.xlu0 %v336, 90
      %v1060 = vpop.permute.xlu0 %1059
      %1061 = vrot.lane.b32.xlu0 %v337, 90
      %v1062 = vpop.permute.xlu0 %1061
      %1063 = vrot.lane.b32.xlu0 %v338, 90
      %v1064 = vpop.permute.xlu0 %1063
      %1065 = vrot.lane.b32.xlu0 %v339, 90
      %v1066 = vpop.permute.xlu0 %1065
      %1067 = vrot.lane.b32.xlu0 %v340, 90
      %v1068 = vpop.permute.xlu0 %1067
      %1069 = vrot.lane.b32.xlu0 %v341, 90
      %v1070 = vpop.permute.xlu0 %1069
      %1071 = vrot.lane.b32.xlu0 %v342, 90
      %v1072 = vpop.permute.xlu0 %1071
      %1073 = vrot.lane.b32.xlu0 %v343, 90
      %v1074 = vpop.permute.xlu0 %1073
      %1075 = vrot.lane.b32.xlu0 %v344, 90
      %v1076 = vpop.permute.xlu0 %1075
      %1077 = vrot.lane.b32.xlu0 %v345, 90
      %v1078 = vpop.permute.xlu0 %1077
      %1079 = vrot.lane.b32.xlu0 %v346, 90
      %v1080 = vpop.permute.xlu0 %1079
      %1081 = vrot.lane.b32.xlu0 %v347, 90
      %v1082 = vpop.permute.xlu0 %1081
      %1083 = vrot.lane.b32.xlu0 %v348, 90
      %v1084 = vpop.permute.xlu0 %1083
      %1085 = vrot.lane.b32.xlu0 %v349, 90
      %v1086 = vpop.permute.xlu0 %1085
      %1087 = vrot.lane.b32.xlu0 %v350, 90
      %v1088 = vpop.permute.xlu0 %1087
      %1089 = vrot.lane.b32.xlu0 %v351, 90
      %v1090 = vpop.permute.xlu0 %1089
      %1091 = vrot.lane.b32.xlu0 %v352, 90
      %v1092 = vpop.permute.xlu0 %1091
      %1093 = vrot.lane.b32.xlu0 %v353, 90
      %v1094 = vpop.permute.xlu0 %1093
      %1095 = vrot.lane.b32.xlu0 %v354, 90
      %v1096 = vpop.permute.xlu0 %1095
      %1097 = vrot.lane.b32.xlu0 %v355, 90
      %v1098 = vpop.permute.xlu0 %1097
      %1099 = vrot.lane.b32.xlu0 %v356, 90
      %v1100 = vpop.permute.xlu0 %1099
      %vm1101 = vcmask 736256
      %v1102 = vsel %vm1101, %v1054, %v1056
      %v1103 = vsel %vm1101, %v1056, %v1058
      %v1104 = vsel %vm1101, %v1058, %v1060
      %v1105 = vsel %vm1101, %v1060, %v1062
      %v1106 = vsel %vm1101, %v1062, %v1064
      %v1107 = vsel %vm1101, %v1064, %v1066
      %v1108 = vsel %vm1101, %v1066, %v1068
      %v1109 = vsel %vm1101, %v1068, %v1070
      %v1110 = vsel %vm1101, %v1070, %v1072
      %v1111 = vsel %vm1101, %v1072, %v1074
      %v1112 = vsel %vm1101, %v1074, %v1076
      %v1113 = vsel %vm1101, %v1076, %v1078
      %v1114 = vsel %vm1101, %v1078, %v1080
      %v1115 = vsel %vm1101, %v1080, %v1082
      %v1116 = vsel %vm1101, %v1082, %v1084
      %v1117 = vsel %vm1101, %v1084, %v1086
      %v1118 = vsel %vm1101, %v1086, %v1088
      %v1119 = vsel %vm1101, %v1088, %v1090
      %v1120 = vsel %vm1101, %v1090, %v1092
      %v1121 = vsel %vm1101, %v1092, %v1094
      %v1122 = vsel %vm1101, %v1094, %v1096
      %v1123 = vsel %vm1101, %v1096, %v1098
      %v1124 = vsel %vm1101, %v1098, %v1100
      %v1149 = vld [vmem:[%s1] sm:$0xff]
      %v1150 = vld [vmem:[%s2] sm:$0xff]
      %1152 = vset.pattern.permute.xlu0 0
      %1153 = vperm.xlu0 %1152, %v1150
      %v1154 = vpop.permute.xlu0 %1153
      %vm1156 = vcmask 588800
      %v1158 = vsel %vm1156, %v1149, 0
      %1160 = vmatprep.subr.mxu0 %v334
      %1161 = vmatpush1.msra.mxu0 %v333
      %1162 = vmatprep.subr.mxu0 %v431
      %1163 = vmatpush1.msra.mxu0 %v430
      %1164 = vmatprep.subr.mxu0 %v527
      %1165 = vmatpush1.msra.mxu0 %v526
      %1166 = vmatprep.subr.mxu0 %v623
      %1167 = vmatpush1.msra.mxu0 %v622
      %1168 = vmatprep.subr.mxu0 %v719
      %1169 = vmatpush1.msra.mxu0 %v718
      %1170 = vmatprep.subr.mxu0 %v815
      %1171 = vmatpush1.msra.mxu0 %v814
      %1172 = vmatprep.subr.mxu0 %v911
      %1173 = vmatpush1.msra.mxu0 %v910
      %1174 = vmatprep.subr.mxu0 %v1007
      %1175 = vmatpush1.msra.mxu0 %v1006
      %1176 = vmatprep.subr.mxu0 %v1103
      %1177 = vmatpush1.msra.mxu0 %v1102
      %1178 = vmatprep.subr.mxu0 0.0
      %1179 = vmatpush1.msra.mxu0 0.0
      %1180 = vmatprep.subr.mxu0 0.0
      %1181 = vmatpush1.msra.mxu0 0.0
      %1182 = vmatprep.subr.mxu0 0.0
      %1183 = vmatpush1.msra.mxu0 0.0
      %1184 = vmatprep.subr.mxu0 0.0
      %1185 = vmatpush1.msra.mxu0 0.0
      %1186 = vmatprep.subr.mxu0 0.0
      %1187 = vmatpush1.msra.mxu0 0.0
      %1188 = vmatprep.subr.mxu0 0.0
      %1189 = vmatpush1.msra.mxu0 0.0
      %1190 = vmatprep.subr.mxu0 0.0
      %1191 = vmatpush1.msra.mxu0 0.0
      %1192 = vmatprep.subr.mxu0 0.0
      %1193 = vmatpush1.msra.mxu0 0.0
      %1194 = vmatprep.subr.mxu0 0.0
      %1195 = vmatpush1.msra.mxu0 0.0
      %1196 = vmatprep.subr.mxu0 0.0
      %1197 = vmatpush1.msra.mxu0 0.0
      %1198 = vmatprep.subr.mxu0 0.0
      %1199 = vmatpush1.msra.mxu0 0.0
      %1200 = vmatprep.subr.mxu0 0.0
      %1201 = vmatpush1.msra.mxu0 0.0
      %1202 = vmatprep.subr.mxu0 0.0
      %1203 = vmatpush1.msra.mxu0 0.0
      %1204 = vmatprep.subr.mxu0 0.0
      %1205 = vmatpush1.msra.mxu0 0.0
      %1206 = vmatprep.subr.mxu0 0.0
      %1207 = vmatpush1.msra.mxu0 0.0
      %1208 = vmatprep.subr.mxu0 0.0
      %1209 = vmatpush1.msra.mxu0 0.0
      %1210 = vmatprep.subr.mxu0 0.0
      %1211 = vmatpush1.msra.mxu0 0.0
      %1212 = vmatprep.subr.mxu0 0.0
      %1213 = vmatpush1.msra.mxu0 0.0
      %1214 = vmatprep.subr.mxu0 0.0
      %1215 = vmatpush1.msra.mxu0 0.0
      %1216 = vmatprep.subr.mxu0 0.0
      %1217 = vmatpush1.msra.mxu0 0.0
      %1218 = vmatprep.subr.mxu0 0.0
      %1219 = vmatpush1.msra.mxu0 0.0
      %1220 = vmatprep.subr.mxu0 0.0
      %1221 = vmatpush1.msra.mxu0 0.0
      %1222 = vmatprep.subr.mxu0 0.0
      %1223 = vmatpush1.msra.mxu0 0.0
      %1224 = vmatprep.mubr.f32.mxu0 0.0
      %1225 = vmatmul.mubr.f32.gmra.mrb[0].mxu0 %v1158
      %v1226 = vpop.f32.mrb[0].mxu0
      %v1227 = vadd.f32 %v1154, %v1226
      %v1228 = vpop.f32.mrb[0].mxu0
      %v1229 = vadd.f32 %v1154, %v1228
      %1230 = vdwg.mxu0
      %1231 = vmatprep.subr.mxu0 %v336
      %1232 = vmatpush1.msra.mxu0 %v335
      %1233 = vmatprep.subr.mxu0 %v433
      %1234 = vmatpush1.msra.mxu0 %v432
      %1235 = vmatprep.subr.mxu0 %v529
      %1236 = vmatpush1.msra.mxu0 %v528
      %1237 = vmatprep.subr.mxu0 %v625
      %1238 = vmatpush1.msra.mxu0 %v624
      %1239 = vmatprep.subr.mxu0 %v721
      %1240 = vmatpush1.msra.mxu0 %v720
      %1241 = vmatprep.subr.mxu0 %v817
      %1242 = vmatpush1.msra.mxu0 %v816
      %1243 = vmatprep.subr.mxu0 %v913
      %1244 = vmatpush1.msra.mxu0 %v912
      %1245 = vmatprep.subr.mxu0 %v1009
      %1246 = vmatpush1.msra.mxu0 %v1008
      %1247 = vmatprep.subr.mxu0 %v1105
      %1248 = vmatpush1.msra.mxu0 %v1104
      %1249 = vmatprep.subr.mxu0 0.0
      %1250 = vmatpush1.msra.mxu0 0.0
      %1251 = vmatprep.subr.mxu0 0.0
      %1252 = vmatpush1.msra.mxu0 0.0
      %1253 = vmatprep.subr.mxu0 0.0
      %1254 = vmatpush1.msra.mxu0 0.0
      %1255 = vmatprep.subr.mxu0 0.0
      %1256 = vmatpush1.msra.mxu0 0.0
      %1257 = vmatprep.subr.mxu0 0.0
      %1258 = vmatpush1.msra.mxu0 0.0
      %1259 = vmatprep.subr.mxu0 0.0
      %1260 = vmatpush1.msra.mxu0 0.0
      %1261 = vmatprep.subr.mxu0 0.0
      %1262 = vmatpush1.msra.mxu0 0.0
      %1263 = vmatprep.subr.mxu0 0.0
      %1264 = vmatpush1.msra.mxu0 0.0
      %1265 = vmatprep.subr.mxu0 0.0
      %1266 = vmatpush1.msra.mxu0 0.0
      %1267 = vmatprep.subr.mxu0 0.0
      %1268 = vmatpush1.msra.mxu0 0.0
      %1269 = vmatprep.subr.mxu0 0.0
      %1270 = vmatpush1.msra.mxu0 0.0
      %1271 = vmatprep.subr.mxu0 0.0
      %1272 = vmatpush1.msra.mxu0 0.0
      %1273 = vmatprep.subr.mxu0 0.0
      %1274 = vmatpush1.msra.mxu0 0.0
      %1275 = vmatprep.subr.mxu0 0.0
      %1276 = vmatpush1.msra.mxu0 0.0
      %1277 = vmatprep.subr.mxu0 0.0
      %1278 = vmatpush1.msra.mxu0 0.0
      %1279 = vmatprep.subr.mxu0 0.0
      %1280 = vmatpush1.msra.mxu0 0.0
      %1281 = vmatprep.subr.mxu0 0.0
      %1282 = vmatpush1.msra.mxu0 0.0
      %1283 = vmatprep.subr.mxu0 0.0
      %1284 = vmatpush1.msra.mxu0 0.0
      %1285 = vmatprep.subr.mxu0 0.0
      %1286 = vmatpush1.msra.mxu0 0.0
      %1287 = vmatprep.subr.mxu0 0.0
      %1288 = vmatpush1.msra.mxu0 0.0
      %1289 = vmatprep.subr.mxu0 0.0
      %1290 = vmatpush1.msra.mxu0 0.0
      %1291 = vmatprep.subr.mxu0 0.0
      %1292 = vmatpush1.msra.mxu0 0.0
      %1293 = vmatprep.subr.mxu0 0.0
      %1294 = vmatpush1.msra.mxu0 0.0
      %1295 = vmatprep.mubr.f32.mxu0 0.0
      %1296 = vmatmul.mubr.f32.gmra.mrb[0].mxu0 %v1158
      %v1297 = vpop.f32.mrb[0].mxu0
      %v1298 = vadd.f32 %v1154, %v1297
      %v1299 = vpop.f32.mrb[0].mxu0
      %v1300 = vadd.f32 %v1154, %v1299
      %1301 = vdwg.mxu0
      %1302 = vmatprep.subr.mxu0 %v338
      %1303 = vmatpush1.msra.mxu0 %v337
      %1304 = vmatprep.subr.mxu0 %v435
      %1305 = vmatpush1.msra.mxu0 %v434
      %1306 = vmatprep.subr.mxu0 %v531
      %1307 = vmatpush1.msra.mxu0 %v530
      %1308 = vmatprep.subr.mxu0 %v627
      %1309 = vmatpush1.msra.mxu0 %v626
      %1310 = vmatprep.subr.mxu0 %v723
      %1311 = vmatpush1.msra.mxu0 %v722
      %1312 = vmatprep.subr.mxu0 %v819
      %1313 = vmatpush1.msra.mxu0 %v818
      %1314 = vmatprep.subr.mxu0 %v915
      %1315 = vmatpush1.msra.mxu0 %v914
      %1316 = vmatprep.subr.mxu0 %v1011
      %1317 = vmatpush1.msra.mxu0 %v1010
      %1318 = vmatprep.subr.mxu0 %v1107
      %1319 = vmatpush1.msra.mxu0 %v1106
      %1320 = vmatprep.subr.mxu0 0.0
      %1321 = vmatpush1.msra.mxu0 0.0
      %1322 = vmatprep.subr.mxu0 0.0
      %1323 = vmatpush1.msra.mxu0 0.0
      %1324 = vmatprep.subr.mxu0 0.0
      %1325 = vmatpush1.msra.mxu0 0.0
      %1326 = vmatprep.subr.mxu0 0.0
      %1327 = vmatpush1.msra.mxu0 0.0
      %1328 = vmatprep.subr.mxu0 0.0
      %1329 = vmatpush1.msra.mxu0 0.0
      %1330 = vmatprep.subr.mxu0 0.0
      %1331 = vmatpush1.msra.mxu0 0.0
      %1332 = vmatprep.subr.mxu0 0.0
      %1333 = vmatpush1.msra.mxu0 0.0
      %1334 = vmatprep.subr.mxu0 0.0
      %1335 = vmatpush1.msra.mxu0 0.0
      %1336 = vmatprep.subr.mxu0 0.0
      %1337 = vmatpush1.msra.mxu0 0.0
      %1338 = vmatprep.subr.mxu0 0.0
      %1339 = vmatpush1.msra.mxu0 0.0
      %1340 = vmatprep.subr.mxu0 0.0
      %1341 = vmatpush1.msra.mxu0 0.0
      %1342 = vmatprep.subr.mxu0 0.0
      %1343 = vmatpush1.msra.mxu0 0.0
      %1344 = vmatprep.subr.mxu0 0.0
      %1345 = vmatpush1.msra.mxu0 0.0
      %1346 = vmatprep.subr.mxu0 0.0
      %1347 = vmatpush1.msra.mxu0 0.0
      %1348 = vmatprep.subr.mxu0 0.0
      %1349 = vmatpush1.msra.mxu0 0.0
      %1350 = vmatprep.subr.mxu0 0.0
      %1351 = vmatpush1.msra.mxu0 0.0
      %1352 = vmatprep.subr.mxu0 0.0
      %1353 = vmatpush1.msra.mxu0 0.0
      %1354 = vmatprep.subr.mxu0 0.0
      %1355 = vmatpush1.msra.mxu0 0.0
      %1356 = vmatprep.subr.mxu0 0.0
      %1357 = vmatpush1.msra.mxu0 0.0
      %1358 = vmatprep.subr.mxu0 0.0
      %1359 = vmatpush1.msra.mxu0 0.0
      %1360 = vmatprep.subr.mxu0 0.0
      %1361 = vmatpush1.msra.mxu0 0.0
      %1362 = vmatprep.subr.mxu0 0.0
      %1363 = vmatpush1.msra.mxu0 0.0
      %1364 = vmatprep.subr.mxu0 0.0
      %1365 = vmatpush1.msra.mxu0 0.0
      %1366 = vmatprep.mubr.f32.mxu0 0.0
      %1367 = vmatmul.mubr.f32.gmra.mrb[0].mxu0 %v1158
      %v1368 = vpop.f32.mrb[0].mxu0
      %v1369 = vadd.f32 %v1154, %v1368
      %v1370 = vpop.f32.mrb[0].mxu0
      %v1371 = vadd.f32 %v1154, %v1370
      %1372 = vdwg.mxu0
      %1373 = vmatprep.subr.mxu0 %v340
      %1374 = vmatpush1.msra.mxu0 %v339
      %1375 = vmatprep.subr.mxu0 %v437
      %1376 = vmatpush1.msra.mxu0 %v436
      %1377 = vmatprep.subr.mxu0 %v533
      %1378 = vmatpush1.msra.mxu0 %v532
      %1379 = vmatprep.subr.mxu0 %v629
      %1380 = vmatpush1.msra.mxu0 %v628
      %1381 = vmatprep.subr.mxu0 %v725
      %1382 = vmatpush1.msra.mxu0 %v724
      %1383 = vmatprep.subr.mxu0 %v821
      %1384 = vmatpush1.msra.mxu0 %v820
      %1385 = vmatprep.subr.mxu0 %v917
      %1386 = vmatpush1.msra.mxu0 %v916
      %1387 = vmatprep.subr.mxu0 %v1013
      %1388 = vmatpush1.msra.mxu0 %v1012
      %1389 = vmatprep.subr.mxu0 %v1109
      %1390 = vmatpush1.msra.mxu0 %v1108
      %1391 = vmatprep.subr.mxu0 0.0
      %1392 = vmatpush1.msra.mxu0 0.0
      %1393 = vmatprep.subr.mxu0 0.0
      %1394 = vmatpush1.msra.mxu0 0.0
      %1395 = vmatprep.subr.mxu0 0.0
      %1396 = vmatpush1.msra.mxu0 0.0
      %1397 = vmatprep.subr.mxu0 0.0
      %1398 = vmatpush1.msra.mxu0 0.0
      %1399 = vmatprep.subr.mxu0 0.0
      %1400 = vmatpush1.msra.mxu0 0.0
      %1401 = vmatprep.subr.mxu0 0.0
      %1402 = vmatpush1.msra.mxu0 0.0
      %1403 = vmatprep.subr.mxu0 0.0
      %1404 = vmatpush1.msra.mxu0 0.0
      %1405 = vmatprep.subr.mxu0 0.0
      %1406 = vmatpush1.msra.mxu0 0.0
      %1407 = vmatprep.subr.mxu0 0.0
      %1408 = vmatpush1.msra.mxu0 0.0
      %1409 = vmatprep.subr.mxu0 0.0
      %1410 = vmatpush1.msra.mxu0 0.0
      %1411 = vmatprep.subr.mxu0 0.0
      %1412 = vmatpush1.msra.mxu0 0.0
      %1413 = vmatprep.subr.mxu0 0.0
      %1414 = vmatpush1.msra.mxu0 0.0
      %1415 = vmatprep.subr.mxu0 0.0
      %1416 = vmatpush1.msra.mxu0 0.0
      %1417 = vmatprep.subr.mxu0 0.0
      %1418 = vmatpush1.msra.mxu0 0.0
      %1419 = vmatprep.subr.mxu0 0.0
      %1420 = vmatpush1.msra.mxu0 0.0
      %1421 = vmatprep.subr.mxu0 0.0
      %1422 = vmatpush1.msra.mxu0 0.0
      %1423 = vmatprep.subr.mxu0 0.0
      %1424 = vmatpush1.msra.mxu0 0.0
      %1425 = vmatprep.subr.mxu0 0.0
      %1426 = vmatpush1.msra.mxu0 0.0
      %1427 = vmatprep.subr.mxu0 0.0
      %1428 = vmatpush1.msra.mxu0 0.0
      %1429 = vmatprep.subr.mxu0 0.0
      %1430 = vmatpush1.msra.mxu0 0.0
      %1431 = vmatprep.subr.mxu0 0.0
      %1432 = vmatpush1.msra.mxu0 0.0
      %1433 = vmatprep.subr.mxu0 0.0
      %1434 = vmatpush1.msra.mxu0 0.0
      %1435 = vmatprep.subr.mxu0 0.0
      %1436 = vmatpush1.msra.mxu0 0.0
      %1437 = vmatprep.mubr.f32.mxu0 0.0
      %1438 = vmatmul.mubr.f32.gmra.mrb[0].mxu0 %v1158
      %v1439 = vpop.f32.mrb[0].mxu0
      %v1440 = vadd.f32 %v1154, %v1439
      %v1441 = vpop.f32.mrb[0].mxu0
      %v1442 = vadd.f32 %v1154, %v1441
      %1443 = vdwg.mxu0
      %1444 = vmatprep.subr.mxu0 %v342
      %1445 = vmatpush1.msra.mxu0 %v341
      %1446 = vmatprep.subr.mxu0 %v439
      %1447 = vmatpush1.msra.mxu0 %v438
      %1448 = vmatprep.subr.mxu0 %v535
      %1449 = vmatpush1.msra.mxu0 %v534
      %1450 = vmatprep.subr.mxu0 %v631
      %1451 = vmatpush1.msra.mxu0 %v630
      %1452 = vmatprep.subr.mxu0 %v727
      %1453 = vmatpush1.msra.mxu0 %v726
      %1454 = vmatprep.subr.mxu0 %v823
      %1455 = vmatpush1.msra.mxu0 %v822
      %1456 = vmatprep.subr.mxu0 %v919
      %1457 = vmatpush1.msra.mxu0 %v918
      %1458 = vmatprep.subr.mxu0 %v1015
      %1459 = vmatpush1.msra.mxu0 %v1014
      %1460 = vmatprep.subr.mxu0 %v1111
      %1461 = vmatpush1.msra.mxu0 %v1110
      %1462 = vmatprep.subr.mxu0 0.0
      %1463 = vmatpush1.msra.mxu0 0.0
      %1464 = vmatprep.subr.mxu0 0.0
      %1465 = vmatpush1.msra.mxu0 0.0
      %1466 = vmatprep.subr.mxu0 0.0
      %1467 = vmatpush1.msra.mxu0 0.0
      %1468 = vmatprep.subr.mxu0 0.0
      %1469 = vmatpush1.msra.mxu0 0.0
      %1470 = vmatprep.subr.mxu0 0.0
      %1471 = vmatpush1.msra.mxu0 0.0
      %1472 = vmatprep.subr.mxu0 0.0
      %1473 = vmatpush1.msra.mxu0 0.0
      %1474 = vmatprep.subr.mxu0 0.0
      %1475 = vmatpush1.msra.mxu0 0.0
      %1476 = vmatprep.subr.mxu0 0.0
      %1477 = vmatpush1.msra.mxu0 0.0
      %1478 = vmatprep.subr.mxu0 0.0
      %1479 = vmatpush1.msra.mxu0 0.0
      %1480 = vmatprep.subr.mxu0 0.0
      %1481 = vmatpush1.msra.mxu0 0.0
      %1482 = vmatprep.subr.mxu0 0.0
      %1483 = vmatpush1.msra.mxu0 0.0
      %1484 = vmatprep.subr.mxu0 0.0
      %1485 = vmatpush1.msra.mxu0 0.0
      %1486 = vmatprep.subr.mxu0 0.0
      %1487 = vmatpush1.msra.mxu0 0.0
      %1488 = vmatprep.subr.mxu0 0.0
      %1489 = vmatpush1.msra.mxu0 0.0
      %1490 = vmatprep.subr.mxu0 0.0
      %1491 = vmatpush1.msra.mxu0 0.0
      %1492 = vmatprep.subr.mxu0 0.0
      %1493 = vmatpush1.msra.mxu0 0.0
      %1494 = vmatprep.subr.mxu0 0.0
      %1495 = vmatpush1.msra.mxu0 0.0
      %1496 = vmatprep.subr.mxu0 0.0
      %1497 = vmatpush1.msra.mxu0 0.0
      %1498 = vmatprep.subr.mxu0 0.0
      %1499 = vmatpush1.msra.mxu0 0.0
      %1500 = vmatprep.subr.mxu0 0.0
      %1501 = vmatpush1.msra.mxu0 0.0
      %1502 = vmatprep.subr.mxu0 0.0
      %1503 = vmatpush1.msra.mxu0 0.0
      %1504 = vmatprep.subr.mxu0 0.0
      %1505 = vmatpush1.msra.mxu0 0.0
      %1506 = vmatprep.subr.mxu0 0.0
      %1507 = vmatpush1.msra.mxu0 0.0
      %1508 = vmatprep.mubr.f32.mxu0 0.0
      %1509 = vmatmul.mubr.f32.gmra.mrb[0].mxu0 %v1158
      %v1510 = vpop.f32.mrb[0].mxu0
      %v1511 = vadd.f32 %v1154, %v1510
      %v1512 = vpop.f32.mrb[0].mxu0
      %v1513 = vadd.f32 %v1154, %v1512
      %1514 = vdwg.mxu0
      %1515 = vmatprep.subr.mxu0 %v344
      %1516 = vmatpush1.msra.mxu0 %v343
      %1517 = vmatprep.subr.mxu0 %v441
      %1518 = vmatpush1.msra.mxu0 %v440
      %1519 = vmatprep.subr.mxu0 %v537
      %1520 = vmatpush1.msra.mxu0 %v536
      %1521 = vmatprep.subr.mxu0 %v633
      %1522 = vmatpush1.msra.mxu0 %v632
      %1523 = vmatprep.subr.mxu0 %v729
      %1524 = vmatpush1.msra.mxu0 %v728
      %1525 = vmatprep.subr.mxu0 %v825
      %1526 = vmatpush1.msra.mxu0 %v824
      %1527 = vmatprep.subr.mxu0 %v921
      %1528 = vmatpush1.msra.mxu0 %v920
      %1529 = vmatprep.subr.mxu0 %v1017
      %1530 = vmatpush1.msra.mxu0 %v1016
      %1531 = vmatprep.subr.mxu0 %v1113
      %1532 = vmatpush1.msra.mxu0 %v1112
      %1533 = vmatprep.subr.mxu0 0.0
      %1534 = vmatpush1.msra.mxu0 0.0
      %1535 = vmatprep.subr.mxu0 0.0
      %1536 = vmatpush1.msra.mxu0 0.0
      %1537 = vmatprep.subr.mxu0 0.0
      %1538 = vmatpush1.msra.mxu0 0.0
      %1539 = vmatprep.subr.mxu0 0.0
      %1540 = vmatpush1.msra.mxu0 0.0
      %1541 = vmatprep.subr.mxu0 0.0
      %1542 = vmatpush1.msra.mxu0 0.0
      %1543 = vmatprep.subr.mxu0 0.0
      %1544 = vmatpush1.msra.mxu0 0.0
      %1545 = vmatprep.subr.mxu0 0.0
      %1546 = vmatpush1.msra.mxu0 0.0
      %1547 = vmatprep.subr.mxu0 0.0
      %1548 = vmatpush1.msra.mxu0 0.0
      %1549 = vmatprep.subr.mxu0 0.0
      %1550 = vmatpush1.msra.mxu0 0.0
      %1551 = vmatprep.subr.mxu0 0.0
      %1552 = vmatpush1.msra.mxu0 0.0
      %1553 = vmatprep.subr.mxu0 0.0
      %1554 = vmatpush1.msra.mxu0 0.0
      %1555 = vmatprep.subr.mxu0 0.0
      %1556 = vmatpush1.msra.mxu0 0.0
      %1557 = vmatprep.subr.mxu0 0.0
      %1558 = vmatpush1.msra.mxu0 0.0
      %1559 = vmatprep.subr.mxu0 0.0
      %1560 = vmatpush1.msra.mxu0 0.0
      %1561 = vmatprep.subr.mxu0 0.0
      %1562 = vmatpush1.msra.mxu0 0.0
      %1563 = vmatprep.subr.mxu0 0.0
      %1564 = vmatpush1.msra.mxu0 0.0
      %1565 = vmatprep.subr.mxu0 0.0
      %1566 = vmatpush1.msra.mxu0 0.0
      %1567 = vmatprep.subr.mxu0 0.0
      %1568 = vmatpush1.msra.mxu0 0.0
      %1569 = vmatprep.subr.mxu0 0.0
      %1570 = vmatpush1.msra.mxu0 0.0
      %1571 = vmatprep.subr.mxu0 0.0
      %1572 = vmatpush1.msra.mxu0 0.0
      %1573 = vmatprep.subr.mxu0 0.0
      %1574 = vmatpush1.msra.mxu0 0.0
      %1575 = vmatprep.subr.mxu0 0.0
      %1576 = vmatpush1.msra.mxu0 0.0
      %1577 = vmatprep.subr.mxu0 0.0
      %1578 = vmatpush1.msra.mxu0 0.0
      %1579 = vmatprep.mubr.f32.mxu0 0.0
      %1580 = vmatmul.mubr.f32.gmra.mrb[0].mxu0 %v1158
      %v1581 = vpop.f32.mrb[0].mxu0
      %v1582 = vadd.f32 %v1154, %v1581
      %v1583 = vpop.f32.mrb[0].mxu0
      %v1584 = vadd.f32 %v1154, %v1583
      %1585 = vdwg.mxu0
      %1586 = vmatprep.subr.mxu0 %v346
      %1587 = vmatpush1.msra.mxu0 %v345
      %1588 = vmatprep.subr.mxu0 %v443
      %1589 = vmatpush1.msra.mxu0 %v442
      %1590 = vmatprep.subr.mxu0 %v539
      %1591 = vmatpush1.msra.mxu0 %v538
      %1592 = vmatprep.subr.mxu0 %v635
      %1593 = vmatpush1.msra.mxu0 %v634
      %1594 = vmatprep.subr.mxu0 %v731
      %1595 = vmatpush1.msra.mxu0 %v730
      %1596 = vmatprep.subr.mxu0 %v827
      %1597 = vmatpush1.msra.mxu0 %v826
      %1598 = vmatprep.subr.mxu0 %v923
      %1599 = vmatpush1.msra.mxu0 %v922
      %1600 = vmatprep.subr.mxu0 %v1019
      %1601 = vmatpush1.msra.mxu0 %v1018
      %1602 = vmatprep.subr.mxu0 %v1115
      %1603 = vmatpush1.msra.mxu0 %v1114
      %1604 = vmatprep.subr.mxu0 0.0
      %1605 = vmatpush1.msra.mxu0 0.0
      %1606 = vmatprep.subr.mxu0 0.0
      %1607 = vmatpush1.msra.mxu0 0.0
      %1608 = vmatprep.subr.mxu0 0.0
      %1609 = vmatpush1.msra.mxu0 0.0
      %1610 = vmatprep.subr.mxu0 0.0
      %1611 = vmatpush1.msra.mxu0 0.0
      %1612 = vmatprep.subr.mxu0 0.0
      %1613 = vmatpush1.msra.mxu0 0.0
      %1614 = vmatprep.subr.mxu0 0.0
      %1615 = vmatpush1.msra.mxu0 0.0
      %1616 = vmatprep.subr.mxu0 0.0
      %1617 = vmatpush1.msra.mxu0 0.0
      %1618 = vmatprep.subr.mxu0 0.0
      %1619 = vmatpush1.msra.mxu0 0.0
      %1620 = vmatprep.subr.mxu0 0.0
      %1621 = vmatpush1.msra.mxu0 0.0
      %1622 = vmatprep.subr.mxu0 0.0
      %1623 = vmatpush1.msra.mxu0 0.0
      %1624 = vmatprep.subr.mxu0 0.0
      %1625 = vmatpush1.msra.mxu0 0.0
      %1626 = vmatprep.subr.mxu0 0.0
      %1627 = vmatpush1.msra.mxu0 0.0
      %1628 = vmatprep.subr.mxu0 0.0
      %1629 = vmatpush1.msra.mxu0 0.0
      %1630 = vmatprep.subr.mxu0 0.0
      %1631 = vmatpush1.msra.mxu0 0.0
      %1632 = vmatprep.subr.mxu0 0.0
      %1633 = vmatpush1.msra.mxu0 0.0
      %1634 = vmatprep.subr.mxu0 0.0
      %1635 = vmatpush1.msra.mxu0 0.0
      %1636 = vmatprep.subr.mxu0 0.0
      %1637 = vmatpush1.msra.mxu0 0.0
      %1638 = vmatprep.subr.mxu0 0.0
      %1639 = vmatpush1.msra.mxu0 0.0
      %1640 = vmatprep.subr.mxu0 0.0
      %1641 = vmatpush1.msra.mxu0 0.0
      %1642 = vmatprep.subr.mxu0 0.0
      %1643 = vmatpush1.msra.mxu0 0.0
      %1644 = vmatprep.subr.mxu0 0.0
      %1645 = vmatpush1.msra.mxu0 0.0
      %1646 = vmatprep.subr.mxu0 0.0
      %1647 = vmatpush1.msra.mxu0 0.0
      %1648 = vmatprep.subr.mxu0 0.0
      %1649 = vmatpush1.msra.mxu0 0.0
      %1650 = vmatprep.mubr.f32.mxu0 0.0
      %1651 = vmatmul.mubr.f32.gmra.mrb[0].mxu0 %v1158
      %v1652 = vpop.f32.mrb[0].mxu0
      %v1653 = vadd.f32 %v1154, %v1652
      %v1654 = vpop.f32.mrb[0].mxu0
      %v1655 = vadd.f32 %v1154, %v1654
      %1656 = vdwg.mxu0
      %1657 = vmatprep.subr.mxu0 %v348
      %1658 = vmatpush1.msra.mxu0 %v347
      %1659 = vmatprep.subr.mxu0 %v445
      %1660 = vmatpush1.msra.mxu0 %v444
      %1661 = vmatprep.subr.mxu0 %v541
      %1662 = vmatpush1.msra.mxu0 %v540
      %1663 = vmatprep.subr.mxu0 %v637
      %1664 = vmatpush1.msra.mxu0 %v636
      %1665 = vmatprep.subr.mxu0 %v733
      %1666 = vmatpush1.msra.mxu0 %v732
      %1667 = vmatprep.subr.mxu0 %v829
      %1668 = vmatpush1.msra.mxu0 %v828
      %1669 = vmatprep.subr.mxu0 %v925
      %1670 = vmatpush1.msra.mxu0 %v924
      %1671 = vmatprep.subr.mxu0 %v1021
      %1672 = vmatpush1.msra.mxu0 %v1020
      %1673 = vmatprep.subr.mxu0 %v1117
      %1674 = vmatpush1.msra.mxu0 %v1116
      %1675 = vmatprep.subr.mxu0 0.0
      %1676 = vmatpush1.msra.mxu0 0.0
      %1677 = vmatprep.subr.mxu0 0.0
      %1678 = vmatpush1.msra.mxu0 0.0
      %1679 = vmatprep.subr.mxu0 0.0
      %1680 = vmatpush1.msra.mxu0 0.0
      %1681 = vmatprep.subr.mxu0 0.0
      %1682 = vmatpush1.msra.mxu0 0.0
      %1683 = vmatprep.subr.mxu0 0.0
      %1684 = vmatpush1.msra.mxu0 0.0
      %1685 = vmatprep.subr.mxu0 0.0
      %1686 = vmatpush1.msra.mxu0 0.0
      %1687 = vmatprep.subr.mxu0 0.0
      %1688 = vmatpush1.msra.mxu0 0.0
      %1689 = vmatprep.subr.mxu0 0.0
      %1690 = vmatpush1.msra.mxu0 0.0
      %1691 = vmatprep.subr.mxu0 0.0
      %1692 = vmatpush1.msra.mxu0 0.0
      %1693 = vmatprep.subr.mxu0 0.0
      %1694 = vmatpush1.msra.mxu0 0.0
      %1695 = vmatprep.subr.mxu0 0.0
      %1696 = vmatpush1.msra.mxu0 0.0
      %1697 = vmatprep.subr.mxu0 0.0
      %1698 = vmatpush1.msra.mxu0 0.0
      %1699 = vmatprep.subr.mxu0 0.0
      %1700 = vmatpush1.msra.mxu0 0.0
      %1701 = vmatprep.subr.mxu0 0.0
      %1702 = vmatpush1.msra.mxu0 0.0
      %1703 = vmatprep.subr.mxu0 0.0
      %1704 = vmatpush1.msra.mxu0 0.0
      %1705 = vmatprep.subr.mxu0 0.0
      %1706 = vmatpush1.msra.mxu0 0.0
      %1707 = vmatprep.subr.mxu0 0.0
      %1708 = vmatpush1.msra.mxu0 0.0
      %1709 = vmatprep.subr.mxu0 0.0
      %1710 = vmatpush1.msra.mxu0 0.0
      %1711 = vmatprep.subr.mxu0 0.0
      %1712 = vmatpush1.msra.mxu0 0.0
      %1713 = vmatprep.subr.mxu0 0.0
      %1714 = vmatpush1.msra.mxu0 0.0
      %1715 = vmatprep.subr.mxu0 0.0
      %1716 = vmatpush1.msra.mxu0 0.0
      %1717 = vmatprep.subr.mxu0 0.0
      %1718 = vmatpush1.msra.mxu0 0.0
      %1719 = vmatprep.subr.mxu0 0.0
      %1720 = vmatpush1.msra.mxu0 0.0
      %1721 = vmatprep.mubr.f32.mxu0 0.0
      %1722 = vmatmul.mubr.f32.gmra.mrb[0].mxu0 %v1158
      %v1723 = vpop.f32.mrb[0].mxu0
      %v1724 = vadd.f32 %v1154, %v1723
      %v1725 = vpop.f32.mrb[0].mxu0
      %v1726 = vadd.f32 %v1154, %v1725
      %1727 = vdwg.mxu0
      %1728 = vmatprep.subr.mxu0 %v350
      %1729 = vmatpush1.msra.mxu0 %v349
      %1730 = vmatprep.subr.mxu0 %v447
      %1731 = vmatpush1.msra.mxu0 %v446
      %1732 = vmatprep.subr.mxu0 %v543
      %1733 = vmatpush1.msra.mxu0 %v542
      %1734 = vmatprep.subr.mxu0 %v639
      %1735 = vmatpush1.msra.mxu0 %v638
      %1736 = vmatprep.subr.mxu0 %v735
      %1737 = vmatpush1.msra.mxu0 %v734
      %1738 = vmatprep.subr.mxu0 %v831
      %1739 = vmatpush1.msra.mxu0 %v830
      %1740 = vmatprep.subr.mxu0 %v927
      %1741 = vmatpush1.msra.mxu0 %v926
      %1742 = vmatprep.subr.mxu0 %v1023
      %1743 = vmatpush1.msra.mxu0 %v1022
      %1744 = vmatprep.subr.mxu0 %v1119
      %1745 = vmatpush1.msra.mxu0 %v1118
      %1746 = vmatprep.subr.mxu0 0.0
      %1747 = vmatpush1.msra.mxu0 0.0
      %1748 = vmatprep.subr.mxu0 0.0
      %1749 = vmatpush1.msra.mxu0 0.0
      %1750 = vmatprep.subr.mxu0 0.0
      %1751 = vmatpush1.msra.mxu0 0.0
      %1752 = vmatprep.subr.mxu0 0.0
      %1753 = vmatpush1.msra.mxu0 0.0
      %1754 = vmatprep.subr.mxu0 0.0
      %1755 = vmatpush1.msra.mxu0 0.0
      %1756 = vmatprep.subr.mxu0 0.0
      %1757 = vmatpush1.msra.mxu0 0.0
      %1758 = vmatprep.subr.mxu0 0.0
      %1759 = vmatpush1.msra.mxu0 0.0
      %1760 = vmatprep.subr.mxu0 0.0
      %1761 = vmatpush1.msra.mxu0 0.0
      %1762 = vmatprep.subr.mxu0 0.0
      %1763 = vmatpush1.msra.mxu0 0.0
      %1764 = vmatprep.subr.mxu0 0.0
      %1765 = vmatpush1.msra.mxu0 0.0
      %1766 = vmatprep.subr.mxu0 0.0
      %1767 = vmatpush1.msra.mxu0 0.0
      %1768 = vmatprep.subr.mxu0 0.0
      %1769 = vmatpush1.msra.mxu0 0.0
      %1770 = vmatprep.subr.mxu0 0.0
      %1771 = vmatpush1.msra.mxu0 0.0
      %1772 = vmatprep.subr.mxu0 0.0
      %1773 = vmatpush1.msra.mxu0 0.0
      %1774 = vmatprep.subr.mxu0 0.0
      %1775 = vmatpush1.msra.mxu0 0.0
      %1776 = vmatprep.subr.mxu0 0.0
      %1777 = vmatpush1.msra.mxu0 0.0
      %1778 = vmatprep.subr.mxu0 0.0
      %1779 = vmatpush1.msra.mxu0 0.0
      %1780 = vmatprep.subr.mxu0 0.0
      %1781 = vmatpush1.msra.mxu0 0.0
      %1782 = vmatprep.subr.mxu0 0.0
      %1783 = vmatpush1.msra.mxu0 0.0
      %1784 = vmatprep.subr.mxu0 0.0
      %1785 = vmatpush1.msra.mxu0 0.0
      %1786 = vmatprep.subr.mxu0 0.0
      %1787 = vmatpush1.msra.mxu0 0.0
      %1788 = vmatprep.subr.mxu0 0.0
      %1789 = vmatpush1.msra.mxu0 0.0
      %1790 = vmatprep.subr.mxu0 0.0
      %1791 = vmatpush1.msra.mxu0 0.0
      %1792 = vmatprep.mubr.f32.mxu0 0.0
      %1793 = vmatmul.mubr.f32.gmra.mrb[0].mxu0 %v1158
      %v1794 = vpop.f32.mrb[0].mxu0
      %v1795 = vadd.f32 %v1154, %v1794
      %v1796 = vpop.f32.mrb[0].mxu0
      %v1797 = vadd.f32 %v1154, %v1796
      %1798 = vdwg.mxu0
      %1799 = vmatprep.subr.mxu0 %v352
      %1800 = vmatpush1.msra.mxu0 %v351
      %1801 = vmatprep.subr.mxu0 %v449
      %1802 = vmatpush1.msra.mxu0 %v448
      %1803 = vmatprep.subr.mxu0 %v545
      %1804 = vmatpush1.msra.mxu0 %v544
      %1805 = vmatprep.subr.mxu0 %v641
      %1806 = vmatpush1.msra.mxu0 %v640
      %1807 = vmatprep.subr.mxu0 %v737
      %1808 = vmatpush1.msra.mxu0 %v736
      %1809 = vmatprep.subr.mxu0 %v833
      %1810 = vmatpush1.msra.mxu0 %v832
      %1811 = vmatprep.subr.mxu0 %v929
      %1812 = vmatpush1.msra.mxu0 %v928
      %1813 = vmatprep.subr.mxu0 %v1025
      %1814 = vmatpush1.msra.mxu0 %v1024
      %1815 = vmatprep.subr.mxu0 %v1121
      %1816 = vmatpush1.msra.mxu0 %v1120
      %1817 = vmatprep.subr.mxu0 0.0
      %1818 = vmatpush1.msra.mxu0 0.0
      %1819 = vmatprep.subr.mxu0 0.0
      %1820 = vmatpush1.msra.mxu0 0.0
      %1821 = vmatprep.subr.mxu0 0.0
      %1822 = vmatpush1.msra.mxu0 0.0
      %1823 = vmatprep.subr.mxu0 0.0
      %1824 = vmatpush1.msra.mxu0 0.0
      %1825 = vmatprep.subr.mxu0 0.0
      %1826 = vmatpush1.msra.mxu0 0.0
      %1827 = vmatprep.subr.mxu0 0.0
      %1828 = vmatpush1.msra.mxu0 0.0
      %1829 = vmatprep.subr.mxu0 0.0
      %1830 = vmatpush1.msra.mxu0 0.0
      %1831 = vmatprep.subr.mxu0 0.0
      %1832 = vmatpush1.msra.mxu0 0.0
      %1833 = vmatprep.subr.mxu0 0.0
      %1834 = vmatpush1.msra.mxu0 0.0
      %1835 = vmatprep.subr.mxu0 0.0
      %1836 = vmatpush1.msra.mxu0 0.0
      %1837 = vmatprep.subr.mxu0 0.0
      %1838 = vmatpush1.msra.mxu0 0.0
      %1839 = vmatprep.subr.mxu0 0.0
      %1840 = vmatpush1.msra.mxu0 0.0
      %1841 = vmatprep.subr.mxu0 0.0
      %1842 = vmatpush1.msra.mxu0 0.0
      %1843 = vmatprep.subr.mxu0 0.0
      %1844 = vmatpush1.msra.mxu0 0.0
      %1845 = vmatprep.subr.mxu0 0.0
      %1846 = vmatpush1.msra.mxu0 0.0
      %1847 = vmatprep.subr.mxu0 0.0
      %1848 = vmatpush1.msra.mxu0 0.0
      %1849 = vmatprep.subr.mxu0 0.0
      %1850 = vmatpush1.msra.mxu0 0.0
      %1851 = vmatprep.subr.mxu0 0.0
      %1852 = vmatpush1.msra.mxu0 0.0
      %1853 = vmatprep.subr.mxu0 0.0
      %1854 = vmatpush1.msra.mxu0 0.0
      %1855 = vmatprep.subr.mxu0 0.0
      %1856 = vmatpush1.msra.mxu0 0.0
      %1857 = vmatprep.subr.mxu0 0.0
      %1858 = vmatpush1.msra.mxu0 0.0
      %1859 = vmatprep.subr.mxu0 0.0
      %1860 = vmatpush1.msra.mxu0 0.0
      %1861 = vmatprep.subr.mxu0 0.0
      %1862 = vmatpush1.msra.mxu0 0.0
      %1863 = vmatprep.mubr.f32.mxu0 0.0
      %1864 = vmatmul.mubr.f32.gmra.mrb[0].mxu0 %v1158
      %v1865 = vpop.f32.mrb[0].mxu0
      %v1866 = vadd.f32 %v1154, %v1865
      %v1867 = vpop.f32.mrb[0].mxu0
      %v1868 = vadd.f32 %v1154, %v1867
      %1869 = vdwg.mxu0
      %1870 = vmatprep.subr.mxu0 %v354
      %1871 = vmatpush1.msra.mxu0 %v353
      %1872 = vmatprep.subr.mxu0 %v451
      %1873 = vmatpush1.msra.mxu0 %v450
      %1874 = vmatprep.subr.mxu0 %v547
      %1875 = vmatpush1.msra.mxu0 %v546
      %1876 = vmatprep.subr.mxu0 %v643
      %1877 = vmatpush1.msra.mxu0 %v642
      %1878 = vmatprep.subr.mxu0 %v739
      %1879 = vmatpush1.msra.mxu0 %v738
      %1880 = vmatprep.subr.mxu0 %v835
      %1881 = vmatpush1.msra.mxu0 %v834
      %1882 = vmatprep.subr.mxu0 %v931
      %1883 = vmatpush1.msra.mxu0 %v930
      %1884 = vmatprep.subr.mxu0 %v1027
      %1885 = vmatpush1.msra.mxu0 %v1026
      %1886 = vmatprep.subr.mxu0 %v1123
      %1887 = vmatpush1.msra.mxu0 %v1122
      %1888 = vmatprep.subr.mxu0 0.0
      %1889 = vmatpush1.msra.mxu0 0.0
      %1890 = vmatprep.subr.mxu0 0.0
      %1891 = vmatpush1.msra.mxu0 0.0
      %1892 = vmatprep.subr.mxu0 0.0
      %1893 = vmatpush1.msra.mxu0 0.0
      %1894 = vmatprep.subr.mxu0 0.0
      %1895 = vmatpush1.msra.mxu0 0.0
      %1896 = vmatprep.subr.mxu0 0.0
      %1897 = vmatpush1.msra.mxu0 0.0
      %1898 = vmatprep.subr.mxu0 0.0
      %1899 = vmatpush1.msra.mxu0 0.0
      %1900 = vmatprep.subr.mxu0 0.0
      %1901 = vmatpush1.msra.mxu0 0.0
      %1902 = vmatprep.subr.mxu0 0.0
      %1903 = vmatpush1.msra.mxu0 0.0
      %1904 = vmatprep.subr.mxu0 0.0
      %1905 = vmatpush1.msra.mxu0 0.0
      %1906 = vmatprep.subr.mxu0 0.0
      %1907 = vmatpush1.msra.mxu0 0.0
      %1908 = vmatprep.subr.mxu0 0.0
      %1909 = vmatpush1.msra.mxu0 0.0
      %1910 = vmatprep.subr.mxu0 0.0
      %1911 = vmatpush1.msra.mxu0 0.0
      %1912 = vmatprep.subr.mxu0 0.0
      %1913 = vmatpush1.msra.mxu0 0.0
      %1914 = vmatprep.subr.mxu0 0.0
      %1915 = vmatpush1.msra.mxu0 0.0
      %1916 = vmatprep.subr.mxu0 0.0
      %1917 = vmatpush1.msra.mxu0 0.0
      %1918 = vmatprep.subr.mxu0 0.0
      %1919 = vmatpush1.msra.mxu0 0.0
      %1920 = vmatprep.subr.mxu0 0.0
      %1921 = vmatpush1.msra.mxu0 0.0
      %1922 = vmatprep.subr.mxu0 0.0
      %1923 = vmatpush1.msra.mxu0 0.0
      %1924 = vmatprep.subr.mxu0 0.0
      %1925 = vmatpush1.msra.mxu0 0.0
      %1926 = vmatprep.subr.mxu0 0.0
      %1927 = vmatpush1.msra.mxu0 0.0
      %1928 = vmatprep.subr.mxu0 0.0
      %1929 = vmatpush1.msra.mxu0 0.0
      %1930 = vmatprep.subr.mxu0 0.0
      %1931 = vmatpush1.msra.mxu0 0.0
      %1932 = vmatprep.subr.mxu0 0.0
      %1933 = vmatpush1.msra.mxu0 0.0
      %1934 = vmatprep.mubr.f32.mxu0 0.0
      %1935 = vmatmul.mubr.f32.gmra.mrb[0].mxu0 %v1158
      %v1936 = vpop.f32.mrb[0].mxu0
      %v1937 = vadd.f32 %v1154, %v1936
      %v1938 = vpop.f32.mrb[0].mxu0
      %v1939 = vadd.f32 %v1154, %v1938
      %1940 = vdwg.mxu0
      %1941 = vmatprep.subr.mxu0 %v356
      %1942 = vmatpush1.msra.mxu0 %v355
      %1943 = vmatprep.subr.mxu0 %v428
      %1944 = vmatpush1.msra.mxu0 %v452
      %1945 = vmatprep.subr.mxu0 %v524
      %1946 = vmatpush1.msra.mxu0 %v548
      %1947 = vmatprep.subr.mxu0 %v620
      %1948 = vmatpush1.msra.mxu0 %v644
      %1949 = vmatprep.subr.mxu0 %v716
      %1950 = vmatpush1.msra.mxu0 %v740
      %1951 = vmatprep.subr.mxu0 %v812
      %1952 = vmatpush1.msra.mxu0 %v836
      %1953 = vmatprep.subr.mxu0 %v908
      %1954 = vmatpush1.msra.mxu0 %v932
      %1955 = vmatprep.subr.mxu0 %v1004
      %1956 = vmatpush1.msra.mxu0 %v1028
      %1957 = vmatprep.subr.mxu0 %v1100
      %1958 = vmatpush1.msra.mxu0 %v1124
      %1959 = vmatprep.subr.mxu0 0.0
      %1960 = vmatpush1.msra.mxu0 0.0
      %1961 = vmatprep.subr.mxu0 0.0
      %1962 = vmatpush1.msra.mxu0 0.0
      %1963 = vmatprep.subr.mxu0 0.0
      %1964 = vmatpush1.msra.mxu0 0.0
      %1965 = vmatprep.subr.mxu0 0.0
      %1966 = vmatpush1.msra.mxu0 0.0
      %1967 = vmatprep.subr.mxu0 0.0
      %1968 = vmatpush1.msra.mxu0 0.0
      %1969 = vmatprep.subr.mxu0 0.0
      %1970 = vmatpush1.msra.mxu0 0.0
      %1971 = vmatprep.subr.mxu0 0.0
      %1972 = vmatpush1.msra.mxu0 0.0
      %1973 = vmatprep.subr.mxu0 0.0
      %1974 = vmatpush1.msra.mxu0 0.0
      %1975 = vmatprep.subr.mxu0 0.0
      %1976 = vmatpush1.msra.mxu0 0.0
      %1977 = vmatprep.subr.mxu0 0.0
      %1978 = vmatpush1.msra.mxu0 0.0
      %1979 = vmatprep.subr.mxu0 0.0
      %1980 = vmatpush1.msra.mxu0 0.0
      %1981 = vmatprep.subr.mxu0 0.0
      %1982 = vmatpush1.msra.mxu0 0.0
      %1983 = vmatprep.subr.mxu0 0.0
      %1984 = vmatpush1.msra.mxu0 0.0
      %1985 = vmatprep.subr.mxu0 0.0
      %1986 = vmatpush1.msra.mxu0 0.0
      %1987 = vmatprep.subr.mxu0 0.0
      %1988 = vmatpush1.msra.mxu0 0.0
      %1989 = vmatprep.subr.mxu0 0.0
      %1990 = vmatpush1.msra.mxu0 0.0
      %1991 = vmatprep.subr.mxu0 0.0
      %1992 = vmatpush1.msra.mxu0 0.0
      %1993 = vmatprep.subr.mxu0 0.0
      %1994 = vmatpush1.msra.mxu0 0.0
      %1995 = vmatprep.subr.mxu0 0.0
      %1996 = vmatpush1.msra.mxu0 0.0
      %1997 = vmatprep.subr.mxu0 0.0
      %1998 = vmatpush1.msra.mxu0 0.0
      %1999 = vmatprep.subr.mxu0 0.0
      %2000 = vmatpush1.msra.mxu0 0.0
      %2001 = vmatprep.subr.mxu0 0.0
      %2002 = vmatpush1.msra.mxu0 0.0
      %2003 = vmatprep.subr.mxu0 0.0
      %2004 = vmatpush1.msra.mxu0 0.0
      %2005 = vmatprep.mubr.f32.mxu0 0.0
      %2006 = vmatmul.mubr.f32.gmra.mrb[0].mxu0 %v1158
      %v2007 = vpop.f32.mrb[0].mxu0
      %v2008 = vadd.f32 %v1154, %v2007
      %v2009 = vpop.f32.mrb[0].mxu0
      %v2010 = vadd.f32 %v1154, %v2009
      %2011 = vdwg.mxu0
      %v2012 = vmax.f32 %v1227, 0.0
      %v2013 = vmax.f32 %v1229, 0.0
      %v2014 = vmax.f32 %v1298, 0.0
      %v2015 = vmax.f32 %v1300, 0.0
      %v2016 = vmax.f32 %v1369, 0.0
      %v2017 = vmax.f32 %v1371, 0.0
      %v2018 = vmax.f32 %v1440, 0.0
      %v2019 = vmax.f32 %v1442, 0.0
      %v2020 = vmax.f32 %v1511, 0.0
      %v2021 = vmax.f32 %v1513, 0.0
      %v2022 = vmax.f32 %v1582, 0.0
      %v2023 = vmax.f32 %v1584, 0.0
      %v2024 = vmax.f32 %v1653, 0.0
      %v2025 = vmax.f32 %v1655, 0.0
      %v2026 = vmax.f32 %v1724, 0.0
      %v2027 = vmax.f32 %v1726, 0.0
      %v2028 = vmax.f32 %v1795, 0.0
      %v2029 = vmax.f32 %v1797, 0.0
      %v2030 = vmax.f32 %v1866, 0.0
      %v2031 = vmax.f32 %v1868, 0.0
      %v2032 = vmax.f32 %v1937, 0.0
      %v2033 = vmax.f32 %v1939, 0.0
      %v2034 = vmax.f32 %v2008, 0.0
      %v2035 = vmax.f32 %v2010, 0.0
      %2060 = vrot.lane.b32.xlu0 %v2012, 127
      %v2061 = vpop.permute.xlu0 %2060
      %2062 = vrot.lane.b32.xlu0 %v2013, 127
      %v2063 = vpop.permute.xlu0 %2062
      %2064 = vrot.lane.b32.xlu0 %v2014, 127
      %v2065 = vpop.permute.xlu0 %2064
      %2066 = vrot.lane.b32.xlu0 %v2015, 127
      %v2067 = vpop.permute.xlu0 %2066
      %2068 = vrot.lane.b32.xlu0 %v2016, 127
      %v2069 = vpop.permute.xlu0 %2068
      %2070 = vrot.lane.b32.xlu0 %v2017, 127
      %v2071 = vpop.permute.xlu0 %2070
      %2072 = vrot.lane.b32.xlu0 %v2018, 127
      %v2073 = vpop.permute.xlu0 %2072
      %2074 = vrot.lane.b32.xlu0 %v2019, 127
      %v2075 = vpop.permute.xlu0 %2074
      %2076 = vrot.lane.b32.xlu0 %v2020, 127
      %v2077 = vpop.permute.xlu0 %2076
      %2078 = vrot.lane.b32.xlu0 %v2021, 127
      %v2079 = vpop.permute.xlu0 %2078
      %2080 = vrot.lane.b32.xlu0 %v2022, 127
      %v2081 = vpop.permute.xlu0 %2080
      %2082 = vrot.lane.b32.xlu0 %v2023, 127
      %v2083 = vpop.permute.xlu0 %2082
      %2084 = vrot.lane.b32.xlu0 %v2024, 127
      %v2085 = vpop.permute.xlu0 %2084
      %2086 = vrot.lane.b32.xlu0 %v2025, 127
      %v2087 = vpop.permute.xlu0 %2086
      %2088 = vrot.lane.b32.xlu0 %v2026, 127
      %v2089 = vpop.permute.xlu0 %2088
      %2090 = vrot.lane.b32.xlu0 %v2027, 127
      %v2091 = vpop.permute.xlu0 %2090
      %2092 = vrot.lane.b32.xlu0 %v2028, 127
      %v2093 = vpop.permute.xlu0 %2092
      %2094 = vrot.lane.b32.xlu0 %v2029, 127
      %v2095 = vpop.permute.xlu0 %2094
      %2096 = vrot.lane.b32.xlu0 %v2030, 127
      %v2097 = vpop.permute.xlu0 %2096
      %2098 = vrot.lane.b32.xlu0 %v2031, 127
      %v2099 = vpop.permute.xlu0 %2098
      %2100 = vrot.lane.b32.xlu0 %v2032, 127
      %v2101 = vpop.permute.xlu0 %2100
      %2102 = vrot.lane.b32.xlu0 %v2033, 127
      %v2103 = vpop.permute.xlu0 %2102
      %2104 = vrot.lane.b32.xlu0 %v2034, 127
      %v2105 = vpop.permute.xlu0 %2104
      %2106 = vrot.lane.b32.xlu0 %v2035, 127
      %v2107 = vpop.permute.xlu0 %2106
      %v2108 = vsel %vm429, %v2061, %v2063
      %v2109 = vsel %vm429, %v2063, %v2065
      %v2110 = vsel %vm429, %v2065, %v2067
      %v2111 = vsel %vm429, %v2067, %v2069
      %v2112 = vsel %vm429, %v2069, %v2071
      %v2113 = vsel %vm429, %v2071, %v2073
      %v2114 = vsel %vm429, %v2073, %v2075
      %v2115 = vsel %vm429, %v2075, %v2077
      %v2116 = vsel %vm429, %v2077, %v2079
      %v2117 = vsel %vm429, %v2079, %v2081
      %v2118 = vsel %vm429, %v2081, %v2083
      %v2119 = vsel %vm429, %v2083, %v2085
      %v2120 = vsel %vm429, %v2085, %v2087
      %v2121 = vsel %vm429, %v2087, %v2089
      %v2122 = vsel %vm429, %v2089, %v2091
      %v2123 = vsel %vm429, %v2091, %v2093
      %v2124 = vsel %vm429, %v2093, %v2095
      %v2125 = vsel %vm429, %v2095, %v2097
      %v2126 = vsel %vm429, %v2097, %v2099
      %v2127 = vsel %vm429, %v2099, %v2101
      %v2128 = vsel %vm429, %v2101, %v2103
      %v2129 = vsel %vm429, %v2103, %v2105
      %v2130 = vsel %vm429, %v2105, %v2107
      %v2155 = vmax.f32 %v2012, %v2108
      %v2156 = vmax.f32 %v2013, %v2109
      %v2157 = vmax.f32 %v2014, %v2110
      %v2158 = vmax.f32 %v2015, %v2111
      %v2159 = vmax.f32 %v2016, %v2112
      %v2160 = vmax.f32 %v2017, %v2113
      %v2161 = vmax.f32 %v2018, %v2114
      %v2162 = vmax.f32 %v2019, %v2115
      %v2163 = vmax.f32 %v2020, %v2116
      %v2164 = vmax.f32 %v2021, %v2117
      %v2165 = vmax.f32 %v2022, %v2118
      %v2166 = vmax.f32 %v2023, %v2119
      %v2167 = vmax.f32 %v2024, %v2120
      %v2168 = vmax.f32 %v2025, %v2121
      %v2169 = vmax.f32 %v2026, %v2122
      %v2170 = vmax.f32 %v2027, %v2123
      %v2171 = vmax.f32 %v2028, %v2124
      %v2172 = vmax.f32 %v2029, %v2125
      %v2173 = vmax.f32 %v2030, %v2126
      %v2174 = vmax.f32 %v2031, %v2127
      %v2175 = vmax.f32 %v2032, %v2128
      %v2176 = vmax.f32 %v2033, %v2129
      %v2177 = vmax.f32 %v2034, %v2130
      %v2178 = vmax.f32 %v2035, %v2107
      %2203 = vrot.lane.b32.xlu0 %v2155, 110
      %v2204 = vpop.permute.xlu0 %2203
      %2205 = vrot.lane.b32.xlu0 %v2156, 110
      %v2206 = vpop.permute.xlu0 %2205
      %2207 = vrot.lane.b32.xlu0 %v2157, 110
      %v2208 = vpop.permute.xlu0 %2207
      %2209 = vrot.lane.b32.xlu0 %v2158, 110
      %v2210 = vpop.permute.xlu0 %2209
      %2211 = vrot.lane.b32.xlu0 %v2159, 110
      %v2212 = vpop.permute.xlu0 %2211
      %2213 = vrot.lane.b32.xlu0 %v2160, 110
      %v2214 = vpop.permute.xlu0 %2213
      %2215 = vrot.lane.b32.xlu0 %v2161, 110
      %v2216 = vpop.permute.xlu0 %2215
      %2217 = vrot.lane.b32.xlu0 %v2162, 110
      %v2218 = vpop.permute.xlu0 %2217
      %2219 = vrot.lane.b32.xlu0 %v2163, 110
      %v2220 = vpop.permute.xlu0 %2219
      %2221 = vrot.lane.b32.xlu0 %v2164, 110
      %v2222 = vpop.permute.xlu0 %2221
      %2223 = vrot.lane.b32.xlu0 %v2165, 110
      %v2224 = vpop.permute.xlu0 %2223
      %2225 = vrot.lane.b32.xlu0 %v2166, 110
      %v2226 = vpop.permute.xlu0 %2225
      %2227 = vrot.lane.b32.xlu0 %v2167, 110
      %v2228 = vpop.permute.xlu0 %2227
      %2229 = vrot.lane.b32.xlu0 %v2168, 110
      %v2230 = vpop.permute.xlu0 %2229
      %2231 = vrot.lane.b32.xlu0 %v2169, 110
      %v2232 = vpop.permute.xlu0 %2231
      %2233 = vrot.lane.b32.xlu0 %v2170, 110
      %v2234 = vpop.permute.xlu0 %2233
      %2235 = vrot.lane.b32.xlu0 %v2171, 110
      %v2236 = vpop.permute.xlu0 %2235
      %2237 = vrot.lane.b32.xlu0 %v2172, 110
      %v2238 = vpop.permute.xlu0 %2237
      %2239 = vrot.lane.b32.xlu0 %v2173, 110
      %v2240 = vpop.permute.xlu0 %2239
      %2241 = vrot.lane.b32.xlu0 %v2174, 110
      %v2242 = vpop.permute.xlu0 %2241
      %2243 = vrot.lane.b32.xlu0 %v2175, 110
      %v2244 = vpop.permute.xlu0 %2243
      %2245 = vrot.lane.b32.xlu0 %v2176, 110
      %v2246 = vpop.permute.xlu0 %2245
      %2247 = vrot.lane.b32.xlu0 %v2177, 110
      %v2248 = vpop.permute.xlu0 %2247
      %2249 = vrot.lane.b32.xlu0 %v2178, 110
      %v2250 = vpop.permute.xlu0 %2249
      %v2251 = vsel %vm621, %v2204, %v2206
      %v2252 = vsel %vm621, %v2206, %v2208
      %v2253 = vsel %vm621, %v2208, %v2210
      %v2254 = vsel %vm621, %v2210, %v2212
      %v2255 = vsel %vm621, %v2212, %v2214
      %v2256 = vsel %vm621, %v2214, %v2216
      %v2257 = vsel %vm621, %v2216, %v2218
      %v2258 = vsel %vm621, %v2218, %v2220
      %v2259 = vsel %vm621, %v2220, %v2222
      %v2260 = vsel %vm621, %v2222, %v2224
      %v2261 = vsel %vm621, %v2224, %v2226
      %v2262 = vsel %vm621, %v2226, %v2228
      %v2263 = vsel %vm621, %v2228, %v2230
      %v2264 = vsel %vm621, %v2230, %v2232
      %v2265 = vsel %vm621, %v2232, %v2234
      %v2266 = vsel %vm621, %v2234, %v2236
      %v2267 = vsel %vm621, %v2236, %v2238
      %v2268 = vsel %vm621, %v2238, %v2240
      %v2269 = vsel %vm621, %v2240, %v2242
      %v2270 = vsel %vm621, %v2242, %v2244
      %v2271 = vsel %vm621, %v2244, %v2246
      %v2272 = vsel %vm621, %v2246, %v2248
      %v2273 = vsel %vm621, %v2248, %v2250
      %v2298 = vmax.f32 %v2155, %v2251
      %v2299 = vmax.f32 %v2156, %v2252
      %v2300 = vmax.f32 %v2157, %v2253
      %v2301 = vmax.f32 %v2158, %v2254
      %v2302 = vmax.f32 %v2159, %v2255
      %v2303 = vmax.f32 %v2160, %v2256
      %v2304 = vmax.f32 %v2161, %v2257
      %v2305 = vmax.f32 %v2162, %v2258
      %v2306 = vmax.f32 %v2163, %v2259
      %v2307 = vmax.f32 %v2164, %v2260
      %v2308 = vmax.f32 %v2165, %v2261
      %v2309 = vmax.f32 %v2166, %v2262
      %v2310 = vmax.f32 %v2167, %v2263
      %v2311 = vmax.f32 %v2168, %v2264
      %v2312 = vmax.f32 %v2169, %v2265
      %v2313 = vmax.f32 %v2170, %v2266
      %v2314 = vmax.f32 %v2171, %v2267
      %v2315 = vmax.f32 %v2172, %v2268
      %v2316 = vmax.f32 %v2173, %v2269
      %v2317 = vmax.f32 %v2174, %v2270
      %v2318 = vmax.f32 %v2175, %v2271
      %v2319 = vmax.f32 %v2176, %v2272
      %v2320 = vmax.f32 %v2177, %v2273
      %v2321 = vmax.f32 %v2178, %v2250
      %v2322 = vld [vmem:[%s5] sm:$0xff]
      %v2323 = vld [vmem:[%s5 + $0x8] sm:$0xff]
      %v2324 = vld [vmem:[%s5 + $0x10] sm:$0xff]
      %v2325 = vld [vmem:[%s5 + $0x18] sm:$0xff]
      %v2326 = vld [vmem:[%s5 + $0x20] sm:$0xff]
      %v2327 = vld [vmem:[%s5 + $0x28] sm:$0xff]
      %v2328 = vld [vmem:[%s5 + $0x30] sm:$0xff]
      %v2329 = vld [vmem:[%s5 + $0x38] sm:$0xff]
      %v2330 = vld [vmem:[%s5 + $0x40] sm:$0xff]
      %v2331 = vld [vmem:[%s5 + $0x48] sm:$0xff]
      %v2332 = vld [vmem:[%s5 + $0x50] sm:$0xff]
      %v2333 = vld [vmem:[%s5 + $0x58] sm:$0xff]
      %v2334 = vld [vmem:[%s5 + $0x60] sm:$0xff]
      %v2335 = vld [vmem:[%s5 + $0x68] sm:$0xff]
      %v2336 = vld [vmem:[%s5 + $0x70] sm:$0xff]
      %v2337 = vld [vmem:[%s5 + $0x78] sm:$0xff]
      %v2338 = vld [vmem:[%s5 + $0x80] sm:$0xff]
      %v2339 = vld [vmem:[%s5 + $0x88] sm:$0xff]
      %v2340 = vld [vmem:[%s5 + $0x90] sm:$0xff]
      %v2341 = vld [vmem:[%s5 + $0x98] sm:$0xff]
      %v2342 = vld [vmem:[%s5 + $0xa0] sm:$0xff]
      %v2343 = vld [vmem:[%s5 + $0xa8] sm:$0xff]
      %v2344 = vld [vmem:[%s5 + $0xb0] sm:$0xff]
      %v2345 = vld [vmem:[%s5 + $0xb8] sm:$0xff]
      %v2346 = vmul.f32 %v2298, %v2322
      %v2347 = vmul.f32 %v2299, %v2323
      %v2348 = vmul.f32 %v2300, %v2324
      %v2349 = vmul.f32 %v2301, %v2325
      %v2350 = vmul.f32 %v2302, %v2326
      %v2351 = vmul.f32 %v2303, %v2327
      %v2352 = vmul.f32 %v2304, %v2328
      %v2353 = vmul.f32 %v2305, %v2329
      %v2354 = vmul.f32 %v2306, %v2330
      %v2355 = vmul.f32 %v2307, %v2331
      %v2356 = vmul.f32 %v2308, %v2332
      %v2357 = vmul.f32 %v2309, %v2333
      %v2358 = vmul.f32 %v2310, %v2334
      %v2359 = vmul.f32 %v2311, %v2335
      %v2360 = vmul.f32 %v2312, %v2336
      %v2361 = vmul.f32 %v2313, %v2337
      %v2362 = vmul.f32 %v2314, %v2338
      %v2363 = vmul.f32 %v2315, %v2339
      %v2364 = vmul.f32 %v2316, %v2340
      %v2365 = vmul.f32 %v2317, %v2341
      %v2366 = vmul.f32 %v2318, %v2342
      %v2367 = vmul.f32 %v2319, %v2343
      %v2368 = vmul.f32 %v2320, %v2344
      %v2369 = vmul.f32 %v2321, %v2345
      %2393 = vrot.lane.b32.xlu0 %v2346, 126
      %v2394 = vpop.permute.xlu0 %2393
      %2395 = vrot.lane.b32.xlu0 %v2347, 126
      %v2396 = vpop.permute.xlu0 %2395
      %2397 = vrot.lane.b32.xlu0 %v2348, 126
      %v2398 = vpop.permute.xlu0 %2397
      %2399 = vrot.lane.b32.xlu0 %v2349, 126
      %v2400 = vpop.permute.xlu0 %2399
      %2401 = vrot.lane.b32.xlu0 %v2350, 126
      %v2402 = vpop.permute.xlu0 %2401
      %2403 = vrot.lane.b32.xlu0 %v2351, 126
      %v2404 = vpop.permute.xlu0 %2403
      %2405 = vrot.lane.b32.xlu0 %v2352, 126
      %v2406 = vpop.permute.xlu0 %2405
      %2407 = vrot.lane.b32.xlu0 %v2353, 126
      %v2408 = vpop.permute.xlu0 %2407
      %2409 = vrot.lane.b32.xlu0 %v2354, 126
      %v2410 = vpop.permute.xlu0 %2409
      %2411 = vrot.lane.b32.xlu0 %v2355, 126
      %v2412 = vpop.permute.xlu0 %2411
      %2413 = vrot.lane.b32.xlu0 %v2356, 126
      %v2414 = vpop.permute.xlu0 %2413
      %2415 = vrot.lane.b32.xlu0 %v2357, 126
      %v2416 = vpop.permute.xlu0 %2415
      %2417 = vrot.lane.b32.xlu0 %v2358, 126
      %v2418 = vpop.permute.xlu0 %2417
      %2419 = vrot.lane.b32.xlu0 %v2359, 126
      %v2420 = vpop.permute.xlu0 %2419
      %2421 = vrot.lane.b32.xlu0 %v2360, 126
      %v2422 = vpop.permute.xlu0 %2421
      %2423 = vrot.lane.b32.xlu0 %v2361, 126
      %v2424 = vpop.permute.xlu0 %2423
      %2425 = vrot.lane.b32.xlu0 %v2362, 126
      %v2426 = vpop.permute.xlu0 %2425
      %2427 = vrot.lane.b32.xlu0 %v2363, 126
      %v2428 = vpop.permute.xlu0 %2427
      %2429 = vrot.lane.b32.xlu0 %v2364, 126
      %v2430 = vpop.permute.xlu0 %2429
      %2431 = vrot.lane.b32.xlu0 %v2365, 126
      %v2432 = vpop.permute.xlu0 %2431
      %2433 = vrot.lane.b32.xlu0 %v2366, 126
      %v2434 = vpop.permute.xlu0 %2433
      %2435 = vrot.lane.b32.xlu0 %v2367, 126
      %v2436 = vpop.permute.xlu0 %2435
      %2437 = vrot.lane.b32.xlu0 %v2368, 126
      %v2438 = vpop.permute.xlu0 %2437
      %v2439 = vsel %vm525, %v2394, %v2396
      %v2440 = vsel %vm525, %v2396, %v2398
      %v2441 = vsel %vm525, %v2398, %v2400
      %v2442 = vsel %vm525, %v2400, %v2402
      %v2443 = vsel %vm525, %v2402, %v2404
      %v2444 = vsel %vm525, %v2404, %v2406
      %v2445 = vsel %vm525, %v2406, %v2408
      %v2446 = vsel %vm525, %v2408, %v2410
      %v2447 = vsel %vm525, %v2410, %v2412
      %v2448 = vsel %vm525, %v2412, %v2414
      %v2449 = vsel %vm525, %v2414, %v2416
      %v2450 = vsel %vm525, %v2416, %v2418
      %v2451 = vsel %vm525, %v2418, %v2420
      %v2452 = vsel %vm525, %v2420, %v2422
      %v2453 = vsel %vm525, %v2422, %v2424
      %v2454 = vsel %vm525, %v2424, %v2426
      %v2455 = vsel %vm525, %v2426, %v2428
      %v2456 = vsel %vm525, %v2428, %v2430
      %v2457 = vsel %vm525, %v2430, %v2432
      %v2458 = vsel %vm525, %v2432, %v2434
      %v2459 = vsel %vm525, %v2434, %v2436
      %v2460 = vsel %vm525, %v2436, %v2438
      %2484 = vrot.lane.b32.xlu0 %v2346, 124
      %v2485 = vpop.permute.xlu0 %2484
      %2486 = vrot.lane.b32.xlu0 %v2347, 124
      %v2487 = vpop.permute.xlu0 %2486
      %2488 = vrot.lane.b32.xlu0 %v2348, 124
      %v2489 = vpop.permute.xlu0 %2488
      %2490 = vrot.lane.b32.xlu0 %v2349, 124
      %v2491 = vpop.permute.xlu0 %2490
      %2492 = vrot.lane.b32.xlu0 %v2350, 124
      %v2493 = vpop.permute.xlu0 %2492
      %2494 = vrot.lane.b32.xlu0 %v2351, 124
      %v2495 = vpop.permute.xlu0 %2494
      %2496 = vrot.lane.b32.xlu0 %v2352, 124
      %v2497 = vpop.permute.xlu0 %2496
      %2498 = vrot.lane.b32.xlu0 %v2353, 124
      %v2499 = vpop.permute.xlu0 %2498
      %2500 = vrot.lane.b32.xlu0 %v2354, 124
      %v2501 = vpop.permute.xlu0 %2500
      %2502 = vrot.lane.b32.xlu0 %v2355, 124
      %v2503 = vpop.permute.xlu0 %2502
      %2504 = vrot.lane.b32.xlu0 %v2356, 124
      %v2505 = vpop.permute.xlu0 %2504
      %2506 = vrot.lane.b32.xlu0 %v2357, 124
      %v2507 = vpop.permute.xlu0 %2506
      %2508 = vrot.lane.b32.xlu0 %v2358, 124
      %v2509 = vpop.permute.xlu0 %2508
      %2510 = vrot.lane.b32.xlu0 %v2359, 124
      %v2511 = vpop.permute.xlu0 %2510
      %2512 = vrot.lane.b32.xlu0 %v2360, 124
      %v2513 = vpop.permute.xlu0 %2512
      %2514 = vrot.lane.b32.xlu0 %v2361, 124
      %v2515 = vpop.permute.xlu0 %2514
      %2516 = vrot.lane.b32.xlu0 %v2362, 124
      %v2517 = vpop.permute.xlu0 %2516
      %2518 = vrot.lane.b32.xlu0 %v2363, 124
      %v2519 = vpop.permute.xlu0 %2518
      %2520 = vrot.lane.b32.xlu0 %v2364, 124
      %v2521 = vpop.permute.xlu0 %2520
      %2522 = vrot.lane.b32.xlu0 %v2365, 124
      %v2523 = vpop.permute.xlu0 %2522
      %2524 = vrot.lane.b32.xlu0 %v2366, 124
      %v2525 = vpop.permute.xlu0 %2524
      %2526 = vrot.lane.b32.xlu0 %v2367, 124
      %v2527 = vpop.permute.xlu0 %2526
      %2528 = vrot.lane.b32.xlu0 %v2368, 124
      %v2529 = vpop.permute.xlu0 %2528
      %vm2530 = vcmask 1014784
      %v2531 = vsel %vm2530, %v2485, %v2487
      %v2532 = vsel %vm2530, %v2487, %v2489
      %v2533 = vsel %vm2530, %v2489, %v2491
      %v2534 = vsel %vm2530, %v2491, %v2493
      %v2535 = vsel %vm2530, %v2493, %v2495
      %v2536 = vsel %vm2530, %v2495, %v2497
      %v2537 = vsel %vm2530, %v2497, %v2499
      %v2538 = vsel %vm2530, %v2499, %v2501
      %v2539 = vsel %vm2530, %v2501, %v2503
      %v2540 = vsel %vm2530, %v2503, %v2505
      %v2541 = vsel %vm2530, %v2505, %v2507
      %v2542 = vsel %vm2530, %v2507, %v2509
      %v2543 = vsel %vm2530, %v2509, %v2511
      %v2544 = vsel %vm2530, %v2511, %v2513
      %v2545 = vsel %vm2530, %v2513, %v2515
      %v2546 = vsel %vm2530, %v2515, %v2517
      %v2547 = vsel %vm2530, %v2517, %v2519
      %v2548 = vsel %vm2530, %v2519, %v2521
      %v2549 = vsel %vm2530, %v2521, %v2523
      %v2550 = vsel %vm2530, %v2523, %v2525
      %v2551 = vsel %vm2530, %v2525, %v2527
      %v2552 = vsel %vm2530, %v2527, %v2529
      %2577 = vrot.lane.b32.xlu0 %v2346, 92
      %v2578 = vpop.permute.xlu0 %2577
      %2579 = vrot.lane.b32.xlu0 %v2347, 92
      %v2580 = vpop.permute.xlu0 %2579
      %2581 = vrot.lane.b32.xlu0 %v2348, 92
      %v2582 = vpop.permute.xlu0 %2581
      %2583 = vrot.lane.b32.xlu0 %v2349, 92
      %v2584 = vpop.permute.xlu0 %2583
      %2585 = vrot.lane.b32.xlu0 %v2350, 92
      %v2586 = vpop.permute.xlu0 %2585
      %2587 = vrot.lane.b32.xlu0 %v2351, 92
      %v2588 = vpop.permute.xlu0 %2587
      %2589 = vrot.lane.b32.xlu0 %v2352, 92
      %v2590 = vpop.permute.xlu0 %2589
      %2591 = vrot.lane.b32.xlu0 %v2353, 92
      %v2592 = vpop.permute.xlu0 %2591
      %2593 = vrot.lane.b32.xlu0 %v2354, 92
      %v2594 = vpop.permute.xlu0 %2593
      %2595 = vrot.lane.b32.xlu0 %v2355, 92
      %v2596 = vpop.permute.xlu0 %2595
      %2597 = vrot.lane.b32.xlu0 %v2356, 92
      %v2598 = vpop.permute.xlu0 %2597
      %2599 = vrot.lane.b32.xlu0 %v2357, 92
      %v2600 = vpop.permute.xlu0 %2599
      %2601 = vrot.lane.b32.xlu0 %v2358, 92
      %v2602 = vpop.permute.xlu0 %2601
      %2603 = vrot.lane.b32.xlu0 %v2359, 92
      %v2604 = vpop.permute.xlu0 %2603
      %2605 = vrot.lane.b32.xlu0 %v2360, 92
      %v2606 = vpop.permute.xlu0 %2605
      %2607 = vrot.lane.b32.xlu0 %v2361, 92
      %v2608 = vpop.permute.xlu0 %2607
      %2609 = vrot.lane.b32.xlu0 %v2362, 92
      %v2610 = vpop.permute.xlu0 %2609
      %2611 = vrot.lane.b32.xlu0 %v2363, 92
      %v2612 = vpop.permute.xlu0 %2611
      %2613 = vrot.lane.b32.xlu0 %v2364, 92
      %v2614 = vpop.permute.xlu0 %2613
      %2615 = vrot.lane.b32.xlu0 %v2365, 92
      %v2616 = vpop.permute.xlu0 %2615
      %2617 = vrot.lane.b32.xlu0 %v2366, 92
      %v2618 = vpop.permute.xlu0 %2617
      %2619 = vrot.lane.b32.xlu0 %v2367, 92
      %v2620 = vpop.permute.xlu0 %2619
      %2621 = vrot.lane.b32.xlu0 %v2368, 92
      %v2622 = vpop.permute.xlu0 %2621
      %2623 = vrot.lane.b32.xlu0 %v2369, 92
      %v2624 = vpop.permute.xlu0 %2623
      %v2625 = vsel %vm909, %v2578, %v2580
      %v2626 = vsel %vm909, %v2580, %v2582
      %v2627 = vsel %vm909, %v2582, %v2584
      %v2628 = vsel %vm909, %v2584, %v2586
      %v2629 = vsel %vm909, %v2586, %v2588
      %v2630 = vsel %vm909, %v2588, %v2590
      %v2631 = vsel %vm909, %v2590, %v2592
      %v2632 = vsel %vm909, %v2592, %v2594
      %v2633 = vsel %vm909, %v2594, %v2596
      %v2634 = vsel %vm909, %v2596, %v2598
      %v2635 = vsel %vm909, %v2598, %v2600
      %v2636 = vsel %vm909, %v2600, %v2602
      %v2637 = vsel %vm909, %v2602, %v2604
      %v2638 = vsel %vm909, %v2604, %v2606
      %v2639 = vsel %vm909, %v2606, %v2608
      %v2640 = vsel %vm909, %v2608, %v2610
      %v2641 = vsel %vm909, %v2610, %v2612
      %v2642 = vsel %vm909, %v2612, %v2614
      %v2643 = vsel %vm909, %v2614, %v2616
      %v2644 = vsel %vm909, %v2616, %v2618
      %v2645 = vsel %vm909, %v2618, %v2620
      %v2646 = vsel %vm909, %v2620, %v2622
      %v2647 = vsel %vm909, %v2622, %v2624
      %2671 = vrot.lane.b32.xlu0 %v2346, 90
      %v2672 = vpop.permute.xlu0 %2671
      %2673 = vrot.lane.b32.xlu0 %v2347, 90
      %v2674 = vpop.permute.xlu0 %2673
      %2675 = vrot.lane.b32.xlu0 %v2348, 90
      %v2676 = vpop.permute.xlu0 %2675
      %2677 = vrot.lane.b32.xlu0 %v2349, 90
      %v2678 = vpop.permute.xlu0 %2677
      %2679 = vrot.lane.b32.xlu0 %v2350, 90
      %v2680 = vpop.permute.xlu0 %2679
      %2681 = vrot.lane.b32.xlu0 %v2351, 90
      %v2682 = vpop.permute.xlu0 %2681
      %2683 = vrot.lane.b32.xlu0 %v2352, 90
      %v2684 = vpop.permute.xlu0 %2683
      %2685 = vrot.lane.b32.xlu0 %v2353, 90
      %v2686 = vpop.permute.xlu0 %2685
      %2687 = vrot.lane.b32.xlu0 %v2354, 90
      %v2688 = vpop.permute.xlu0 %2687
      %2689 = vrot.lane.b32.xlu0 %v2355, 90
      %v2690 = vpop.permute.xlu0 %2689
      %2691 = vrot.lane.b32.xlu0 %v2356, 90
      %v2692 = vpop.permute.xlu0 %2691
      %2693 = vrot.lane.b32.xlu0 %v2357, 90
      %v2694 = vpop.permute.xlu0 %2693
      %2695 = vrot.lane.b32.xlu0 %v2358, 90
      %v2696 = vpop.permute.xlu0 %2695
      %2697 = vrot.lane.b32.xlu0 %v2359, 90
      %v2698 = vpop.permute.xlu0 %2697
      %2699 = vrot.lane.b32.xlu0 %v2360, 90
      %v2700 = vpop.permute.xlu0 %2699
      %2701 = vrot.lane.b32.xlu0 %v2361, 90
      %v2702 = vpop.permute.xlu0 %2701
      %2703 = vrot.lane.b32.xlu0 %v2362, 90
      %v2704 = vpop.permute.xlu0 %2703
      %2705 = vrot.lane.b32.xlu0 %v2363, 90
      %v2706 = vpop.permute.xlu0 %2705
      %2707 = vrot.lane.b32.xlu0 %v2364, 90
      %v2708 = vpop.permute.xlu0 %2707
      %2709 = vrot.lane.b32.xlu0 %v2365, 90
      %v2710 = vpop.permute.xlu0 %2709
      %2711 = vrot.lane.b32.xlu0 %v2366, 90
      %v2712 = vpop.permute.xlu0 %2711
      %2713 = vrot.lane.b32.xlu0 %v2367, 90
      %v2714 = vpop.permute.xlu0 %2713
      %2715 = vrot.lane.b32.xlu0 %v2368, 90
      %v2716 = vpop.permute.xlu0 %2715
      %2717 = vrot.lane.b32.xlu0 %v2369, 90
      %v2718 = vpop.permute.xlu0 %2717
      %v2719 = vsel %vm1101, %v2672, %v2674
      %v2720 = vsel %vm1101, %v2674, %v2676
      %v2721 = vsel %vm1101, %v2676, %v2678
      %v2722 = vsel %vm1101, %v2678, %v2680
      %v2723 = vsel %vm1101, %v2680, %v2682
      %v2724 = vsel %vm1101, %v2682, %v2684
      %v2725 = vsel %vm1101, %v2684, %v2686
      %v2726 = vsel %vm1101, %v2686, %v2688
      %v2727 = vsel %vm1101, %v2688, %v2690
      %v2728 = vsel %vm1101, %v2690, %v2692
      %v2729 = vsel %vm1101, %v2692, %v2694
      %v2730 = vsel %vm1101, %v2694, %v2696
      %v2731 = vsel %vm1101, %v2696, %v2698
      %v2732 = vsel %vm1101, %v2698, %v2700
      %v2733 = vsel %vm1101, %v2700, %v2702
      %v2734 = vsel %vm1101, %v2702, %v2704
      %v2735 = vsel %vm1101, %v2704, %v2706
      %v2736 = vsel %vm1101, %v2706, %v2708
      %v2737 = vsel %vm1101, %v2708, %v2710
      %v2738 = vsel %vm1101, %v2710, %v2712
      %v2739 = vsel %vm1101, %v2712, %v2714
      %v2740 = vsel %vm1101, %v2714, %v2716
      %v2741 = vsel %vm1101, %v2716, %v2718
      %2765 = vrot.lane.b32.xlu0 %v2346, 88
      %v2766 = vpop.permute.xlu0 %2765
      %2767 = vrot.lane.b32.xlu0 %v2347, 88
      %v2768 = vpop.permute.xlu0 %2767
      %2769 = vrot.lane.b32.xlu0 %v2348, 88
      %v2770 = vpop.permute.xlu0 %2769
      %2771 = vrot.lane.b32.xlu0 %v2349, 88
      %v2772 = vpop.permute.xlu0 %2771
      %2773 = vrot.lane.b32.xlu0 %v2350, 88
      %v2774 = vpop.permute.xlu0 %2773
      %2775 = vrot.lane.b32.xlu0 %v2351, 88
      %v2776 = vpop.permute.xlu0 %2775
      %2777 = vrot.lane.b32.xlu0 %v2352, 88
      %v2778 = vpop.permute.xlu0 %2777
      %2779 = vrot.lane.b32.xlu0 %v2353, 88
      %v2780 = vpop.permute.xlu0 %2779
      %2781 = vrot.lane.b32.xlu0 %v2354, 88
      %v2782 = vpop.permute.xlu0 %2781
      %2783 = vrot.lane.b32.xlu0 %v2355, 88
      %v2784 = vpop.permute.xlu0 %2783
      %2785 = vrot.lane.b32.xlu0 %v2356, 88
      %v2786 = vpop.permute.xlu0 %2785
      %2787 = vrot.lane.b32.xlu0 %v2357, 88
      %v2788 = vpop.permute.xlu0 %2787
      %2789 = vrot.lane.b32.xlu0 %v2358, 88
      %v2790 = vpop.permute.xlu0 %2789
      %2791 = vrot.lane.b32.xlu0 %v2359, 88
      %v2792 = vpop.permute.xlu0 %2791
      %2793 = vrot.lane.b32.xlu0 %v2360, 88
      %v2794 = vpop.permute.xlu0 %2793
      %2795 = vrot.lane.b32.xlu0 %v2361, 88
      %v2796 = vpop.permute.xlu0 %2795
      %2797 = vrot.lane.b32.xlu0 %v2362, 88
      %v2798 = vpop.permute.xlu0 %2797
      %2799 = vrot.lane.b32.xlu0 %v2363, 88
      %v2800 = vpop.permute.xlu0 %2799
      %2801 = vrot.lane.b32.xlu0 %v2364, 88
      %v2802 = vpop.permute.xlu0 %2801
      %2803 = vrot.lane.b32.xlu0 %v2365, 88
      %v2804 = vpop.permute.xlu0 %2803
      %2805 = vrot.lane.b32.xlu0 %v2366, 88
      %v2806 = vpop.permute.xlu0 %2805
      %2807 = vrot.lane.b32.xlu0 %v2367, 88
      %v2808 = vpop.permute.xlu0 %2807
      %2809 = vrot.lane.b32.xlu0 %v2368, 88
      %v2810 = vpop.permute.xlu0 %2809
      %2811 = vrot.lane.b32.xlu0 %v2369, 88
      %v2812 = vpop.permute.xlu0 %2811
      %vm2813 = vcmask 719872
      %v2814 = vsel %vm2813, %v2766, %v2768
      %v2815 = vsel %vm2813, %v2768, %v2770
      %v2816 = vsel %vm2813, %v2770, %v2772
      %v2817 = vsel %vm2813, %v2772, %v2774
      %v2818 = vsel %vm2813, %v2774, %v2776
      %v2819 = vsel %vm2813, %v2776, %v2778
      %v2820 = vsel %vm2813, %v2778, %v2780
      %v2821 = vsel %vm2813, %v2780, %v2782
      %v2822 = vsel %vm2813, %v2782, %v2784
      %v2823 = vsel %vm2813, %v2784, %v2786
      %v2824 = vsel %vm2813, %v2786, %v2788
      %v2825 = vsel %vm2813, %v2788, %v2790
      %v2826 = vsel %vm2813, %v2790, %v2792
      %v2827 = vsel %vm2813, %v2792, %v2794
      %v2828 = vsel %vm2813, %v2794, %v2796
      %v2829 = vsel %vm2813, %v2796, %v2798
      %v2830 = vsel %vm2813, %v2798, %v2800
      %v2831 = vsel %vm2813, %v2800, %v2802
      %v2832 = vsel %vm2813, %v2802, %v2804
      %v2833 = vsel %vm2813, %v2804, %v2806
      %v2834 = vsel %vm2813, %v2806, %v2808
      %v2835 = vsel %vm2813, %v2808, %v2810
      %v2836 = vsel %vm2813, %v2810, %v2812
      %2860 = vrot.lane.b32.xlu0 %v2346, 56
      %v2861 = vpop.permute.xlu0 %2860
      %2862 = vrot.lane.b32.xlu0 %v2347, 56
      %v2863 = vpop.permute.xlu0 %2862
      %2864 = vrot.lane.b32.xlu0 %v2348, 56
      %v2865 = vpop.permute.xlu0 %2864
      %2866 = vrot.lane.b32.xlu0 %v2349, 56
      %v2867 = vpop.permute.xlu0 %2866
      %2868 = vrot.lane.b32.xlu0 %v2350, 56
      %v2869 = vpop.permute.xlu0 %2868
      %2870 = vrot.lane.b32.xlu0 %v2351, 56
      %v2871 = vpop.permute.xlu0 %2870
      %2872 = vrot.lane.b32.xlu0 %v2352, 56
      %v2873 = vpop.permute.xlu0 %2872
      %2874 = vrot.lane.b32.xlu0 %v2353, 56
      %v2875 = vpop.permute.xlu0 %2874
      %2876 = vrot.lane.b32.xlu0 %v2354, 56
      %v2877 = vpop.permute.xlu0 %2876
      %2878 = vrot.lane.b32.xlu0 %v2355, 56
      %v2879 = vpop.permute.xlu0 %2878
      %2880 = vrot.lane.b32.xlu0 %v2356, 56
      %v2881 = vpop.permute.xlu0 %2880
      %2882 = vrot.lane.b32.xlu0 %v2357, 56
      %v2883 = vpop.permute.xlu0 %2882
      %2884 = vrot.lane.b32.xlu0 %v2358, 56
      %v2885 = vpop.permute.xlu0 %2884
      %2886 = vrot.lane.b32.xlu0 %v2359, 56
      %v2887 = vpop.permute.xlu0 %2886
      %2888 = vrot.lane.b32.xlu0 %v2360, 56
      %v2889 = vpop.permute.xlu0 %2888
      %2890 = vrot.lane.b32.xlu0 %v2361, 56
      %v2891 = vpop.permute.xlu0 %2890
      %2892 = vrot.lane.b32.xlu0 %v2362, 56
      %v2893 = vpop.permute.xlu0 %2892
      %2894 = vrot.lane.b32.xlu0 %v2363, 56
      %v2895 = vpop.permute.xlu0 %2894
      %2896 = vrot.lane.b32.xlu0 %v2364, 56
      %v2897 = vpop.permute.xlu0 %2896
      %2898 = vrot.lane.b32.xlu0 %v2365, 56
      %v2899 = vpop.permute.xlu0 %2898
      %2900 = vrot.lane.b32.xlu0 %v2366, 56
      %v2901 = vpop.permute.xlu0 %2900
      %2902 = vrot.lane.b32.xlu0 %v2367, 56
      %v2903 = vpop.permute.xlu0 %2902
      %2904 = vrot.lane.b32.xlu0 %v2368, 56
      %v2905 = vpop.permute.xlu0 %2904
      %2906 = vrot.lane.b32.xlu0 %v2369, 56
      %v2907 = vpop.permute.xlu0 %2906
      %vm2908 = vcmask 457728
      %v2909 = vsel %vm2908, %v2861, %v2863
      %v2910 = vsel %vm2908, %v2863, %v2865
      %v2911 = vsel %vm2908, %v2865, %v2867
      %v2912 = vsel %vm2908, %v2867, %v2869
      %v2913 = vsel %vm2908, %v2869, %v2871
      %v2914 = vsel %vm2908, %v2871, %v2873
      %v2915 = vsel %vm2908, %v2873, %v2875
      %v2916 = vsel %vm2908, %v2875, %v2877
      %v2917 = vsel %vm2908, %v2877, %v2879
      %v2918 = vsel %vm2908, %v2879, %v2881
      %v2919 = vsel %vm2908, %v2881, %v2883
      %v2920 = vsel %vm2908, %v2883, %v2885
      %v2921 = vsel %vm2908, %v2885, %v2887
      %v2922 = vsel %vm2908, %v2887, %v2889
      %v2923 = vsel %vm2908, %v2889, %v2891
      %v2924 = vsel %vm2908, %v2891, %v2893
      %v2925 = vsel %vm2908, %v2893, %v2895
      %v2926 = vsel %vm2908, %v2895, %v2897
      %v2927 = vsel %vm2908, %v2897, %v2899
      %v2928 = vsel %vm2908, %v2899, %v2901
      %v2929 = vsel %vm2908, %v2901, %v2903
      %v2930 = vsel %vm2908, %v2903, %v2905
      %v2931 = vsel %vm2908, %v2905, %v2907
      %2955 = vrot.lane.b32.xlu0 %v2346, 54
      %v2956 = vpop.permute.xlu0 %2955
      %2957 = vrot.lane.b32.xlu0 %v2347, 54
      %v2958 = vpop.permute.xlu0 %2957
      %2959 = vrot.lane.b32.xlu0 %v2348, 54
      %v2960 = vpop.permute.xlu0 %2959
      %2961 = vrot.lane.b32.xlu0 %v2349, 54
      %v2962 = vpop.permute.xlu0 %2961
      %2963 = vrot.lane.b32.xlu0 %v2350, 54
      %v2964 = vpop.permute.xlu0 %2963
      %2965 = vrot.lane.b32.xlu0 %v2351, 54
      %v2966 = vpop.permute.xlu0 %2965
      %2967 = vrot.lane.b32.xlu0 %v2352, 54
      %v2968 = vpop.permute.xlu0 %2967
      %2969 = vrot.lane.b32.xlu0 %v2353, 54
      %v2970 = vpop.permute.xlu0 %2969
      %2971 = vrot.lane.b32.xlu0 %v2354, 54
      %v2972 = vpop.permute.xlu0 %2971
      %2973 = vrot.lane.b32.xlu0 %v2355, 54
      %v2974 = vpop.permute.xlu0 %2973
      %2975 = vrot.lane.b32.xlu0 %v2356, 54
      %v2976 = vpop.permute.xlu0 %2975
      %2977 = vrot.lane.b32.xlu0 %v2357, 54
      %v2978 = vpop.permute.xlu0 %2977
      %2979 = vrot.lane.b32.xlu0 %v2358, 54
      %v2980 = vpop.permute.xlu0 %2979
      %2981 = vrot.lane.b32.xlu0 %v2359, 54
      %v2982 = vpop.permute.xlu0 %2981
      %2983 = vrot.lane.b32.xlu0 %v2360, 54
      %v2984 = vpop.permute.xlu0 %2983
      %2985 = vrot.lane.b32.xlu0 %v2361, 54
      %v2986 = vpop.permute.xlu0 %2985
      %2987 = vrot.lane.b32.xlu0 %v2362, 54
      %v2988 = vpop.permute.xlu0 %2987
      %2989 = vrot.lane.b32.xlu0 %v2363, 54
      %v2990 = vpop.permute.xlu0 %2989
      %2991 = vrot.lane.b32.xlu0 %v2364, 54
      %v2992 = vpop.permute.xlu0 %2991
      %2993 = vrot.lane.b32.xlu0 %v2365, 54
      %v2994 = vpop.permute.xlu0 %2993
      %2995 = vrot.lane.b32.xlu0 %v2366, 54
      %v2996 = vpop.permute.xlu0 %2995
      %2997 = vrot.lane.b32.xlu0 %v2367, 54
      %v2998 = vpop.permute.xlu0 %2997
      %2999 = vrot.lane.b32.xlu0 %v2368, 54
      %v3000 = vpop.permute.xlu0 %2999
      %3001 = vrot.lane.b32.xlu0 %v2369, 54
      %v3002 = vpop.permute.xlu0 %3001
      %vm3003 = vcmask 441344
      %v3004 = vsel %vm3003, %v2956, %v2958
      %v3005 = vsel %vm3003, %v2958, %v2960
      %v3006 = vsel %vm3003, %v2960, %v2962
      %v3007 = vsel %vm3003, %v2962, %v2964
      %v3008 = vsel %vm3003, %v2964, %v2966
      %v3009 = vsel %vm3003, %v2966, %v2968
      %v3010 = vsel %vm3003, %v2968, %v2970
      %v3011 = vsel %vm3003, %v2970, %v2972
      %v3012 = vsel %vm3003, %v2972, %v2974
      %v3013 = vsel %vm3003, %v2974, %v2976
      %v3014 = vsel %vm3003, %v2976, %v2978
      %v3015 = vsel %vm3003, %v2978, %v2980
      %v3016 = vsel %vm3003, %v2980, %v2982
      %v3017 = vsel %vm3003, %v2982, %v2984
      %v3018 = vsel %vm3003, %v2984, %v2986
      %v3019 = vsel %vm3003, %v2986, %v2988
      %v3020 = vsel %vm3003, %v2988, %v2990
      %v3021 = vsel %vm3003, %v2990, %v2992
      %v3022 = vsel %vm3003, %v2992, %v2994
      %v3023 = vsel %vm3003, %v2994, %v2996
      %v3024 = vsel %vm3003, %v2996, %v2998
      %v3025 = vsel %vm3003, %v2998, %v3000
      %v3026 = vsel %vm3003, %v3000, %v3002
      %3050 = vrot.lane.b32.xlu0 %v2346, 52
      %v3051 = vpop.permute.xlu0 %3050
      %3052 = vrot.lane.b32.xlu0 %v2347, 52
      %v3053 = vpop.permute.xlu0 %3052
      %3054 = vrot.lane.b32.xlu0 %v2348, 52
      %v3055 = vpop.permute.xlu0 %3054
      %3056 = vrot.lane.b32.xlu0 %v2349, 52
      %v3057 = vpop.permute.xlu0 %3056
      %3058 = vrot.lane.b32.xlu0 %v2350, 52
      %v3059 = vpop.permute.xlu0 %3058
      %3060 = vrot.lane.b32.xlu0 %v2351, 52
      %v3061 = vpop.permute.xlu0 %3060
      %3062 = vrot.lane.b32.xlu0 %v2352, 52
      %v3063 = vpop.permute.xlu0 %3062
      %3064 = vrot.lane.b32.xlu0 %v2353, 52
      %v3065 = vpop.permute.xlu0 %3064
      %3066 = vrot.lane.b32.xlu0 %v2354, 52
      %v3067 = vpop.permute.xlu0 %3066
      %3068 = vrot.lane.b32.xlu0 %v2355, 52
      %v3069 = vpop.permute.xlu0 %3068
      %3070 = vrot.lane.b32.xlu0 %v2356, 52
      %v3071 = vpop.permute.xlu0 %3070
      %3072 = vrot.lane.b32.xlu0 %v2357, 52
      %v3073 = vpop.permute.xlu0 %3072
      %3074 = vrot.lane.b32.xlu0 %v2358, 52
      %v3075 = vpop.permute.xlu0 %3074
      %3076 = vrot.lane.b32.xlu0 %v2359, 52
      %v3077 = vpop.permute.xlu0 %3076
      %3078 = vrot.lane.b32.xlu0 %v2360, 52
      %v3079 = vpop.permute.xlu0 %3078
      %3080 = vrot.lane.b32.xlu0 %v2361, 52
      %v3081 = vpop.permute.xlu0 %3080
      %3082 = vrot.lane.b32.xlu0 %v2362, 52
      %v3083 = vpop.permute.xlu0 %3082
      %3084 = vrot.lane.b32.xlu0 %v2363, 52
      %v3085 = vpop.permute.xlu0 %3084
      %3086 = vrot.lane.b32.xlu0 %v2364, 52
      %v3087 = vpop.permute.xlu0 %3086
      %3088 = vrot.lane.b32.xlu0 %v2365, 52
      %v3089 = vpop.permute.xlu0 %3088
      %3090 = vrot.lane.b32.xlu0 %v2366, 52
      %v3091 = vpop.permute.xlu0 %3090
      %3092 = vrot.lane.b32.xlu0 %v2367, 52
      %v3093 = vpop.permute.xlu0 %3092
      %3094 = vrot.lane.b32.xlu0 %v2368, 52
      %v3095 = vpop.permute.xlu0 %3094
      %3096 = vrot.lane.b32.xlu0 %v2369, 52
      %v3097 = vpop.permute.xlu0 %3096
      %vm3098 = vcmask 424960
      %v3099 = vsel %vm3098, %v3051, %v3053
      %v3100 = vsel %vm3098, %v3053, %v3055
      %v3101 = vsel %vm3098, %v3055, %v3057
      %v3102 = vsel %vm3098, %v3057, %v3059
      %v3103 = vsel %vm3098, %v3059, %v3061
      %v3104 = vsel %vm3098, %v3061, %v3063
      %v3105 = vsel %vm3098, %v3063, %v3065
      %v3106 = vsel %vm3098, %v3065, %v3067
      %v3107 = vsel %vm3098, %v3067, %v3069
      %v3108 = vsel %vm3098, %v3069, %v3071
      %v3109 = vsel %vm3098, %v3071, %v3073
      %v3110 = vsel %vm3098, %v3073, %v3075
      %v3111 = vsel %vm3098, %v3075, %v3077
      %v3112 = vsel %vm3098, %v3077, %v3079
      %v3113 = vsel %vm3098, %v3079, %v3081
      %v3114 = vsel %vm3098, %v3081, %v3083
      %v3115 = vsel %vm3098, %v3083, %v3085
      %v3116 = vsel %vm3098, %v3085, %v3087
      %v3117 = vsel %vm3098, %v3087, %v3089
      %v3118 = vsel %vm3098, %v3089, %v3091
      %v3119 = vsel %vm3098, %v3091, %v3093
      %v3120 = vsel %vm3098, %v3093, %v3095
      %v3121 = vsel %vm3098, %v3095, %v3097
      %v3145 = vld [vmem:[%s3] sm:$0xff]
      %v3146 = vld [vmem:[%s3 + $0x8] sm:$0xff]
      %v3147 = vld [vmem:[%s4] sm:$0xff]
      %v3148 = vld [vmem:[%s4 + $0x8] sm:$0xff]
      %3150 = vset.pattern.permute.xlu0 0
      %3151 = vperm.xlu0 %3150, %v3147
      %v3152 = vpop.permute.xlu0 %3151
      %3155 = vset.pattern.permute.xlu0 0
      %3156 = vperm.xlu0 %3155, %v3148
      %v3157 = vpop.permute.xlu0 %3156
      %v3160 = vsel %vm1156, %v3145, 0
      %v3163 = vsel %vm1156, %v3146, 0
      %3165 = vmatprep.subr.mxu0 %v2347
      %3166 = vmatpush1.msra.mxu0 %v2346
      %3167 = vmatprep.subr.mxu0 %v2440
      %3168 = vmatpush1.msra.mxu0 %v2439
      %3169 = vmatprep.subr.mxu0 %v2532
      %3170 = vmatpush1.msra.mxu0 %v2531
      %3171 = vmatprep.subr.mxu0 %v2626
      %3172 = vmatpush1.msra.mxu0 %v2625
      %3173 = vmatprep.subr.mxu0 %v2720
      %3174 = vmatpush1.msra.mxu0 %v2719
      %3175 = vmatprep.subr.mxu0 %v2815
      %3176 = vmatpush1.msra.mxu0 %v2814
      %3177 = vmatprep.subr.mxu0 %v2910
      %3178 = vmatpush1.msra.mxu0 %v2909
      %3179 = vmatprep.subr.mxu0 %v3005
      %3180 = vmatpush1.msra.mxu0 %v3004
      %3181 = vmatprep.subr.mxu0 %v3100
      %3182 = vmatpush1.msra.mxu0 %v3099
      %3183 = vmatprep.subr.mxu0 0.0
      %3184 = vmatpush1.msra.mxu0 0.0
      %3185 = vmatprep.subr.mxu0 0.0
      %3186 = vmatpush1.msra.mxu0 0.0
      %3187 = vmatprep.subr.mxu0 0.0
      %3188 = vmatpush1.msra.mxu0 0.0
      %3189 = vmatprep.subr.mxu0 0.0
      %3190 = vmatpush1.msra.mxu0 0.0
      %3191 = vmatprep.subr.mxu0 0.0
      %3192 = vmatpush1.msra.mxu0 0.0
      %3193 = vmatprep.subr.mxu0 0.0
      %3194 = vmatpush1.msra.mxu0 0.0
      %3195 = vmatprep.subr.mxu0 0.0
      %3196 = vmatpush1.msra.mxu0 0.0
      %3197 = vmatprep.subr.mxu0 0.0
      %3198 = vmatpush1.msra.mxu0 0.0
      %3199 = vmatprep.subr.mxu0 0.0
      %3200 = vmatpush1.msra.mxu0 0.0
      %3201 = vmatprep.subr.mxu0 0.0
      %3202 = vmatpush1.msra.mxu0 0.0
      %3203 = vmatprep.subr.mxu0 0.0
      %3204 = vmatpush1.msra.mxu0 0.0
      %3205 = vmatprep.subr.mxu0 0.0
      %3206 = vmatpush1.msra.mxu0 0.0
      %3207 = vmatprep.subr.mxu0 0.0
      %3208 = vmatpush1.msra.mxu0 0.0
      %3209 = vmatprep.subr.mxu0 0.0
      %3210 = vmatpush1.msra.mxu0 0.0
      %3211 = vmatprep.subr.mxu0 0.0
      %3212 = vmatpush1.msra.mxu0 0.0
      %3213 = vmatprep.subr.mxu0 0.0
      %3214 = vmatpush1.msra.mxu0 0.0
      %3215 = vmatprep.subr.mxu0 0.0
      %3216 = vmatpush1.msra.mxu0 0.0
      %3217 = vmatprep.subr.mxu0 0.0
      %3218 = vmatpush1.msra.mxu0 0.0
      %3219 = vmatprep.subr.mxu0 0.0
      %3220 = vmatpush1.msra.mxu0 0.0
      %3221 = vmatprep.subr.mxu0 0.0
      %3222 = vmatpush1.msra.mxu0 0.0
      %3223 = vmatprep.subr.mxu0 0.0
      %3224 = vmatpush1.msra.mxu0 0.0
      %3225 = vmatprep.subr.mxu0 0.0
      %3226 = vmatpush1.msra.mxu0 0.0
      %3227 = vmatprep.subr.mxu0 0.0
      %3228 = vmatpush1.msra.mxu0 0.0
      %3229 = vmatprep.mubr.f32.mxu0 0.0
      %3230 = vmatmul.mubr.f32.gmra.mrb[0].mxu0 %v3160
      %v3231 = vpop.f32.mrb[0].mxu0
      %v3232 = vadd.f32 %v3152, %v3231
      %v3233 = vpop.f32.mrb[0].mxu0
      %v3234 = vadd.f32 %v3152, %v3233
      %3235 = vmatprep.mubr.f32.mxu0 0.0
      %3236 = vmatmul.mubr.f32.gmra.mrb[0].mxu0 %v3163
      %v3237 = vpop.f32.mrb[0].mxu0
      %v3238 = vadd.f32 %v3157, %v3237
      %v3239 = vpop.f32.mrb[0].mxu0
      %v3240 = vadd.f32 %v3157, %v3239
      %3241 = vdwg.mxu0
      %3242 = vmatprep.subr.mxu0 %v2349
      %3243 = vmatpush1.msra.mxu0 %v2348
      %3244 = vmatprep.subr.mxu0 %v2442
      %3245 = vmatpush1.msra.mxu0 %v2441
      %3246 = vmatprep.subr.mxu0 %v2534
      %3247 = vmatpush1.msra.mxu0 %v2533
      %3248 = vmatprep.subr.mxu0 %v2628
      %3249 = vmatpush1.msra.mxu0 %v2627
      %3250 = vmatprep.subr.mxu0 %v2722
      %3251 = vmatpush1.msra.mxu0 %v2721
      %3252 = vmatprep.subr.mxu0 %v2817
      %3253 = vmatpush1.msra.mxu0 %v2816
      %3254 = vmatprep.subr.mxu0 %v2912
      %3255 = vmatpush1.msra.mxu0 %v2911
      %3256 = vmatprep.subr.mxu0 %v3007
      %3257 = vmatpush1.msra.mxu0 %v3006
      %3258 = vmatprep.subr.mxu0 %v3102
      %3259 = vmatpush1.msra.mxu0 %v3101
      %3260 = vmatprep.subr.mxu0 0.0
      %3261 = vmatpush1.msra.mxu0 0.0
      %3262 = vmatprep.subr.mxu0 0.0
      %3263 = vmatpush1.msra.mxu0 0.0
      %3264 = vmatprep.subr.mxu0 0.0
      %3265 = vmatpush1.msra.mxu0 0.0
      %3266 = vmatprep.subr.mxu0 0.0
      %3267 = vmatpush1.msra.mxu0 0.0
      %3268 = vmatprep.subr.mxu0 0.0
      %3269 = vmatpush1.msra.mxu0 0.0
      %3270 = vmatprep.subr.mxu0 0.0
      %3271 = vmatpush1.msra.mxu0 0.0
      %3272 = vmatprep.subr.mxu0 0.0
      %3273 = vmatpush1.msra.mxu0 0.0
      %3274 = vmatprep.subr.mxu0 0.0
      %3275 = vmatpush1.msra.mxu0 0.0
      %3276 = vmatprep.subr.mxu0 0.0
      %3277 = vmatpush1.msra.mxu0 0.0
      %3278 = vmatprep.subr.mxu0 0.0
      %3279 = vmatpush1.msra.mxu0 0.0
      %3280 = vmatprep.subr.mxu0 0.0
      %3281 = vmatpush1.msra.mxu0 0.0
      %3282 = vmatprep.subr.mxu0 0.0
      %3283 = vmatpush1.msra.mxu0 0.0
      %3284 = vmatprep.subr.mxu0 0.0
      %3285 = vmatpush1.msra.mxu0 0.0
      %3286 = vmatprep.subr.mxu0 0.0
      %3287 = vmatpush1.msra.mxu0 0.0
      %3288 = vmatprep.subr.mxu0 0.0
      %3289 = vmatpush1.msra.mxu0 0.0
      %3290 = vmatprep.subr.mxu0 0.0
      %3291 = vmatpush1.msra.mxu0 0.0
      %3292 = vmatprep.subr.mxu0 0.0
      %3293 = vmatpush1.msra.mxu0 0.0
      %3294 = vmatprep.subr.mxu0 0.0
      %3295 = vmatpush1.msra.mxu0 0.0
      %3296 = vmatprep.subr.mxu0 0.0
      %3297 = vmatpush1.msra.mxu0 0.0
      %3298 = vmatprep.subr.mxu0 0.0
      %3299 = vmatpush1.msra.mxu0 0.0
      %3300 = vmatprep.subr.mxu0 0.0
      %3301 = vmatpush1.msra.mxu0 0.0
      %3302 = vmatprep.subr.mxu0 0.0
      %3303 = vmatpush1.msra.mxu0 0.0
      %3304 = vmatprep.subr.mxu0 0.0
      %3305 = vmatpush1.msra.mxu0 0.0
      %3306 = vmatprep.mubr.f32.mxu0 0.0
      %3307 = vmatmul.mubr.f32.gmra.mrb[0].mxu0 %v3160
      %v3308 = vpop.f32.mrb[0].mxu0
      %v3309 = vadd.f32 %v3152, %v3308
      %v3310 = vpop.f32.mrb[0].mxu0
      %v3311 = vadd.f32 %v3152, %v3310
      %3312 = vmatprep.mubr.f32.mxu0 0.0
      %3313 = vmatmul.mubr.f32.gmra.mrb[0].mxu0 %v3163
      %v3314 = vpop.f32.mrb[0].mxu0
      %v3315 = vadd.f32 %v3157, %v3314
      %v3316 = vpop.f32.mrb[0].mxu0
      %v3317 = vadd.f32 %v3157, %v3316
      %3318 = vdwg.mxu0
      %3319 = vmatprep.subr.mxu0 %v2351
      %3320 = vmatpush1.msra.mxu0 %v2350
      %3321 = vmatprep.subr.mxu0 %v2444
      %3322 = vmatpush1.msra.mxu0 %v2443
      %3323 = vmatprep.subr.mxu0 %v2536
      %3324 = vmatpush1.msra.mxu0 %v2535
      %3325 = vmatprep.subr.mxu0 %v2630
      %3326 = vmatpush1.msra.mxu0 %v2629
      %3327 = vmatprep.subr.mxu0 %v2724
      %3328 = vmatpush1.msra.mxu0 %v2723
      %3329 = vmatprep.subr.mxu0 %v2819
      %3330 = vmatpush1.msra.mxu0 %v2818
      %3331 = vmatprep.subr.mxu0 %v2914
      %3332 = vmatpush1.msra.mxu0 %v2913
      %3333 = vmatprep.subr.mxu0 %v3009
      %3334 = vmatpush1.msra.mxu0 %v3008
      %3335 = vmatprep.subr.mxu0 %v3104
      %3336 = vmatpush1.msra.mxu0 %v3103
      %3337 = vmatprep.subr.mxu0 0.0
      %3338 = vmatpush1.msra.mxu0 0.0
      %3339 = vmatprep.subr.mxu0 0.0
      %3340 = vmatpush1.msra.mxu0 0.0
      %3341 = vmatprep.subr.mxu0 0.0
      %3342 = vmatpush1.msra.mxu0 0.0
      %3343 = vmatprep.subr.mxu0 0.0
      %3344 = vmatpush1.msra.mxu0 0.0
      %3345 = vmatprep.subr.mxu0 0.0
      %3346 = vmatpush1.msra.mxu0 0.0
      %3347 = vmatprep.subr.mxu0 0.0
      %3348 = vmatpush1.msra.mxu0 0.0
      %3349 = vmatprep.subr.mxu0 0.0
      %3350 = vmatpush1.msra.mxu0 0.0
      %3351 = vmatprep.subr.mxu0 0.0
      %3352 = vmatpush1.msra.mxu0 0.0
      %3353 = vmatprep.subr.mxu0 0.0
      %3354 = vmatpush1.msra.mxu0 0.0
      %3355 = vmatprep.subr.mxu0 0.0
      %3356 = vmatpush1.msra.mxu0 0.0
      %3357 = vmatprep.subr.mxu0 0.0
      %3358 = vmatpush1.msra.mxu0 0.0
      %3359 = vmatprep.subr.mxu0 0.0
      %3360 = vmatpush1.msra.mxu0 0.0
      %3361 = vmatprep.subr.mxu0 0.0
      %3362 = vmatpush1.msra.mxu0 0.0
      %3363 = vmatprep.subr.mxu0 0.0
      %3364 = vmatpush1.msra.mxu0 0.0
      %3365 = vmatprep.subr.mxu0 0.0
      %3366 = vmatpush1.msra.mxu0 0.0
      %3367 = vmatprep.subr.mxu0 0.0
      %3368 = vmatpush1.msra.mxu0 0.0
      %3369 = vmatprep.subr.mxu0 0.0
      %3370 = vmatpush1.msra.mxu0 0.0
      %3371 = vmatprep.subr.mxu0 0.0
      %3372 = vmatpush1.msra.mxu0 0.0
      %3373 = vmatprep.subr.mxu0 0.0
      %3374 = vmatpush1.msra.mxu0 0.0
      %3375 = vmatprep.subr.mxu0 0.0
      %3376 = vmatpush1.msra.mxu0 0.0
      %3377 = vmatprep.subr.mxu0 0.0
      %3378 = vmatpush1.msra.mxu0 0.0
      %3379 = vmatprep.subr.mxu0 0.0
      %3380 = vmatpush1.msra.mxu0 0.0
      %3381 = vmatprep.subr.mxu0 0.0
      %3382 = vmatpush1.msra.mxu0 0.0
      %3383 = vmatprep.mubr.f32.mxu0 0.0
      %3384 = vmatmul.mubr.f32.gmra.mrb[0].mxu0 %v3160
      %v3385 = vpop.f32.mrb[0].mxu0
      %v3386 = vadd.f32 %v3152, %v3385
      %v3387 = vpop.f32.mrb[0].mxu0
      %v3388 = vadd.f32 %v3152, %v3387
      %3389 = vmatprep.mubr.f32.mxu0 0.0
      %3390 = vmatmul.mubr.f32.gmra.mrb[0].mxu0 %v3163
      %v3391 = vpop.f32.mrb[0].mxu0
      %v3392 = vadd.f32 %v3157, %v3391
      %v3393 = vpop.f32.mrb[0].mxu0
      %v3394 = vadd.f32 %v3157, %v3393
      %3395 = vdwg.mxu0
      %3396 = vmatprep.subr.mxu0 %v2353
      %3397 = vmatpush1.msra.mxu0 %v2352
      %3398 = vmatprep.subr.mxu0 %v2446
      %3399 = vmatpush1.msra.mxu0 %v2445
      %3400 = vmatprep.subr.mxu0 %v2538
      %3401 = vmatpush1.msra.mxu0 %v2537
      %3402 = vmatprep.subr.mxu0 %v2632
      %3403 = vmatpush1.msra.mxu0 %v2631
      %3404 = vmatprep.subr.mxu0 %v2726
      %3405 = vmatpush1.msra.mxu0 %v2725
      %3406 = vmatprep.subr.mxu0 %v2821
      %3407 = vmatpush1.msra.mxu0 %v2820
      %3408 = vmatprep.subr.mxu0 %v2916
      %3409 = vmatpush1.msra.mxu0 %v2915
      %3410 = vmatprep.subr.mxu0 %v3011
      %3411 = vmatpush1.msra.mxu0 %v3010
      %3412 = vmatprep.subr.mxu0 %v3106
      %3413 = vmatpush1.msra.mxu0 %v3105
      %3414 = vmatprep.subr.mxu0 0.0
      %3415 = vmatpush1.msra.mxu0 0.0
      %3416 = vmatprep.subr.mxu0 0.0
      %3417 = vmatpush1.msra.mxu0 0.0
      %3418 = vmatprep.subr.mxu0 0.0
      %3419 = vmatpush1.msra.mxu0 0.0
      %3420 = vmatprep.subr.mxu0 0.0
      %3421 = vmatpush1.msra.mxu0 0.0
      %3422 = vmatprep.subr.mxu0 0.0
      %3423 = vmatpush1.msra.mxu0 0.0
      %3424 = vmatprep.subr.mxu0 0.0
      %3425 = vmatpush1.msra.mxu0 0.0
      %3426 = vmatprep.subr.mxu0 0.0
      %3427 = vmatpush1.msra.mxu0 0.0
      %3428 = vmatprep.subr.mxu0 0.0
      %3429 = vmatpush1.msra.mxu0 0.0
      %3430 = vmatprep.subr.mxu0 0.0
      %3431 = vmatpush1.msra.mxu0 0.0
      %3432 = vmatprep.subr.mxu0 0.0
      %3433 = vmatpush1.msra.mxu0 0.0
      %3434 = vmatprep.subr.mxu0 0.0
      %3435 = vmatpush1.msra.mxu0 0.0
      %3436 = vmatprep.subr.mxu0 0.0
      %3437 = vmatpush1.msra.mxu0 0.0
      %3438 = vmatprep.subr.mxu0 0.0
      %3439 = vmatpush1.msra.mxu0 0.0
      %3440 = vmatprep.subr.mxu0 0.0
      %3441 = vmatpush1.msra.mxu0 0.0
      %3442 = vmatprep.subr.mxu0 0.0
      %3443 = vmatpush1.msra.mxu0 0.0
      %3444 = vmatprep.subr.mxu0 0.0
      %3445 = vmatpush1.msra.mxu0 0.0
      %3446 = vmatprep.subr.mxu0 0.0
      %3447 = vmatpush1.msra.mxu0 0.0
      %3448 = vmatprep.subr.mxu0 0.0
      %3449 = vmatpush1.msra.mxu0 0.0
      %3450 = vmatprep.subr.mxu0 0.0
      %3451 = vmatpush1.msra.mxu0 0.0
      %3452 = vmatprep.subr.mxu0 0.0
      %3453 = vmatpush1.msra.mxu0 0.0
      %3454 = vmatprep.subr.mxu0 0.0
      %3455 = vmatpush1.msra.mxu0 0.0
      %3456 = vmatprep.subr.mxu0 0.0
      %3457 = vmatpush1.msra.mxu0 0.0
      %3458 = vmatprep.subr.mxu0 0.0
      %3459 = vmatpush1.msra.mxu0 0.0
      %3460 = vmatprep.mubr.f32.mxu0 0.0
      %3461 = vmatmul.mubr.f32.gmra.mrb[0].mxu0 %v3160
      %v3462 = vpop.f32.mrb[0].mxu0
      %v3463 = vadd.f32 %v3152, %v3462
      %v3464 = vpop.f32.mrb[0].mxu0
      %v3465 = vadd.f32 %v3152, %v3464
      %3466 = vmatprep.mubr.f32.mxu0 0.0
      %3467 = vmatmul.mubr.f32.gmra.mrb[0].mxu0 %v3163
      %v3468 = vpop.f32.mrb[0].mxu0
      %v3469 = vadd.f32 %v3157, %v3468
      %v3470 = vpop.f32.mrb[0].mxu0
      %v3471 = vadd.f32 %v3157, %v3470
      %3472 = vdwg.mxu0
      %3473 = vmatprep.subr.mxu0 %v2355
      %3474 = vmatpush1.msra.mxu0 %v2354
      %3475 = vmatprep.subr.mxu0 %v2448
      %3476 = vmatpush1.msra.mxu0 %v2447
      %3477 = vmatprep.subr.mxu0 %v2540
      %3478 = vmatpush1.msra.mxu0 %v2539
      %3479 = vmatprep.subr.mxu0 %v2634
      %3480 = vmatpush1.msra.mxu0 %v2633
      %3481 = vmatprep.subr.mxu0 %v2728
      %3482 = vmatpush1.msra.mxu0 %v2727
      %3483 = vmatprep.subr.mxu0 %v2823
      %3484 = vmatpush1.msra.mxu0 %v2822
      %3485 = vmatprep.subr.mxu0 %v2918
      %3486 = vmatpush1.msra.mxu0 %v2917
      %3487 = vmatprep.subr.mxu0 %v3013
      %3488 = vmatpush1.msra.mxu0 %v3012
      %3489 = vmatprep.subr.mxu0 %v3108
      %3490 = vmatpush1.msra.mxu0 %v3107
      %3491 = vmatprep.subr.mxu0 0.0
      %3492 = vmatpush1.msra.mxu0 0.0
      %3493 = vmatprep.subr.mxu0 0.0
      %3494 = vmatpush1.msra.mxu0 0.0
      %3495 = vmatprep.subr.mxu0 0.0
      %3496 = vmatpush1.msra.mxu0 0.0
      %3497 = vmatprep.subr.mxu0 0.0
      %3498 = vmatpush1.msra.mxu0 0.0
      %3499 = vmatprep.subr.mxu0 0.0
      %3500 = vmatpush1.msra.mxu0 0.0
      %3501 = vmatprep.subr.mxu0 0.0
      %3502 = vmatpush1.msra.mxu0 0.0
      %3503 = vmatprep.subr.mxu0 0.0
      %3504 = vmatpush1.msra.mxu0 0.0
      %3505 = vmatprep.subr.mxu0 0.0
      %3506 = vmatpush1.msra.mxu0 0.0
      %3507 = vmatprep.subr.mxu0 0.0
      %3508 = vmatpush1.msra.mxu0 0.0
      %3509 = vmatprep.subr.mxu0 0.0
      %3510 = vmatpush1.msra.mxu0 0.0
      %3511 = vmatprep.subr.mxu0 0.0
      %3512 = vmatpush1.msra.mxu0 0.0
      %3513 = vmatprep.subr.mxu0 0.0
      %3514 = vmatpush1.msra.mxu0 0.0
      %3515 = vmatprep.subr.mxu0 0.0
      %3516 = vmatpush1.msra.mxu0 0.0
      %3517 = vmatprep.subr.mxu0 0.0
      %3518 = vmatpush1.msra.mxu0 0.0
      %3519 = vmatprep.subr.mxu0 0.0
      %3520 = vmatpush1.msra.mxu0 0.0
      %3521 = vmatprep.subr.mxu0 0.0
      %3522 = vmatpush1.msra.mxu0 0.0
      %3523 = vmatprep.subr.mxu0 0.0
      %3524 = vmatpush1.msra.mxu0 0.0
      %3525 = vmatprep.subr.mxu0 0.0
      %3526 = vmatpush1.msra.mxu0 0.0
      %3527 = vmatprep.subr.mxu0 0.0
      %3528 = vmatpush1.msra.mxu0 0.0
      %3529 = vmatprep.subr.mxu0 0.0
      %3530 = vmatpush1.msra.mxu0 0.0
      %3531 = vmatprep.subr.mxu0 0.0
      %3532 = vmatpush1.msra.mxu0 0.0
      %3533 = vmatprep.subr.mxu0 0.0
      %3534 = vmatpush1.msra.mxu0 0.0
      %3535 = vmatprep.subr.mxu0 0.0
      %3536 = vmatpush1.msra.mxu0 0.0
      %3537 = vmatprep.mubr.f32.mxu0 0.0
      %3538 = vmatmul.mubr.f32.gmra.mrb[0].mxu0 %v3160
      %v3539 = vpop.f32.mrb[0].mxu0
      %v3540 = vadd.f32 %v3152, %v3539
      %v3541 = vpop.f32.mrb[0].mxu0
      %v3542 = vadd.f32 %v3152, %v3541
      %3543 = vmatprep.mubr.f32.mxu0 0.0
      %3544 = vmatmul.mubr.f32.gmra.mrb[0].mxu0 %v3163
      %v3545 = vpop.f32.mrb[0].mxu0
      %v3546 = vadd.f32 %v3157, %v3545
      %v3547 = vpop.f32.mrb[0].mxu0
      %v3548 = vadd.f32 %v3157, %v3547
      %3549 = vdwg.mxu0
      %3550 = vmatprep.subr.mxu0 %v2357
      %3551 = vmatpush1.msra.mxu0 %v2356
      %3552 = vmatprep.subr.mxu0 %v2450
      %3553 = vmatpush1.msra.mxu0 %v2449
      %3554 = vmatprep.subr.mxu0 %v2542
      %3555 = vmatpush1.msra.mxu0 %v2541
      %3556 = vmatprep.subr.mxu0 %v2636
      %3557 = vmatpush1.msra.mxu0 %v2635
      %3558 = vmatprep.subr.mxu0 %v2730
      %3559 = vmatpush1.msra.mxu0 %v2729
      %3560 = vmatprep.subr.mxu0 %v2825
      %3561 = vmatpush1.msra.mxu0 %v2824
      %3562 = vmatprep.subr.mxu0 %v2920
      %3563 = vmatpush1.msra.mxu0 %v2919
      %3564 = vmatprep.subr.mxu0 %v3015
      %3565 = vmatpush1.msra.mxu0 %v3014
      %3566 = vmatprep.subr.mxu0 %v3110
      %3567 = vmatpush1.msra.mxu0 %v3109
      %3568 = vmatprep.subr.mxu0 0.0
      %3569 = vmatpush1.msra.mxu0 0.0
      %3570 = vmatprep.subr.mxu0 0.0
      %3571 = vmatpush1.msra.mxu0 0.0
      %3572 = vmatprep.subr.mxu0 0.0
      %3573 = vmatpush1.msra.mxu0 0.0
      %3574 = vmatprep.subr.mxu0 0.0
      %3575 = vmatpush1.msra.mxu0 0.0
      %3576 = vmatprep.subr.mxu0 0.0
      %3577 = vmatpush1.msra.mxu0 0.0
      %3578 = vmatprep.subr.mxu0 0.0
      %3579 = vmatpush1.msra.mxu0 0.0
      %3580 = vmatprep.subr.mxu0 0.0
      %3581 = vmatpush1.msra.mxu0 0.0
      %3582 = vmatprep.subr.mxu0 0.0
      %3583 = vmatpush1.msra.mxu0 0.0
      %3584 = vmatprep.subr.mxu0 0.0
      %3585 = vmatpush1.msra.mxu0 0.0
      %3586 = vmatprep.subr.mxu0 0.0
      %3587 = vmatpush1.msra.mxu0 0.0
      %3588 = vmatprep.subr.mxu0 0.0
      %3589 = vmatpush1.msra.mxu0 0.0
      %3590 = vmatprep.subr.mxu0 0.0
      %3591 = vmatpush1.msra.mxu0 0.0
      %3592 = vmatprep.subr.mxu0 0.0
      %3593 = vmatpush1.msra.mxu0 0.0
      %3594 = vmatprep.subr.mxu0 0.0
      %3595 = vmatpush1.msra.mxu0 0.0
      %3596 = vmatprep.subr.mxu0 0.0
      %3597 = vmatpush1.msra.mxu0 0.0
      %3598 = vmatprep.subr.mxu0 0.0
      %3599 = vmatpush1.msra.mxu0 0.0
      %3600 = vmatprep.subr.mxu0 0.0
      %3601 = vmatpush1.msra.mxu0 0.0
      %3602 = vmatprep.subr.mxu0 0.0
      %3603 = vmatpush1.msra.mxu0 0.0
      %3604 = vmatprep.subr.mxu0 0.0
      %3605 = vmatpush1.msra.mxu0 0.0
      %3606 = vmatprep.subr.mxu0 0.0
      %3607 = vmatpush1.msra.mxu0 0.0
      %3608 = vmatprep.subr.mxu0 0.0
      %3609 = vmatpush1.msra.mxu0 0.0
      %3610 = vmatprep.subr.mxu0 0.0
      %3611 = vmatpush1.msra.mxu0 0.0
      %3612 = vmatprep.subr.mxu0 0.0
      %3613 = vmatpush1.msra.mxu0 0.0
      %3614 = vmatprep.mubr.f32.mxu0 0.0
      %3615 = vmatmul.mubr.f32.gmra.mrb[0].mxu0 %v3160
      %v3616 = vpop.f32.mrb[0].mxu0
      %v3617 = vadd.f32 %v3152, %v3616
      %v3618 = vpop.f32.mrb[0].mxu0
      %v3619 = vadd.f32 %v3152, %v3618
      %3620 = vmatprep.mubr.f32.mxu0 0.0
      %3621 = vmatmul.mubr.f32.gmra.mrb[0].mxu0 %v3163
      %v3622 = vpop.f32.mrb[0].mxu0
      %v3623 = vadd.f32 %v3157, %v3622
      %v3624 = vpop.f32.mrb[0].mxu0
      %v3625 = vadd.f32 %v3157, %v3624
      %3626 = vdwg.mxu0
      %3627 = vmatprep.subr.mxu0 %v2359
      %3628 = vmatpush1.msra.mxu0 %v2358
      %3629 = vmatprep.subr.mxu0 %v2452
      %3630 = vmatpush1.msra.mxu0 %v2451
      %3631 = vmatprep.subr.mxu0 %v2544
      %3632 = vmatpush1.msra.mxu0 %v2543
      %3633 = vmatprep.subr.mxu0 %v2638
      %3634 = vmatpush1.msra.mxu0 %v2637
      %3635 = vmatprep.subr.mxu0 %v2732
      %3636 = vmatpush1.msra.mxu0 %v2731
      %3637 = vmatprep.subr.mxu0 %v2827
      %3638 = vmatpush1.msra.mxu0 %v2826
      %3639 = vmatprep.subr.mxu0 %v2922
      %3640 = vmatpush1.msra.mxu0 %v2921
      %3641 = vmatprep.subr.mxu0 %v3017
      %3642 = vmatpush1.msra.mxu0 %v3016
      %3643 = vmatprep.subr.mxu0 %v3112
      %3644 = vmatpush1.msra.mxu0 %v3111
      %3645 = vmatprep.subr.mxu0 0.0
      %3646 = vmatpush1.msra.mxu0 0.0
      %3647 = vmatprep.subr.mxu0 0.0
      %3648 = vmatpush1.msra.mxu0 0.0
      %3649 = vmatprep.subr.mxu0 0.0
      %3650 = vmatpush1.msra.mxu0 0.0
      %3651 = vmatprep.subr.mxu0 0.0
      %3652 = vmatpush1.msra.mxu0 0.0
      %3653 = vmatprep.subr.mxu0 0.0
      %3654 = vmatpush1.msra.mxu0 0.0
      %3655 = vmatprep.subr.mxu0 0.0
      %3656 = vmatpush1.msra.mxu0 0.0
      %3657 = vmatprep.subr.mxu0 0.0
      %3658 = vmatpush1.msra.mxu0 0.0
      %3659 = vmatprep.subr.mxu0 0.0
      %3660 = vmatpush1.msra.mxu0 0.0
      %3661 = vmatprep.subr.mxu0 0.0
      %3662 = vmatpush1.msra.mxu0 0.0
      %3663 = vmatprep.subr.mxu0 0.0
      %3664 = vmatpush1.msra.mxu0 0.0
      %3665 = vmatprep.subr.mxu0 0.0
      %3666 = vmatpush1.msra.mxu0 0.0
      %3667 = vmatprep.subr.mxu0 0.0
      %3668 = vmatpush1.msra.mxu0 0.0
      %3669 = vmatprep.subr.mxu0 0.0
      %3670 = vmatpush1.msra.mxu0 0.0
      %3671 = vmatprep.subr.mxu0 0.0
      %3672 = vmatpush1.msra.mxu0 0.0
      %3673 = vmatprep.subr.mxu0 0.0
      %3674 = vmatpush1.msra.mxu0 0.0
      %3675 = vmatprep.subr.mxu0 0.0
      %3676 = vmatpush1.msra.mxu0 0.0
      %3677 = vmatprep.subr.mxu0 0.0
      %3678 = vmatpush1.msra.mxu0 0.0
      %3679 = vmatprep.subr.mxu0 0.0
      %3680 = vmatpush1.msra.mxu0 0.0
      %3681 = vmatprep.subr.mxu0 0.0
      %3682 = vmatpush1.msra.mxu0 0.0
      %3683 = vmatprep.subr.mxu0 0.0
      %3684 = vmatpush1.msra.mxu0 0.0
      %3685 = vmatprep.subr.mxu0 0.0
      %3686 = vmatpush1.msra.mxu0 0.0
      %3687 = vmatprep.subr.mxu0 0.0
      %3688 = vmatpush1.msra.mxu0 0.0
      %3689 = vmatprep.subr.mxu0 0.0
      %3690 = vmatpush1.msra.mxu0 0.0
      %3691 = vmatprep.mubr.f32.mxu0 0.0
      %3692 = vmatmul.mubr.f32.gmra.mrb[0].mxu0 %v3160
      %v3693 = vpop.f32.mrb[0].mxu0
      %v3694 = vadd.f32 %v3152, %v3693
      %v3695 = vpop.f32.mrb[0].mxu0
      %v3696 = vadd.f32 %v3152, %v3695
      %3697 = vmatprep.mubr.f32.mxu0 0.0
      %3698 = vmatmul.mubr.f32.gmra.mrb[0].mxu0 %v3163
      %v3699 = vpop.f32.mrb[0].mxu0
      %v3700 = vadd.f32 %v3157, %v3699
      %v3701 = vpop.f32.mrb[0].mxu0
      %v3702 = vadd.f32 %v3157, %v3701
      %3703 = vdwg.mxu0
      %3704 = vmatprep.subr.mxu0 %v2361
      %3705 = vmatpush1.msra.mxu0 %v2360
      %3706 = vmatprep.subr.mxu0 %v2454
      %3707 = vmatpush1.msra.mxu0 %v2453
      %3708 = vmatprep.subr.mxu0 %v2546
      %3709 = vmatpush1.msra.mxu0 %v2545
      %3710 = vmatprep.subr.mxu0 %v2640
      %3711 = vmatpush1.msra.mxu0 %v2639
      %3712 = vmatprep.subr.mxu0 %v2734
      %3713 = vmatpush1.msra.mxu0 %v2733
      %3714 = vmatprep.subr.mxu0 %v2829
      %3715 = vmatpush1.msra.mxu0 %v2828
      %3716 = vmatprep.subr.mxu0 %v2924
      %3717 = vmatpush1.msra.mxu0 %v2923
      %3718 = vmatprep.subr.mxu0 %v3019
      %3719 = vmatpush1.msra.mxu0 %v3018
      %3720 = vmatprep.subr.mxu0 %v3114
      %3721 = vmatpush1.msra.mxu0 %v3113
      %3722 = vmatprep.subr.mxu0 0.0
      %3723 = vmatpush1.msra.mxu0 0.0
      %3724 = vmatprep.subr.mxu0 0.0
      %3725 = vmatpush1.msra.mxu0 0.0
      %3726 = vmatprep.subr.mxu0 0.0
      %3727 = vmatpush1.msra.mxu0 0.0
      %3728 = vmatprep.subr.mxu0 0.0
      %3729 = vmatpush1.msra.mxu0 0.0
      %3730 = vmatprep.subr.mxu0 0.0
      %3731 = vmatpush1.msra.mxu0 0.0
      %3732 = vmatprep.subr.mxu0 0.0
      %3733 = vmatpush1.msra.mxu0 0.0
      %3734 = vmatprep.subr.mxu0 0.0
      %3735 = vmatpush1.msra.mxu0 0.0
      %3736 = vmatprep.subr.mxu0 0.0
      %3737 = vmatpush1.msra.mxu0 0.0
      %3738 = vmatprep.subr.mxu0 0.0
      %3739 = vmatpush1.msra.mxu0 0.0
      %3740 = vmatprep.subr.mxu0 0.0
      %3741 = vmatpush1.msra.mxu0 0.0
      %3742 = vmatprep.subr.mxu0 0.0
      %3743 = vmatpush1.msra.mxu0 0.0
      %3744 = vmatprep.subr.mxu0 0.0
      %3745 = vmatpush1.msra.mxu0 0.0
      %3746 = vmatprep.subr.mxu0 0.0
      %3747 = vmatpush1.msra.mxu0 0.0
      %3748 = vmatprep.subr.mxu0 0.0
      %3749 = vmatpush1.msra.mxu0 0.0
      %3750 = vmatprep.subr.mxu0 0.0
      %3751 = vmatpush1.msra.mxu0 0.0
      %3752 = vmatprep.subr.mxu0 0.0
      %3753 = vmatpush1.msra.mxu0 0.0
      %3754 = vmatprep.subr.mxu0 0.0
      %3755 = vmatpush1.msra.mxu0 0.0
      %3756 = vmatprep.subr.mxu0 0.0
      %3757 = vmatpush1.msra.mxu0 0.0
      %3758 = vmatprep.subr.mxu0 0.0
      %3759 = vmatpush1.msra.mxu0 0.0
      %3760 = vmatprep.subr.mxu0 0.0
      %3761 = vmatpush1.msra.mxu0 0.0
      %3762 = vmatprep.subr.mxu0 0.0
      %3763 = vmatpush1.msra.mxu0 0.0
      %3764 = vmatprep.subr.mxu0 0.0
      %3765 = vmatpush1.msra.mxu0 0.0
      %3766 = vmatprep.subr.mxu0 0.0
      %3767 = vmatpush1.msra.mxu0 0.0
      %3768 = vmatprep.mubr.f32.mxu0 0.0
      %3769 = vmatmul.mubr.f32.gmra.mrb[0].mxu0 %v3160
      %v3770 = vpop.f32.mrb[0].mxu0
      %v3771 = vadd.f32 %v3152, %v3770
      %v3772 = vpop.f32.mrb[0].mxu0
      %v3773 = vadd.f32 %v3152, %v3772
      %3774 = vmatprep.mubr.f32.mxu0 0.0
      %3775 = vmatmul.mubr.f32.gmra.mrb[0].mxu0 %v3163
      %v3776 = vpop.f32.mrb[0].mxu0
      %v3777 = vadd.f32 %v3157, %v3776
      %v3778 = vpop.f32.mrb[0].mxu0
      %v3779 = vadd.f32 %v3157, %v3778
      %3780 = vdwg.mxu0
      %3781 = vmatprep.subr.mxu0 %v2363
      %3782 = vmatpush1.msra.mxu0 %v2362
      %3783 = vmatprep.subr.mxu0 %v2456
      %3784 = vmatpush1.msra.mxu0 %v2455
      %3785 = vmatprep.subr.mxu0 %v2548
      %3786 = vmatpush1.msra.mxu0 %v2547
      %3787 = vmatprep.subr.mxu0 %v2642
      %3788 = vmatpush1.msra.mxu0 %v2641
      %3789 = vmatprep.subr.mxu0 %v2736
      %3790 = vmatpush1.msra.mxu0 %v2735
      %3791 = vmatprep.subr.mxu0 %v2831
      %3792 = vmatpush1.msra.mxu0 %v2830
      %3793 = vmatprep.subr.mxu0 %v2926
      %3794 = vmatpush1.msra.mxu0 %v2925
      %3795 = vmatprep.subr.mxu0 %v3021
      %3796 = vmatpush1.msra.mxu0 %v3020
      %3797 = vmatprep.subr.mxu0 %v3116
      %3798 = vmatpush1.msra.mxu0 %v3115
      %3799 = vmatprep.subr.mxu0 0.0
      %3800 = vmatpush1.msra.mxu0 0.0
      %3801 = vmatprep.subr.mxu0 0.0
      %3802 = vmatpush1.msra.mxu0 0.0
      %3803 = vmatprep.subr.mxu0 0.0
      %3804 = vmatpush1.msra.mxu0 0.0
      %3805 = vmatprep.subr.mxu0 0.0
      %3806 = vmatpush1.msra.mxu0 0.0
      %3807 = vmatprep.subr.mxu0 0.0
      %3808 = vmatpush1.msra.mxu0 0.0
      %3809 = vmatprep.subr.mxu0 0.0
      %3810 = vmatpush1.msra.mxu0 0.0
      %3811 = vmatprep.subr.mxu0 0.0
      %3812 = vmatpush1.msra.mxu0 0.0
      %3813 = vmatprep.subr.mxu0 0.0
      %3814 = vmatpush1.msra.mxu0 0.0
      %3815 = vmatprep.subr.mxu0 0.0
      %3816 = vmatpush1.msra.mxu0 0.0
      %3817 = vmatprep.subr.mxu0 0.0
      %3818 = vmatpush1.msra.mxu0 0.0
      %3819 = vmatprep.subr.mxu0 0.0
      %3820 = vmatpush1.msra.mxu0 0.0
      %3821 = vmatprep.subr.mxu0 0.0
      %3822 = vmatpush1.msra.mxu0 0.0
      %3823 = vmatprep.subr.mxu0 0.0
      %3824 = vmatpush1.msra.mxu0 0.0
      %3825 = vmatprep.subr.mxu0 0.0
      %3826 = vmatpush1.msra.mxu0 0.0
      %3827 = vmatprep.subr.mxu0 0.0
      %3828 = vmatpush1.msra.mxu0 0.0
      %3829 = vmatprep.subr.mxu0 0.0
      %3830 = vmatpush1.msra.mxu0 0.0
      %3831 = vmatprep.subr.mxu0 0.0
      %3832 = vmatpush1.msra.mxu0 0.0
      %3833 = vmatprep.subr.mxu0 0.0
      %3834 = vmatpush1.msra.mxu0 0.0
      %3835 = vmatprep.subr.mxu0 0.0
      %3836 = vmatpush1.msra.mxu0 0.0
      %3837 = vmatprep.subr.mxu0 0.0
      %3838 = vmatpush1.msra.mxu0 0.0
      %3839 = vmatprep.subr.mxu0 0.0
      %3840 = vmatpush1.msra.mxu0 0.0
      %3841 = vmatprep.subr.mxu0 0.0
      %3842 = vmatpush1.msra.mxu0 0.0
      %3843 = vmatprep.subr.mxu0 0.0
      %3844 = vmatpush1.msra.mxu0 0.0
      %3845 = vmatprep.mubr.f32.mxu0 0.0
      %3846 = vmatmul.mubr.f32.gmra.mrb[0].mxu0 %v3160
      %v3847 = vpop.f32.mrb[0].mxu0
      %v3848 = vadd.f32 %v3152, %v3847
      %v3849 = vpop.f32.mrb[0].mxu0
      %v3850 = vadd.f32 %v3152, %v3849
      %3851 = vmatprep.mubr.f32.mxu0 0.0
      %3852 = vmatmul.mubr.f32.gmra.mrb[0].mxu0 %v3163
      %v3853 = vpop.f32.mrb[0].mxu0
      %v3854 = vadd.f32 %v3157, %v3853
      %v3855 = vpop.f32.mrb[0].mxu0
      %v3856 = vadd.f32 %v3157, %v3855
      %3857 = vdwg.mxu0
      %3858 = vmatprep.subr.mxu0 %v2365
      %3859 = vmatpush1.msra.mxu0 %v2364
      %3860 = vmatprep.subr.mxu0 %v2458
      %3861 = vmatpush1.msra.mxu0 %v2457
      %3862 = vmatprep.subr.mxu0 %v2550
      %3863 = vmatpush1.msra.mxu0 %v2549
      %3864 = vmatprep.subr.mxu0 %v2644
      %3865 = vmatpush1.msra.mxu0 %v2643
      %3866 = vmatprep.subr.mxu0 %v2738
      %3867 = vmatpush1.msra.mxu0 %v2737
      %3868 = vmatprep.subr.mxu0 %v2833
      %3869 = vmatpush1.msra.mxu0 %v2832
      %3870 = vmatprep.subr.mxu0 %v2928
      %3871 = vmatpush1.msra.mxu0 %v2927
      %3872 = vmatprep.subr.mxu0 %v3023
      %3873 = vmatpush1.msra.mxu0 %v3022
      %3874 = vmatprep.subr.mxu0 %v3118
      %3875 = vmatpush1.msra.mxu0 %v3117
      %3876 = vmatprep.subr.mxu0 0.0
      %3877 = vmatpush1.msra.mxu0 0.0
      %3878 = vmatprep.subr.mxu0 0.0
      %3879 = vmatpush1.msra.mxu0 0.0
      %3880 = vmatprep.subr.mxu0 0.0
      %3881 = vmatpush1.msra.mxu0 0.0
      %3882 = vmatprep.subr.mxu0 0.0
      %3883 = vmatpush1.msra.mxu0 0.0
      %3884 = vmatprep.subr.mxu0 0.0
      %3885 = vmatpush1.msra.mxu0 0.0
      %3886 = vmatprep.subr.mxu0 0.0
      %3887 = vmatpush1.msra.mxu0 0.0
      %3888 = vmatprep.subr.mxu0 0.0
      %3889 = vmatpush1.msra.mxu0 0.0
      %3890 = vmatprep.subr.mxu0 0.0
      %3891 = vmatpush1.msra.mxu0 0.0
      %3892 = vmatprep.subr.mxu0 0.0
      %3893 = vmatpush1.msra.mxu0 0.0
      %3894 = vmatprep.subr.mxu0 0.0
      %3895 = vmatpush1.msra.mxu0 0.0
      %3896 = vmatprep.subr.mxu0 0.0
      %3897 = vmatpush1.msra.mxu0 0.0
      %3898 = vmatprep.subr.mxu0 0.0
      %3899 = vmatpush1.msra.mxu0 0.0
      %3900 = vmatprep.subr.mxu0 0.0
      %3901 = vmatpush1.msra.mxu0 0.0
      %3902 = vmatprep.subr.mxu0 0.0
      %3903 = vmatpush1.msra.mxu0 0.0
      %3904 = vmatprep.subr.mxu0 0.0
      %3905 = vmatpush1.msra.mxu0 0.0
      %3906 = vmatprep.subr.mxu0 0.0
      %3907 = vmatpush1.msra.mxu0 0.0
      %3908 = vmatprep.subr.mxu0 0.0
      %3909 = vmatpush1.msra.mxu0 0.0
      %3910 = vmatprep.subr.mxu0 0.0
      %3911 = vmatpush1.msra.mxu0 0.0
      %3912 = vmatprep.subr.mxu0 0.0
      %3913 = vmatpush1.msra.mxu0 0.0
      %3914 = vmatprep.subr.mxu0 0.0
      %3915 = vmatpush1.msra.mxu0 0.0
      %3916 = vmatprep.subr.mxu0 0.0
      %3917 = vmatpush1.msra.mxu0 0.0
      %3918 = vmatprep.subr.mxu0 0.0
      %3919 = vmatpush1.msra.mxu0 0.0
      %3920 = vmatprep.subr.mxu0 0.0
      %3921 = vmatpush1.msra.mxu0 0.0
      %3922 = vmatprep.mubr.f32.mxu0 0.0
      %3923 = vmatmul.mubr.f32.gmra.mrb[0].mxu0 %v3160
      %v3924 = vpop.f32.mrb[0].mxu0
      %v3925 = vadd.f32 %v3152, %v3924
      %v3926 = vpop.f32.mrb[0].mxu0
      %v3927 = vadd.f32 %v3152, %v3926
      %3928 = vmatprep.mubr.f32.mxu0 0.0
      %3929 = vmatmul.mubr.f32.gmra.mrb[0].mxu0 %v3163
      %v3930 = vpop.f32.mrb[0].mxu0
      %v3931 = vadd.f32 %v3157, %v3930
      %v3932 = vpop.f32.mrb[0].mxu0
      %v3933 = vadd.f32 %v3157, %v3932
      %3934 = vdwg.mxu0
      %3935 = vmatprep.subr.mxu0 %v2367
      %3936 = vmatpush1.msra.mxu0 %v2366
      %3937 = vmatprep.subr.mxu0 %v2460
      %3938 = vmatpush1.msra.mxu0 %v2459
      %3939 = vmatprep.subr.mxu0 %v2552
      %3940 = vmatpush1.msra.mxu0 %v2551
      %3941 = vmatprep.subr.mxu0 %v2646
      %3942 = vmatpush1.msra.mxu0 %v2645
      %3943 = vmatprep.subr.mxu0 %v2740
      %3944 = vmatpush1.msra.mxu0 %v2739
      %3945 = vmatprep.subr.mxu0 %v2835
      %3946 = vmatpush1.msra.mxu0 %v2834
      %3947 = vmatprep.subr.mxu0 %v2930
      %3948 = vmatpush1.msra.mxu0 %v2929
      %3949 = vmatprep.subr.mxu0 %v3025
      %3950 = vmatpush1.msra.mxu0 %v3024
      %3951 = vmatprep.subr.mxu0 %v3120
      %3952 = vmatpush1.msra.mxu0 %v3119
      %3953 = vmatprep.subr.mxu0 0.0
      %3954 = vmatpush1.msra.mxu0 0.0
      %3955 = vmatprep.subr.mxu0 0.0
      %3956 = vmatpush1.msra.mxu0 0.0
      %3957 = vmatprep.subr.mxu0 0.0
      %3958 = vmatpush1.msra.mxu0 0.0
      %3959 = vmatprep.subr.mxu0 0.0
      %3960 = vmatpush1.msra.mxu0 0.0
      %3961 = vmatprep.subr.mxu0 0.0
      %3962 = vmatpush1.msra.mxu0 0.0
      %3963 = vmatprep.subr.mxu0 0.0
      %3964 = vmatpush1.msra.mxu0 0.0
      %3965 = vmatprep.subr.mxu0 0.0
      %3966 = vmatpush1.msra.mxu0 0.0
      %3967 = vmatprep.subr.mxu0 0.0
      %3968 = vmatpush1.msra.mxu0 0.0
      %3969 = vmatprep.subr.mxu0 0.0
      %3970 = vmatpush1.msra.mxu0 0.0
      %3971 = vmatprep.subr.mxu0 0.0
      %3972 = vmatpush1.msra.mxu0 0.0
      %3973 = vmatprep.subr.mxu0 0.0
      %3974 = vmatpush1.msra.mxu0 0.0
      %3975 = vmatprep.subr.mxu0 0.0
      %3976 = vmatpush1.msra.mxu0 0.0
      %3977 = vmatprep.subr.mxu0 0.0
      %3978 = vmatpush1.msra.mxu0 0.0
      %3979 = vmatprep.subr.mxu0 0.0
      %3980 = vmatpush1.msra.mxu0 0.0
      %3981 = vmatprep.subr.mxu0 0.0
      %3982 = vmatpush1.msra.mxu0 0.0
      %3983 = vmatprep.subr.mxu0 0.0
      %3984 = vmatpush1.msra.mxu0 0.0
      %3985 = vmatprep.subr.mxu0 0.0
      %3986 = vmatpush1.msra.mxu0 0.0
      %3987 = vmatprep.subr.mxu0 0.0
      %3988 = vmatpush1.msra.mxu0 0.0
      %3989 = vmatprep.subr.mxu0 0.0
      %3990 = vmatpush1.msra.mxu0 0.0
      %3991 = vmatprep.subr.mxu0 0.0
      %3992 = vmatpush1.msra.mxu0 0.0
      %3993 = vmatprep.subr.mxu0 0.0
      %3994 = vmatpush1.msra.mxu0 0.0
      %3995 = vmatprep.subr.mxu0 0.0
      %3996 = vmatpush1.msra.mxu0 0.0
      %3997 = vmatprep.subr.mxu0 0.0
      %3998 = vmatpush1.msra.mxu0 0.0
      %3999 = vmatprep.mubr.f32.mxu0 0.0
      %4000 = vmatmul.mubr.f32.gmra.mrb[0].mxu0 %v3160
      %v4001 = vpop.f32.mrb[0].mxu0
      %v4002 = vadd.f32 %v3152, %v4001
      %v4003 = vpop.f32.mrb[0].mxu0
      %v4004 = vadd.f32 %v3152, %v4003
      %4005 = vmatprep.mubr.f32.mxu0 0.0
      %4006 = vmatmul.mubr.f32.gmra.mrb[0].mxu0 %v3163
      %v4007 = vpop.f32.mrb[0].mxu0
      %v4008 = vadd.f32 %v3157, %v4007
      %v4009 = vpop.f32.mrb[0].mxu0
      %v4010 = vadd.f32 %v3157, %v4009
      %4011 = vdwg.mxu0
      %4012 = vmatprep.subr.mxu0 0.0
      %4013 = vmatpush1.msra.mxu0 %v2368
      %4014 = vmatprep.subr.mxu0 0.0
      %4015 = vmatpush1.msra.mxu0 %v2438
      %4016 = vmatprep.subr.mxu0 0.0
      %4017 = vmatpush1.msra.mxu0 %v2529
      %4018 = vmatprep.subr.mxu0 0.0
      %4019 = vmatpush1.msra.mxu0 %v2647
      %4020 = vmatprep.subr.mxu0 0.0
      %4021 = vmatpush1.msra.mxu0 %v2741
      %4022 = vmatprep.subr.mxu0 0.0
      %4023 = vmatpush1.msra.mxu0 %v2836
      %4024 = vmatprep.subr.mxu0 0.0
      %4025 = vmatpush1.msra.mxu0 %v2931
      %4026 = vmatprep.subr.mxu0 0.0
      %4027 = vmatpush1.msra.mxu0 %v3026
      %4028 = vmatprep.subr.mxu0 0.0
      %4029 = vmatpush1.msra.mxu0 %v3121
      %4030 = vmatprep.subr.mxu0 0.0
      %4031 = vmatpush1.msra.mxu0 0.0
      %4032 = vmatprep.subr.mxu0 0.0
      %4033 = vmatpush1.msra.mxu0 0.0
      %4034 = vmatprep.subr.mxu0 0.0
      %4035 = vmatpush1.msra.mxu0 0.0
      %4036 = vmatprep.subr.mxu0 0.0
      %4037 = vmatpush1.msra.mxu0 0.0
      %4038 = vmatprep.subr.mxu0 0.0
      %4039 = vmatpush1.msra.mxu0 0.0
      %4040 = vmatprep.subr.mxu0 0.0
      %4041 = vmatpush1.msra.mxu0 0.0
      %4042 = vmatprep.subr.mxu0 0.0
      %4043 = vmatpush1.msra.mxu0 0.0
      %4044 = vmatprep.subr.mxu0 0.0
      %4045 = vmatpush1.msra.mxu0 0.0
      %4046 = vmatprep.subr.mxu0 0.0
      %4047 = vmatpush1.msra.mxu0 0.0
      %4048 = vmatprep.subr.mxu0 0.0
      %4049 = vmatpush1.msra.mxu0 0.0
      %4050 = vmatprep.subr.mxu0 0.0
      %4051 = vmatpush1.msra.mxu0 0.0
      %4052 = vmatprep.subr.mxu0 0.0
      %4053 = vmatpush1.msra.mxu0 0.0
      %4054 = vmatprep.subr.mxu0 0.0
      %4055 = vmatpush1.msra.mxu0 0.0
      %4056 = vmatprep.subr.mxu0 0.0
      %4057 = vmatpush1.msra.mxu0 0.0
      %4058 = vmatprep.subr.mxu0 0.0
      %4059 = vmatpush1.msra.mxu0 0.0
      %4060 = vmatprep.subr.mxu0 0.0
      %4061 = vmatpush1.msra.mxu0 0.0
      %4062 = vmatprep.subr.mxu0 0.0
      %4063 = vmatpush1.msra.mxu0 0.0
      %4064 = vmatprep.subr.mxu0 0.0
      %4065 = vmatpush1.msra.mxu0 0.0
      %4066 = vmatprep.subr.mxu0 0.0
      %4067 = vmatpush1.msra.mxu0 0.0
      %4068 = vmatprep.subr.mxu0 0.0
      %4069 = vmatpush1.msra.mxu0 0.0
      %4070 = vmatprep.subr.mxu0 0.0
      %4071 = vmatpush1.msra.mxu0 0.0
      %4072 = vmatprep.subr.mxu0 0.0
      %4073 = vmatpush1.msra.mxu0 0.0
      %4074 = vmatprep.subr.mxu0 0.0
      %4075 = vmatpush1.msra.mxu0 0.0
      %4076 = vmatprep.mubr.f32.mxu0 0.0
      %4077 = vmatmul.mubr.f32.gmra.mrb[0].mxu0 %v3160
      %v4078 = vpop.f32.mrb[0].mxu0
      %v4079 = vadd.f32 %v3152, %v4078
      %v4080 = vpop.f32.mrb[0].mxu0
      %4081 = vmatprep.mubr.f32.mxu0 0.0
      %4082 = vmatmul.mubr.f32.gmra.mrb[0].mxu0 %v3163
      %v4083 = vpop.f32.mrb[0].mxu0
      %v4084 = vadd.f32 %v3157, %v4083
      %v4085 = vpop.f32.mrb[0].mxu0
      %4086 = vdwg.mxu0
      %v4087 = vmax.f32 %v3232, 0.0
      %v4088 = vmax.f32 %v3234, 0.0
      %v4089 = vmax.f32 %v3309, 0.0
      %v4090 = vmax.f32 %v3311, 0.0
      %v4091 = vmax.f32 %v3386, 0.0
      %v4092 = vmax.f32 %v3388, 0.0
      %v4093 = vmax.f32 %v3463, 0.0
      %v4094 = vmax.f32 %v3465, 0.0
      %v4095 = vmax.f32 %v3540, 0.0
      %v4096 = vmax.f32 %v3542, 0.0
      %v4097 = vmax.f32 %v3617, 0.0
      %v4098 = vmax.f32 %v3619, 0.0
      %v4099 = vmax.f32 %v3694, 0.0
      %v4100 = vmax.f32 %v3696, 0.0
      %v4101 = vmax.f32 %v3771, 0.0
      %v4102 = vmax.f32 %v3773, 0.0
      %v4103 = vmax.f32 %v3848, 0.0
      %v4104 = vmax.f32 %v3850, 0.0
      %v4105 = vmax.f32 %v3925, 0.0
      %v4106 = vmax.f32 %v3927, 0.0
      %v4107 = vmax.f32 %v4002, 0.0
      %v4108 = vmax.f32 %v4004, 0.0
      %v4109 = vmax.f32 %v4079, 0.0
      %v4110 = vmax.f32 %v3238, 0.0
      %v4111 = vmax.f32 %v3240, 0.0
      %v4112 = vmax.f32 %v3315, 0.0
      %v4113 = vmax.f32 %v3317, 0.0
      %v4114 = vmax.f32 %v3392, 0.0
      %v4115 = vmax.f32 %v3394, 0.0
      %v4116 = vmax.f32 %v3469, 0.0
      %v4117 = vmax.f32 %v3471, 0.0
      %v4118 = vmax.f32 %v3546, 0.0
      %v4119 = vmax.f32 %v3548, 0.0
      %v4120 = vmax.f32 %v3623, 0.0
      %v4121 = vmax.f32 %v3625, 0.0
      %v4122 = vmax.f32 %v3700, 0.0
      %v4123 = vmax.f32 %v3702, 0.0
      %v4124 = vmax.f32 %v3777, 0.0
      %v4125 = vmax.f32 %v3779, 0.0
      %v4126 = vmax.f32 %v3854, 0.0
      %v4127 = vmax.f32 %v3856, 0.0
      %v4128 = vmax.f32 %v3931, 0.0
      %v4129 = vmax.f32 %v3933, 0.0
      %v4130 = vmax.f32 %v4008, 0.0
      %v4131 = vmax.f32 %v4010, 0.0
      %v4132 = vmax.f32 %v4084, 0.0
      %4179 = vrot.lane.b32.xlu0 %v4087, 126
      %v4180 = vpop.permute.xlu0 %4179
      %4181 = vrot.lane.b32.xlu0 %v4088, 126
      %v4182 = vpop.permute.xlu0 %4181
      %4183 = vrot.lane.b32.xlu0 %v4089, 126
      %v4184 = vpop.permute.xlu0 %4183
      %4185 = vrot.lane.b32.xlu0 %v4090, 126
      %v4186 = vpop.permute.xlu0 %4185
      %4187 = vrot.lane.b32.xlu0 %v4091, 126
      %v4188 = vpop.permute.xlu0 %4187
      %4189 = vrot.lane.b32.xlu0 %v4092, 126
      %v4190 = vpop.permute.xlu0 %4189
      %4191 = vrot.lane.b32.xlu0 %v4093, 126
      %v4192 = vpop.permute.xlu0 %4191
      %4193 = vrot.lane.b32.xlu0 %v4094, 126
      %v4194 = vpop.permute.xlu0 %4193
      %4195 = vrot.lane.b32.xlu0 %v4095, 126
      %v4196 = vpop.permute.xlu0 %4195
      %4197 = vrot.lane.b32.xlu0 %v4096, 126
      %v4198 = vpop.permute.xlu0 %4197
      %4199 = vrot.lane.b32.xlu0 %v4097, 126
      %v4200 = vpop.permute.xlu0 %4199
      %4201 = vrot.lane.b32.xlu0 %v4098, 126
      %v4202 = vpop.permute.xlu0 %4201
      %4203 = vrot.lane.b32.xlu0 %v4099, 126
      %v4204 = vpop.permute.xlu0 %4203
      %4205 = vrot.lane.b32.xlu0 %v4100, 126
      %v4206 = vpop.permute.xlu0 %4205
      %4207 = vrot.lane.b32.xlu0 %v4101, 126
      %v4208 = vpop.permute.xlu0 %4207
      %4209 = vrot.lane.b32.xlu0 %v4102, 126
      %v4210 = vpop.permute.xlu0 %4209
      %4211 = vrot.lane.b32.xlu0 %v4103, 126
      %v4212 = vpop.permute.xlu0 %4211
      %4213 = vrot.lane.b32.xlu0 %v4104, 126
      %v4214 = vpop.permute.xlu0 %4213
      %4215 = vrot.lane.b32.xlu0 %v4105, 126
      %v4216 = vpop.permute.xlu0 %4215
      %4217 = vrot.lane.b32.xlu0 %v4106, 126
      %v4218 = vpop.permute.xlu0 %4217
      %4219 = vrot.lane.b32.xlu0 %v4107, 126
      %v4220 = vpop.permute.xlu0 %4219
      %4221 = vrot.lane.b32.xlu0 %v4108, 126
      %v4222 = vpop.permute.xlu0 %4221
      %4223 = vrot.lane.b32.xlu0 %v4109, 126
      %v4224 = vpop.permute.xlu0 %4223
      %4225 = vrot.lane.b32.xlu0 %v4110, 126
      %v4226 = vpop.permute.xlu0 %4225
      %4227 = vrot.lane.b32.xlu0 %v4111, 126
      %v4228 = vpop.permute.xlu0 %4227
      %4229 = vrot.lane.b32.xlu0 %v4112, 126
      %v4230 = vpop.permute.xlu0 %4229
      %4231 = vrot.lane.b32.xlu0 %v4113, 126
      %v4232 = vpop.permute.xlu0 %4231
      %4233 = vrot.lane.b32.xlu0 %v4114, 126
      %v4234 = vpop.permute.xlu0 %4233
      %4235 = vrot.lane.b32.xlu0 %v4115, 126
      %v4236 = vpop.permute.xlu0 %4235
      %4237 = vrot.lane.b32.xlu0 %v4116, 126
      %v4238 = vpop.permute.xlu0 %4237
      %4239 = vrot.lane.b32.xlu0 %v4117, 126
      %v4240 = vpop.permute.xlu0 %4239
      %4241 = vrot.lane.b32.xlu0 %v4118, 126
      %v4242 = vpop.permute.xlu0 %4241
      %4243 = vrot.lane.b32.xlu0 %v4119, 126
      %v4244 = vpop.permute.xlu0 %4243
      %4245 = vrot.lane.b32.xlu0 %v4120, 126
      %v4246 = vpop.permute.xlu0 %4245
      %4247 = vrot.lane.b32.xlu0 %v4121, 126
      %v4248 = vpop.permute.xlu0 %4247
      %4249 = vrot.lane.b32.xlu0 %v4122, 126
      %v4250 = vpop.permute.xlu0 %4249
      %4251 = vrot.lane.b32.xlu0 %v4123, 126
      %v4252 = vpop.permute.xlu0 %4251
      %4253 = vrot.lane.b32.xlu0 %v4124, 126
      %v4254 = vpop.permute.xlu0 %4253
      %4255 = vrot.lane.b32.xlu0 %v4125, 126
      %v4256 = vpop.permute.xlu0 %4255
      %4257 = vrot.lane.b32.xlu0 %v4126, 126
      %v4258 = vpop.permute.xlu0 %4257
      %4259 = vrot.lane.b32.xlu0 %v4127, 126
      %v4260 = vpop.permute.xlu0 %4259
      %4261 = vrot.lane.b32.xlu0 %v4128, 126
      %v4262 = vpop.permute.xlu0 %4261
      %4263 = vrot.lane.b32.xlu0 %v4129, 126
      %v4264 = vpop.permute.xlu0 %4263
      %4265 = vrot.lane.b32.xlu0 %v4130, 126
      %v4266 = vpop.permute.xlu0 %4265
      %4267 = vrot.lane.b32.xlu0 %v4131, 126
      %v4268 = vpop.permute.xlu0 %4267
      %4269 = vrot.lane.b32.xlu0 %v4132, 126
      %v4270 = vpop.permute.xlu0 %4269
      %v4271 = vsel %vm525, %v4180, %v4182
      %v4272 = vsel %vm525, %v4182, %v4184
      %v4273 = vsel %vm525, %v4184, %v4186
      %v4274 = vsel %vm525, %v4186, %v4188
      %v4275 = vsel %vm525, %v4188, %v4190
      %v4276 = vsel %vm525, %v4190, %v4192
      %v4277 = vsel %vm525, %v4192, %v4194
      %v4278 = vsel %vm525, %v4194, %v4196
      %v4279 = vsel %vm525, %v4196, %v4198
      %v4280 = vsel %vm525, %v4198, %v4200
      %v4281 = vsel %vm525, %v4200, %v4202
      %v4282 = vsel %vm525, %v4202, %v4204
      %v4283 = vsel %vm525, %v4204, %v4206
      %v4284 = vsel %vm525, %v4206, %v4208
      %v4285 = vsel %vm525, %v4208, %v4210
      %v4286 = vsel %vm525, %v4210, %v4212
      %v4287 = vsel %vm525, %v4212, %v4214
      %v4288 = vsel %vm525, %v4214, %v4216
      %v4289 = vsel %vm525, %v4216, %v4218
      %v4290 = vsel %vm525, %v4218, %v4220
      %v4291 = vsel %vm525, %v4220, %v4222
      %v4292 = vsel %vm525, %v4222, %v4224
      %v4293 = vsel %vm525, %v4226, %v4228
      %v4294 = vsel %vm525, %v4228, %v4230
      %v4295 = vsel %vm525, %v4230, %v4232
      %v4296 = vsel %vm525, %v4232, %v4234
      %v4297 = vsel %vm525, %v4234, %v4236
      %v4298 = vsel %vm525, %v4236, %v4238
      %v4299 = vsel %vm525, %v4238, %v4240
      %v4300 = vsel %vm525, %v4240, %v4242
      %v4301 = vsel %vm525, %v4242, %v4244
      %v4302 = vsel %vm525, %v4244, %v4246
      %v4303 = vsel %vm525, %v4246, %v4248
      %v4304 = vsel %vm525, %v4248, %v4250
      %v4305 = vsel %vm525, %v4250, %v4252
      %v4306 = vsel %vm525, %v4252, %v4254
      %v4307 = vsel %vm525, %v4254, %v4256
      %v4308 = vsel %vm525, %v4256, %v4258
      %v4309 = vsel %vm525, %v4258, %v4260
      %v4310 = vsel %vm525, %v4260, %v4262
      %v4311 = vsel %vm525, %v4262, %v4264
      %v4312 = vsel %vm525, %v4264, %v4266
      %v4313 = vsel %vm525, %v4266, %v4268
      %v4314 = vsel %vm525, %v4268, %v4270
      %v4361 = vmax.f32 %v4087, %v4271
      %v4362 = vmax.f32 %v4088, %v4272
      %v4363 = vmax.f32 %v4089, %v4273
      %v4364 = vmax.f32 %v4090, %v4274
      %v4365 = vmax.f32 %v4091, %v4275
      %v4366 = vmax.f32 %v4092, %v4276
      %v4367 = vmax.f32 %v4093, %v4277
      %v4368 = vmax.f32 %v4094, %v4278
      %v4369 = vmax.f32 %v4095, %v4279
      %v4370 = vmax.f32 %v4096, %v4280
      %v4371 = vmax.f32 %v4097, %v4281
      %v4372 = vmax.f32 %v4098, %v4282
      %v4373 = vmax.f32 %v4099, %v4283
      %v4374 = vmax.f32 %v4100, %v4284
      %v4375 = vmax.f32 %v4101, %v4285
      %v4376 = vmax.f32 %v4102, %v4286
      %v4377 = vmax.f32 %v4103, %v4287
      %v4378 = vmax.f32 %v4104, %v4288
      %v4379 = vmax.f32 %v4105, %v4289
      %v4380 = vmax.f32 %v4106, %v4290
      %v4381 = vmax.f32 %v4107, %v4291
      %v4382 = vmax.f32 %v4108, %v4292
      %v4383 = vmax.f32 %v4109, %v4224
      %v4384 = vmax.f32 %v4110, %v4293
      %v4385 = vmax.f32 %v4111, %v4294
      %v4386 = vmax.f32 %v4112, %v4295
      %v4387 = vmax.f32 %v4113, %v4296
      %v4388 = vmax.f32 %v4114, %v4297
      %v4389 = vmax.f32 %v4115, %v4298
      %v4390 = vmax.f32 %v4116, %v4299
      %v4391 = vmax.f32 %v4117, %v4300
      %v4392 = vmax.f32 %v4118, %v4301
      %v4393 = vmax.f32 %v4119, %v4302
      %v4394 = vmax.f32 %v4120, %v4303
      %v4395 = vmax.f32 %v4121, %v4304
      %v4396 = vmax.f32 %v4122, %v4305
      %v4397 = vmax.f32 %v4123, %v4306
      %v4398 = vmax.f32 %v4124, %v4307
      %v4399 = vmax.f32 %v4125, %v4308
      %v4400 = vmax.f32 %v4126, %v4309
      %v4401 = vmax.f32 %v4127, %v4310
      %v4402 = vmax.f32 %v4128, %v4311
      %v4403 = vmax.f32 %v4129, %v4312
      %v4404 = vmax.f32 %v4130, %v4313
      %v4405 = vmax.f32 %v4131, %v4314
      %v4406 = vmax.f32 %v4132, %v4270
      %4453 = vrot.lane.b32.xlu0 %v4361, 92
      %v4454 = vpop.permute.xlu0 %4453
      %4455 = vrot.lane.b32.xlu0 %v4362, 92
      %v4456 = vpop.permute.xlu0 %4455
      %4457 = vrot.lane.b32.xlu0 %v4363, 92
      %v4458 = vpop.permute.xlu0 %4457
      %4459 = vrot.lane.b32.xlu0 %v4364, 92
      %v4460 = vpop.permute.xlu0 %4459
      %4461 = vrot.lane.b32.xlu0 %v4365, 92
      %v4462 = vpop.permute.xlu0 %4461
      %4463 = vrot.lane.b32.xlu0 %v4366, 92
      %v4464 = vpop.permute.xlu0 %4463
      %4465 = vrot.lane.b32.xlu0 %v4367, 92
      %v4466 = vpop.permute.xlu0 %4465
      %4467 = vrot.lane.b32.xlu0 %v4368, 92
      %v4468 = vpop.permute.xlu0 %4467
      %4469 = vrot.lane.b32.xlu0 %v4369, 92
      %v4470 = vpop.permute.xlu0 %4469
      %4471 = vrot.lane.b32.xlu0 %v4370, 92
      %v4472 = vpop.permute.xlu0 %4471
      %4473 = vrot.lane.b32.xlu0 %v4371, 92
      %v4474 = vpop.permute.xlu0 %4473
      %4475 = vrot.lane.b32.xlu0 %v4372, 92
      %v4476 = vpop.permute.xlu0 %4475
      %4477 = vrot.lane.b32.xlu0 %v4373, 92
      %v4478 = vpop.permute.xlu0 %4477
      %4479 = vrot.lane.b32.xlu0 %v4374, 92
      %v4480 = vpop.permute.xlu0 %4479
      %4481 = vrot.lane.b32.xlu0 %v4375, 92
      %v4482 = vpop.permute.xlu0 %4481
      %4483 = vrot.lane.b32.xlu0 %v4376, 92
      %v4484 = vpop.permute.xlu0 %4483
      %4485 = vrot.lane.b32.xlu0 %v4377, 92
      %v4486 = vpop.permute.xlu0 %4485
      %4487 = vrot.lane.b32.xlu0 %v4378, 92
      %v4488 = vpop.permute.xlu0 %4487
      %4489 = vrot.lane.b32.xlu0 %v4379, 92
      %v4490 = vpop.permute.xlu0 %4489
      %4491 = vrot.lane.b32.xlu0 %v4380, 92
      %v4492 = vpop.permute.xlu0 %4491
      %4493 = vrot.lane.b32.xlu0 %v4381, 92
      %v4494 = vpop.permute.xlu0 %4493
      %4495 = vrot.lane.b32.xlu0 %v4382, 92
      %v4496 = vpop.permute.xlu0 %4495
      %4497 = vrot.lane.b32.xlu0 %v4383, 92
      %v4498 = vpop.permute.xlu0 %4497
      %4499 = vrot.lane.b32.xlu0 %v4384, 92
      %v4500 = vpop.permute.xlu0 %4499
      %4501 = vrot.lane.b32.xlu0 %v4385, 92
      %v4502 = vpop.permute.xlu0 %4501
      %4503 = vrot.lane.b32.xlu0 %v4386, 92
      %v4504 = vpop.permute.xlu0 %4503
      %4505 = vrot.lane.b32.xlu0 %v4387, 92
      %v4506 = vpop.permute.xlu0 %4505
      %4507 = vrot.lane.b32.xlu0 %v4388, 92
      %v4508 = vpop.permute.xlu0 %4507
      %4509 = vrot.lane.b32.xlu0 %v4389, 92
      %v4510 = vpop.permute.xlu0 %4509
      %4511 = vrot.lane.b32.xlu0 %v4390, 92
      %v4512 = vpop.permute.xlu0 %4511
      %4513 = vrot.lane.b32.xlu0 %v4391, 92
      %v4514 = vpop.permute.xlu0 %4513
      %4515 = vrot.lane.b32.xlu0 %v4392, 92
      %v4516 = vpop.permute.xlu0 %4515
      %4517 = vrot.lane.b32.xlu0 %v4393, 92
      %v4518 = vpop.permute.xlu0 %4517
      %4519 = vrot.lane.b32.xlu0 %v4394, 92
      %v4520 = vpop.permute.xlu0 %4519
      %4521 = vrot.lane.b32.xlu0 %v4395, 92
      %v4522 = vpop.permute.xlu0 %4521
      %4523 = vrot.lane.b32.xlu0 %v4396, 92
      %v4524 = vpop.permute.xlu0 %4523
      %4525 = vrot.lane.b32.xlu0 %v4397, 92
      %v4526 = vpop.permute.xlu0 %4525
      %4527 = vrot.lane.b32.xlu0 %v4398, 92
      %v4528 = vpop.permute.xlu0 %4527
      %4529 = vrot.lane.b32.xlu0 %v4399, 92
      %v4530 = vpop.permute.xlu0 %4529
      %4531 = vrot.lane.b32.xlu0 %v4400, 92
      %v4532 = vpop.permute.xlu0 %4531
      %4533 = vrot.lane.b32.xlu0 %v4401, 92
      %v4534 = vpop.permute.xlu0 %4533
      %4535 = vrot.lane.b32.xlu0 %v4402, 92
      %v4536 = vpop.permute.xlu0 %4535
      %4537 = vrot.lane.b32.xlu0 %v4403, 92
      %v4538 = vpop.permute.xlu0 %4537
      %4539 = vrot.lane.b32.xlu0 %v4404, 92
      %v4540 = vpop.permute.xlu0 %4539
      %4541 = vrot.lane.b32.xlu0 %v4405, 92
      %v4542 = vpop.permute.xlu0 %4541
      %4543 = vrot.lane.b32.xlu0 %v4406, 92
      %v4544 = vpop.permute.xlu0 %4543
      %v4545 = vsel %vm909, %v4454, %v4456
      %v4546 = vsel %vm909, %v4456, %v4458
      %v4547 = vsel %vm909, %v4458, %v4460
      %v4548 = vsel %vm909, %v4460, %v4462
      %v4549 = vsel %vm909, %v4462, %v4464
      %v4550 = vsel %vm909, %v4464, %v4466
      %v4551 = vsel %vm909, %v4466, %v4468
      %v4552 = vsel %vm909, %v4468, %v4470
      %v4553 = vsel %vm909, %v4470, %v4472
      %v4554 = vsel %vm909, %v4472, %v4474
      %v4555 = vsel %vm909, %v4474, %v4476
      %v4556 = vsel %vm909, %v4476, %v4478
      %v4557 = vsel %vm909, %v4478, %v4480
      %v4558 = vsel %vm909, %v4480, %v4482
      %v4559 = vsel %vm909, %v4482, %v4484
      %v4560 = vsel %vm909, %v4484, %v4486
      %v4561 = vsel %vm909, %v4486, %v4488
      %v4562 = vsel %vm909, %v4488, %v4490
      %v4563 = vsel %vm909, %v4490, %v4492
      %v4564 = vsel %vm909, %v4492, %v4494
      %v4565 = vsel %vm909, %v4494, %v4496
      %v4566 = vsel %vm909, %v4496, %v4498
      %v4567 = vsel %vm909, %v4500, %v4502
      %v4568 = vsel %vm909, %v4502, %v4504
      %v4569 = vsel %vm909, %v4504, %v4506
      %v4570 = vsel %vm909, %v4506, %v4508
      %v4571 = vsel %vm909, %v4508, %v4510
      %v4572 = vsel %vm909, %v4510, %v4512
      %v4573 = vsel %vm909, %v4512, %v4514
      %v4574 = vsel %vm909, %v4514, %v4516
      %v4575 = vsel %vm909, %v4516, %v4518
      %v4576 = vsel %vm909, %v4518, %v4520
      %v4577 = vsel %vm909, %v4520, %v4522
      %v4578 = vsel %vm909, %v4522, %v4524
      %v4579 = vsel %vm909, %v4524, %v4526
      %v4580 = vsel %vm909, %v4526, %v4528
      %v4581 = vsel %vm909, %v4528, %v4530
      %v4582 = vsel %vm909, %v4530, %v4532
      %v4583 = vsel %vm909, %v4532, %v4534
      %v4584 = vsel %vm909, %v4534, %v4536
      %v4585 = vsel %vm909, %v4536, %v4538
      %v4586 = vsel %vm909, %v4538, %v4540
      %v4587 = vsel %vm909, %v4540, %v4542
      %v4588 = vsel %vm909, %v4542, %v4544
      %v4635 = vmax.f32 %v4361, %v4545
      %v4636 = vmax.f32 %v4362, %v4546
      %v4637 = vmax.f32 %v4363, %v4547
      %v4638 = vmax.f32 %v4364, %v4548
      %v4639 = vmax.f32 %v4365, %v4549
      %v4640 = vmax.f32 %v4366, %v4550
      %v4641 = vmax.f32 %v4367, %v4551
      %v4642 = vmax.f32 %v4368, %v4552
      %v4643 = vmax.f32 %v4369, %v4553
      %v4644 = vmax.f32 %v4370, %v4554
      %v4645 = vmax.f32 %v4371, %v4555
      %v4646 = vmax.f32 %v4372, %v4556
      %v4647 = vmax.f32 %v4373, %v4557
      %v4648 = vmax.f32 %v4374, %v4558
      %v4649 = vmax.f32 %v4375, %v4559
      %v4650 = vmax.f32 %v4376, %v4560
      %v4651 = vmax.f32 %v4377, %v4561
      %v4652 = vmax.f32 %v4378, %v4562
      %v4653 = vmax.f32 %v4379, %v4563
      %v4654 = vmax.f32 %v4380, %v4564
      %v4655 = vmax.f32 %v4381, %v4565
      %v4656 = vmax.f32 %v4382, %v4566
      %v4657 = vmax.f32 %v4383, %v4498
      %v4658 = vmax.f32 %v4384, %v4567
      %v4659 = vmax.f32 %v4385, %v4568
      %v4660 = vmax.f32 %v4386, %v4569
      %v4661 = vmax.f32 %v4387, %v4570
      %v4662 = vmax.f32 %v4388, %v4571
      %v4663 = vmax.f32 %v4389, %v4572
      %v4664 = vmax.f32 %v4390, %v4573
      %v4665 = vmax.f32 %v4391, %v4574
      %v4666 = vmax.f32 %v4392, %v4575
      %v4667 = vmax.f32 %v4393, %v4576
      %v4668 = vmax.f32 %v4394, %v4577
      %v4669 = vmax.f32 %v4395, %v4578
      %v4670 = vmax.f32 %v4396, %v4579
      %v4671 = vmax.f32 %v4397, %v4580
      %v4672 = vmax.f32 %v4398, %v4581
      %v4673 = vmax.f32 %v4399, %v4582
      %v4674 = vmax.f32 %v4400, %v4583
      %v4675 = vmax.f32 %v4401, %v4584
      %v4676 = vmax.f32 %v4402, %v4585
      %v4677 = vmax.f32 %v4403, %v4586
      %v4678 = vmax.f32 %v4404, %v4587
      %v4679 = vmax.f32 %v4405, %v4588
      %v4680 = vmax.f32 %v4406, %v4544
      %v4681 = vld [vmem:[%s6] sm:$0xff]
      %v4682 = vld [vmem:[%s6 + $0x8] sm:$0xff]
      %v4683 = vld [vmem:[%s6 + $0x10] sm:$0xff]
      %v4684 = vld [vmem:[%s6 + $0x18] sm:$0xff]
      %v4685 = vld [vmem:[%s6 + $0x20] sm:$0xff]
      %v4686 = vld [vmem:[%s6 + $0x28] sm:$0xff]
      %v4687 = vld [vmem:[%s6 + $0x30] sm:$0xff]
      %v4688 = vld [vmem:[%s6 + $0x38] sm:$0xff]
      %v4689 = vld [vmem:[%s6 + $0x40] sm:$0xff]
      %v4690 = vld [vmem:[%s6 + $0x48] sm:$0xff]
      %v4691 = vld [vmem:[%s6 + $0x50] sm:$0xff]
      %v4692 = vld [vmem:[%s6 + $0x58] sm:$0xff]
      %v4693 = vld [vmem:[%s6 + $0x60] sm:$0xff]
      %v4694 = vld [vmem:[%s6 + $0x68] sm:$0xff]
      %v4695 = vld [vmem:[%s6 + $0x70] sm:$0xff]
      %v4696 = vld [vmem:[%s6 + $0x78] sm:$0xff]
      %v4697 = vld [vmem:[%s6 + $0x80] sm:$0xff]
      %v4698 = vld [vmem:[%s6 + $0x88] sm:$0xff]
      %v4699 = vld [vmem:[%s6 + $0x90] sm:$0xff]
      %v4700 = vld [vmem:[%s6 + $0x98] sm:$0xff]
      %v4701 = vld [vmem:[%s6 + $0xa0] sm:$0xff]
      %v4702 = vld [vmem:[%s6 + $0xa8] sm:$0xff]
      %v4703 = vld [vmem:[%s6 + $0xb0] sm:$0xff]
      %v4704 = vld [vmem:[%s6 + $0xb8] sm:$0xff]
      %v4705 = vld [vmem:[%s6 + $0xc0] sm:$0xff]
      %v4706 = vld [vmem:[%s6 + $0xc8] sm:$0xff]
      %v4707 = vld [vmem:[%s6 + $0xd0] sm:$0xff]
      %v4708 = vld [vmem:[%s6 + $0xd8] sm:$0xff]
      %v4709 = vld [vmem:[%s6 + $0xe0] sm:$0xff]
      %v4710 = vld [vmem:[%s6 + $0xe8] sm:$0xff]
      %v4711 = vld [vmem:[%s6 + $0xf0] sm:$0xff]
      %v4712 = vld [vmem:[%s6 + $0xf8] sm:$0xff]
      %v4713 = vld [vmem:[%s6 + $0x100] sm:$0xff]
      %v4714 = vld [vmem:[%s6 + $0x108] sm:$0xff]
      %v4715 = vld [vmem:[%s6 + $0x110] sm:$0xff]
      %v4716 = vld [vmem:[%s6 + $0x118] sm:$0xff]
      %v4717 = vld [vmem:[%s6 + $0x120] sm:$0xff]
      %v4718 = vld [vmem:[%s6 + $0x128] sm:$0xff]
      %v4719 = vld [vmem:[%s6 + $0x130] sm:$0xff]
      %v4720 = vld [vmem:[%s6 + $0x138] sm:$0xff]
      %v4721 = vld [vmem:[%s6 + $0x140] sm:$0xff]
      %v4722 = vld [vmem:[%s6 + $0x148] sm:$0xff]
      %v4723 = vld [vmem:[%s6 + $0x150] sm:$0xff]
      %v4724 = vld [vmem:[%s6 + $0x158] sm:$0xff]
      %v4725 = vld [vmem:[%s6 + $0x160] sm:$0xff]
      %v4726 = vld [vmem:[%s6 + $0x168] sm:$0xff]
      %v4727 = vld [vmem:[%s6 + $0x170] sm:$0xff]
      %v4728 = vld [vmem:[%s6 + $0x178] sm:$0xff]
      %v4729 = vld [vmem:[%s6 + $0x180] sm:$0xff]
      %v4730 = vld [vmem:[%s6 + $0x188] sm:$0xff]
      %v4731 = vld [vmem:[%s6 + $0x190] sm:$0xff]
      %v4732 = vld [vmem:[%s6 + $0x198] sm:$0xff]
      %v4733 = vld [vmem:[%s6 + $0x1a0] sm:$0xff]
      %v4734 = vld [vmem:[%s6 + $0x1a8] sm:$0xff]
      %v4735 = vld [vmem:[%s6 + $0x1b0] sm:$0xff]
      %v4736 = vld [vmem:[%s6 + $0x1b8] sm:$0xff]
      %v4737 = vld [vmem:[%s6 + $0x1c0] sm:$0xff]
      %v4738 = vld [vmem:[%s6 + $0x1c8] sm:$0xff]
      %v4739 = vld [vmem:[%s6 + $0x1d0] sm:$0xff]
      %v4740 = vld [vmem:[%s6 + $0x1d8] sm:$0xff]
      %v4741 = vld [vmem:[%s6 + $0x1e0] sm:$0xff]
      %v4742 = vld [vmem:[%s6 + $0x1e8] sm:$0xff]
      %v4743 = vld [vmem:[%s6 + $0x1f0] sm:$0xff]
      %v4744 = vld [vmem:[%s6 + $0x1f8] sm:$0xff]
      %v4745 = vld [vmem:[%s6 + $0x200] sm:$0xff]
      %v4746 = vld [vmem:[%s6 + $0x208] sm:$0xff]
      %v4747 = vld [vmem:[%s6 + $0x210] sm:$0xff]
      %v4748 = vld [vmem:[%s6 + $0x218] sm:$0xff]
      %v4749 = vld [vmem:[%s6 + $0x220] sm:$0xff]
      %v4750 = vld [vmem:[%s6 + $0x228] sm:$0xff]
      %v4751 = vld [vmem:[%s6 + $0x230] sm:$0xff]
      %v4752 = vld [vmem:[%s6 + $0x238] sm:$0xff]
      %v4753 = vld [vmem:[%s6 + $0x240] sm:$0xff]
      %v4754 = vld [vmem:[%s6 + $0x248] sm:$0xff]
      %v4755 = vld [vmem:[%s6 + $0x250] sm:$0xff]
      %v4756 = vld [vmem:[%s6 + $0x258] sm:$0xff]
      %v4757 = vld [vmem:[%s6 + $0x260] sm:$0xff]
      %v4758 = vld [vmem:[%s6 + $0x268] sm:$0xff]
      %v4759 = vld [vmem:[%s6 + $0x270] sm:$0xff]
      %v4760 = vld [vmem:[%s6 + $0x278] sm:$0xff]
      %v4761 = vld [vmem:[%s6 + $0x280] sm:$0xff]
      %v4762 = vld [vmem:[%s6 + $0x288] sm:$0xff]
      %v4763 = vld [vmem:[%s6 + $0x290] sm:$0xff]
      %v4764 = vld [vmem:[%s6 + $0x298] sm:$0xff]
      %v4765 = vld [vmem:[%s6 + $0x2a0] sm:$0xff]
      %v4766 = vld [vmem:[%s6 + $0x2a8] sm:$0xff]
      %v4767 = vld [vmem:[%s6 + $0x2b0] sm:$0xff]
      %v4768 = vld [vmem:[%s6 + $0x2b8] sm:$0xff]
      %v4769 = vld [vmem:[%s6 + $0x2c0] sm:$0xff]
      %v4770 = vld [vmem:[%s6 + $0x2c8] sm:$0xff]
      %v4771 = vld [vmem:[%s6 + $0x2d0] sm:$0xff]
      %v4772 = vld [vmem:[%s6 + $0x2d8] sm:$0xff]
      %v4773 = vld [vmem:[%s6 + $0x2e0] sm:$0xff]
      %v4774 = vld [vmem:[%s6 + $0x2e8] sm:$0xff]
      %v4775 = vld [vmem:[%s6 + $0x2f0] sm:$0xff]
      %v4776 = vld [vmem:[%s6 + $0x2f8] sm:$0xff]
      %v4777 = vld [vmem:[%s6 + $0x300] sm:$0xff]
      %v4778 = vld [vmem:[%s6 + $0x308] sm:$0xff]
      %v4779 = vld [vmem:[%s6 + $0x310] sm:$0xff]
      %v4780 = vld [vmem:[%s6 + $0x318] sm:$0xff]
      %v4781 = vld [vmem:[%s6 + $0x320] sm:$0xff]
      %v4782 = vld [vmem:[%s6 + $0x328] sm:$0xff]
      %v4783 = vld [vmem:[%s6 + $0x330] sm:$0xff]
      %v4784 = vld [vmem:[%s6 + $0x338] sm:$0xff]
      %v4785 = vld [vmem:[%s6 + $0x340] sm:$0xff]
      %v4786 = vld [vmem:[%s6 + $0x348] sm:$0xff]
      %v4787 = vld [vmem:[%s6 + $0x350] sm:$0xff]
      %v4788 = vld [vmem:[%s6 + $0x358] sm:$0xff]
      %v4789 = vld [vmem:[%s6 + $0x360] sm:$0xff]
      %v4790 = vld [vmem:[%s6 + $0x368] sm:$0xff]
      %v4791 = vld [vmem:[%s6 + $0x370] sm:$0xff]
      %v4792 = vld [vmem:[%s6 + $0x378] sm:$0xff]
      %v4793 = vld [vmem:[%s6 + $0x380] sm:$0xff]
      %v4794 = vld [vmem:[%s6 + $0x388] sm:$0xff]
      %v4795 = vld [vmem:[%s6 + $0x390] sm:$0xff]
      %v4796 = vld [vmem:[%s6 + $0x398] sm:$0xff]
      %v4797 = vld [vmem:[%s6 + $0x3a0] sm:$0xff]
      %v4798 = vld [vmem:[%s6 + $0x3a8] sm:$0xff]
      %v4799 = vld [vmem:[%s6 + $0x3b0] sm:$0xff]
      %v4800 = vld [vmem:[%s6 + $0x3b8] sm:$0xff]
      %v4801 = vld [vmem:[%s6 + $0x3c0] sm:$0xff]
      %v4802 = vld [vmem:[%s6 + $0x3c8] sm:$0xff]
      %v4803 = vld [vmem:[%s6 + $0x3d0] sm:$0xff]
      %v4804 = vld [vmem:[%s6 + $0x3d8] sm:$0xff]
      %v4805 = vld [vmem:[%s6 + $0x3e0] sm:$0xff]
      %v4806 = vld [vmem:[%s6 + $0x3e8] sm:$0xff]
      %v4807 = vld [vmem:[%s6 + $0x3f0] sm:$0xff]
      %v4808 = vld [vmem:[%s6 + $0x3f8] sm:$0xff]
      %v4809 = vld [vmem:[%s6 + $0x400] sm:$0xff]
      %v4810 = vld [vmem:[%s6 + $0x408] sm:$0xff]
      %v4811 = vld [vmem:[%s6 + $0x410] sm:$0xff]
      %v4812 = vld [vmem:[%s6 + $0x418] sm:$0xff]
      %v4813 = vld [vmem:[%s6 + $0x420] sm:$0xff]
      %v4814 = vld [vmem:[%s6 + $0x428] sm:$0xff]
      %v4815 = vld [vmem:[%s6 + $0x430] sm:$0xff]
      %v4816 = vld [vmem:[%s6 + $0x438] sm:$0xff]
      %v4817 = vld [vmem:[%s6 + $0x440] sm:$0xff]
      %v4818 = vld [vmem:[%s6 + $0x448] sm:$0xff]
      %v4819 = vld [vmem:[%s6 + $0x450] sm:$0xff]
      %v4820 = vld [vmem:[%s6 + $0x458] sm:$0xff]
      %v4821 = vld [vmem:[%s6 + $0x460] sm:$0xff]
      %v4822 = vld [vmem:[%s6 + $0x468] sm:$0xff]
      %v4823 = vld [vmem:[%s6 + $0x470] sm:$0xff]
      %v4824 = vld [vmem:[%s6 + $0x478] sm:$0xff]
      %v4825 = vld [vmem:[%s6 + $0x480] sm:$0xff]
      %v4826 = vld [vmem:[%s6 + $0x488] sm:$0xff]
      %v4827 = vld [vmem:[%s6 + $0x490] sm:$0xff]
      %v4828 = vld [vmem:[%s6 + $0x498] sm:$0xff]
      %v4829 = vld [vmem:[%s6 + $0x4a0] sm:$0xff]
      %v4830 = vld [vmem:[%s6 + $0x4a8] sm:$0xff]
      %v4831 = vld [vmem:[%s6 + $0x4b0] sm:$0xff]
      %v4832 = vld [vmem:[%s6 + $0x4b8] sm:$0xff]
      %v4833 = vld [vmem:[%s6 + $0x4c0] sm:$0xff]
      %v4834 = vld [vmem:[%s6 + $0x4c8] sm:$0xff]
      %v4835 = vld [vmem:[%s6 + $0x4d0] sm:$0xff]
      %v4836 = vld [vmem:[%s6 + $0x4d8] sm:$0xff]
      %v4837 = vld [vmem:[%s6 + $0x4e0] sm:$0xff]
      %v4838 = vld [vmem:[%s6 + $0x4e8] sm:$0xff]
      %v4839 = vld [vmem:[%s6 + $0x4f0] sm:$0xff]
      %v4840 = vld [vmem:[%s6 + $0x4f8] sm:$0xff]
      %v4841 = vld [vmem:[%s6 + $0x500] sm:$0xff]
      %v4842 = vld [vmem:[%s6 + $0x508] sm:$0xff]
      %v4843 = vld [vmem:[%s6 + $0x510] sm:$0xff]
      %v4844 = vld [vmem:[%s6 + $0x518] sm:$0xff]
      %v4845 = vld [vmem:[%s6 + $0x520] sm:$0xff]
      %v4846 = vld [vmem:[%s6 + $0x528] sm:$0xff]
      %v4847 = vld [vmem:[%s6 + $0x530] sm:$0xff]
      %v4848 = vld [vmem:[%s6 + $0x538] sm:$0xff]
      %v4849 = vld [vmem:[%s6 + $0x540] sm:$0xff]
      %v4850 = vld [vmem:[%s6 + $0x548] sm:$0xff]
      %v4851 = vld [vmem:[%s6 + $0x550] sm:$0xff]
      %v4852 = vld [vmem:[%s6 + $0x558] sm:$0xff]
      %v4853 = vld [vmem:[%s6 + $0x560] sm:$0xff]
      %v4854 = vld [vmem:[%s6 + $0x568] sm:$0xff]
      %v4855 = vld [vmem:[%s6 + $0x570] sm:$0xff]
      %v4856 = vld [vmem:[%s6 + $0x578] sm:$0xff]
      %v4857 = vld [vmem:[%s6 + $0x580] sm:$0xff]
      %v4858 = vld [vmem:[%s6 + $0x588] sm:$0xff]
      %v4859 = vld [vmem:[%s6 + $0x590] sm:$0xff]
      %v4860 = vld [vmem:[%s6 + $0x598] sm:$0xff]
      %v4861 = vld [vmem:[%s6 + $0x5a0] sm:$0xff]
      %v4862 = vld [vmem:[%s6 + $0x5a8] sm:$0xff]
      %v4863 = vld [vmem:[%s6 + $0x5b0] sm:$0xff]
      %v4864 = vld [vmem:[%s6 + $0x5b8] sm:$0xff]
      %v4865 = vld [vmem:[%s6 + $0x5c0] sm:$0xff]
      %v4866 = vld [vmem:[%s6 + $0x5c8] sm:$0xff]
      %v4867 = vld [vmem:[%s6 + $0x5d0] sm:$0xff]
      %v4868 = vld [vmem:[%s6 + $0x5d8] sm:$0xff]
      %v4869 = vld [vmem:[%s6 + $0x5e0] sm:$0xff]
      %v4870 = vld [vmem:[%s6 + $0x5e8] sm:$0xff]
      %v4871 = vld [vmem:[%s6 + $0x5f0] sm:$0xff]
      %v4872 = vld [vmem:[%s6 + $0x5f8] sm:$0xff]
      %v4873 = vld [vmem:[%s6 + $0x600] sm:$0xff]
      %v4874 = vld [vmem:[%s6 + $0x608] sm:$0xff]
      %v4875 = vld [vmem:[%s6 + $0x610] sm:$0xff]
      %v4876 = vld [vmem:[%s6 + $0x618] sm:$0xff]
      %v4877 = vld [vmem:[%s6 + $0x620] sm:$0xff]
      %v4878 = vld [vmem:[%s6 + $0x628] sm:$0xff]
      %v4879 = vld [vmem:[%s6 + $0x630] sm:$0xff]
      %v4880 = vld [vmem:[%s6 + $0x638] sm:$0xff]
      %v4881 = vld [vmem:[%s6 + $0x640] sm:$0xff]
      %v4882 = vld [vmem:[%s6 + $0x648] sm:$0xff]
      %v4883 = vld [vmem:[%s6 + $0x650] sm:$0xff]
      %v4884 = vld [vmem:[%s6 + $0x658] sm:$0xff]
      %v4885 = vld [vmem:[%s6 + $0x660] sm:$0xff]
      %v4886 = vld [vmem:[%s6 + $0x668] sm:$0xff]
      %v4887 = vld [vmem:[%s6 + $0x670] sm:$0xff]
      %v4888 = vld [vmem:[%s6 + $0x678] sm:$0xff]
      %v4889 = vld [vmem:[%s6 + $0x680] sm:$0xff]
      %v4890 = vld [vmem:[%s6 + $0x688] sm:$0xff]
      %v4891 = vld [vmem:[%s6 + $0x690] sm:$0xff]
      %v4892 = vld [vmem:[%s6 + $0x698] sm:$0xff]
      %v4893 = vld [vmem:[%s6 + $0x6a0] sm:$0xff]
      %v4894 = vld [vmem:[%s6 + $0x6a8] sm:$0xff]
      %v4895 = vld [vmem:[%s6 + $0x6b0] sm:$0xff]
      %v4896 = vld [vmem:[%s6 + $0x6b8] sm:$0xff]
      %v4897 = vld [vmem:[%s6 + $0x6c0] sm:$0xff]
      %v4898 = vld [vmem:[%s6 + $0x6c8] sm:$0xff]
      %v4899 = vld [vmem:[%s6 + $0x6d0] sm:$0xff]
      %v4900 = vld [vmem:[%s6 + $0x6d8] sm:$0xff]
      %v4901 = vld [vmem:[%s6 + $0x6e0] sm:$0xff]
      %v4902 = vld [vmem:[%s6 + $0x6e8] sm:$0xff]
      %v4903 = vld [vmem:[%s6 + $0x6f0] sm:$0xff]
      %v4904 = vld [vmem:[%s6 + $0x6f8] sm:$0xff]
      %v4905 = vld [vmem:[%s6 + $0x700] sm:$0xff]
      %v4906 = vld [vmem:[%s6 + $0x708] sm:$0xff]
      %v4907 = vld [vmem:[%s6 + $0x710] sm:$0xff]
      %v4908 = vld [vmem:[%s6 + $0x718] sm:$0xff]
      %v4909 = vld [vmem:[%s6 + $0x720] sm:$0xff]
      %v4910 = vld [vmem:[%s6 + $0x728] sm:$0xff]
      %v4911 = vld [vmem:[%s6 + $0x730] sm:$0xff]
      %v4912 = vld [vmem:[%s6 + $0x738] sm:$0xff]
      %v4913 = vld [vmem:[%s6 + $0x740] sm:$0xff]
      %v4914 = vld [vmem:[%s6 + $0x748] sm:$0xff]
      %v4915 = vld [vmem:[%s6 + $0x750] sm:$0xff]
      %v4916 = vld [vmem:[%s6 + $0x758] sm:$0xff]
      %v4917 = vld [vmem:[%s6 + $0x760] sm:$0xff]
      %v4918 = vld [vmem:[%s6 + $0x768] sm:$0xff]
      %v4919 = vld [vmem:[%s6 + $0x770] sm:$0xff]
      %v4920 = vld [vmem:[%s6 + $0x778] sm:$0xff]
      %v4921 = vld [vmem:[%s6 + $0x780] sm:$0xff]
      %v4922 = vld [vmem:[%s6 + $0x788] sm:$0xff]
      %v4923 = vld [vmem:[%s6 + $0x790] sm:$0xff]
      %v4924 = vld [vmem:[%s6 + $0x798] sm:$0xff]
      %v4925 = vld [vmem:[%s6 + $0x7a0] sm:$0xff]
      %v4926 = vld [vmem:[%s6 + $0x7a8] sm:$0xff]
      %v4927 = vld [vmem:[%s6 + $0x7b0] sm:$0xff]
      %v4928 = vld [vmem:[%s6 + $0x7b8] sm:$0xff]
      %v4929 = vld [vmem:[%s6 + $0x7c0] sm:$0xff]
      %v4930 = vld [vmem:[%s6 + $0x7c8] sm:$0xff]
      %v4931 = vld [vmem:[%s6 + $0x7d0] sm:$0xff]
      %v4932 = vld [vmem:[%s6 + $0x7d8] sm:$0xff]
      %v4933 = vld [vmem:[%s6 + $0x7e0] sm:$0xff]
      %v4934 = vld [vmem:[%s6 + $0x7e8] sm:$0xff]
      %v4935 = vld [vmem:[%s6 + $0x7f0] sm:$0xff]
      %v4936 = vld [vmem:[%s6 + $0x7f8] sm:$0xff]
      %v4937 = vld [vmem:[%s6 + $0x800] sm:$0xff]
      %v4938 = vld [vmem:[%s6 + $0x808] sm:$0xff]
      %v4939 = vld [vmem:[%s6 + $0x810] sm:$0xff]
      %v4940 = vld [vmem:[%s6 + $0x818] sm:$0xff]
      %v4941 = vld [vmem:[%s6 + $0x820] sm:$0xff]
      %v4942 = vld [vmem:[%s6 + $0x828] sm:$0xff]
      %v4943 = vld [vmem:[%s6 + $0x830] sm:$0xff]
      %v4944 = vld [vmem:[%s6 + $0x838] sm:$0xff]
      %v4945 = vld [vmem:[%s6 + $0x840] sm:$0xff]
      %v4946 = vld [vmem:[%s6 + $0x848] sm:$0xff]
      %v4947 = vld [vmem:[%s6 + $0x850] sm:$0xff]
      %v4948 = vld [vmem:[%s6 + $0x858] sm:$0xff]
      %v4949 = vld [vmem:[%s6 + $0x860] sm:$0xff]
      %v4950 = vld [vmem:[%s6 + $0x868] sm:$0xff]
      %v4951 = vld [vmem:[%s6 + $0x870] sm:$0xff]
      %v4952 = vld [vmem:[%s6 + $0x878] sm:$0xff]
      %v4953 = vld [vmem:[%s6 + $0x880] sm:$0xff]
      %v4954 = vld [vmem:[%s6 + $0x888] sm:$0xff]
      %v4955 = vld [vmem:[%s6 + $0x890] sm:$0xff]
      %v4956 = vld [vmem:[%s6 + $0x898] sm:$0xff]
      %v4957 = vld [vmem:[%s6 + $0x8a0] sm:$0xff]
      %v4958 = vld [vmem:[%s6 + $0x8a8] sm:$0xff]
      %v4959 = vld [vmem:[%s6 + $0x8b0] sm:$0xff]
      %v4960 = vld [vmem:[%s6 + $0x8b8] sm:$0xff]
      %v4961 = vld [vmem:[%s6 + $0x8c0] sm:$0xff]
      %v4962 = vld [vmem:[%s6 + $0x8c8] sm:$0xff]
      %v4963 = vld [vmem:[%s6 + $0x8d0] sm:$0xff]
      %v4964 = vld [vmem:[%s6 + $0x8d8] sm:$0xff]
      %v4965 = vld [vmem:[%s6 + $0x8e0] sm:$0xff]
      %v4966 = vld [vmem:[%s6 + $0x8e8] sm:$0xff]
      %v4967 = vld [vmem:[%s6 + $0x8f0] sm:$0xff]
      %v4968 = vld [vmem:[%s6 + $0x8f8] sm:$0xff]
      %v4969 = vld [vmem:[%s6 + $0x900] sm:$0xff]
      %v4970 = vld [vmem:[%s6 + $0x908] sm:$0xff]
      %v4971 = vld [vmem:[%s6 + $0x910] sm:$0xff]
      %v4972 = vld [vmem:[%s6 + $0x918] sm:$0xff]
      %v4973 = vld [vmem:[%s6 + $0x920] sm:$0xff]
      %v4974 = vld [vmem:[%s6 + $0x928] sm:$0xff]
      %v4975 = vld [vmem:[%s6 + $0x930] sm:$0xff]
      %v4976 = vld [vmem:[%s6 + $0x938] sm:$0xff]
      %v4977 = vld [vmem:[%s6 + $0x940] sm:$0xff]
      %v4978 = vld [vmem:[%s6 + $0x948] sm:$0xff]
      %v4979 = vld [vmem:[%s6 + $0x950] sm:$0xff]
      %v4980 = vld [vmem:[%s6 + $0x958] sm:$0xff]
      %v4981 = vld [vmem:[%s6 + $0x960] sm:$0xff]
      %v4982 = vld [vmem:[%s6 + $0x968] sm:$0xff]
      %v4983 = vld [vmem:[%s6 + $0x970] sm:$0xff]
      %v4984 = vld [vmem:[%s6 + $0x978] sm:$0xff]
      %v4985 = vld [vmem:[%s6 + $0x980] sm:$0xff]
      %v4986 = vld [vmem:[%s6 + $0x988] sm:$0xff]
      %v4987 = vld [vmem:[%s6 + $0x990] sm:$0xff]
      %v4988 = vld [vmem:[%s6 + $0x998] sm:$0xff]
      %v4989 = vld [vmem:[%s6 + $0x9a0] sm:$0xff]
      %v4990 = vld [vmem:[%s6 + $0x9a8] sm:$0xff]
      %v4991 = vld [vmem:[%s6 + $0x9b0] sm:$0xff]
      %v4992 = vld [vmem:[%s6 + $0x9b8] sm:$0xff]
      %v4993 = vld [vmem:[%s6 + $0x9c0] sm:$0xff]
      %v4994 = vld [vmem:[%s6 + $0x9c8] sm:$0xff]
      %v4995 = vld [vmem:[%s6 + $0x9d0] sm:$0xff]
      %v4996 = vld [vmem:[%s6 + $0x9d8] sm:$0xff]
      %v4997 = vld [vmem:[%s6 + $0x9e0] sm:$0xff]
      %v4998 = vld [vmem:[%s6 + $0x9e8] sm:$0xff]
      %v4999 = vld [vmem:[%s6 + $0x9f0] sm:$0xff]
      %v5000 = vld [vmem:[%s6 + $0x9f8] sm:$0xff]
      %v5001 = vld [vmem:[%s6 + $0xa00] sm:$0xff]
      %v5002 = vld [vmem:[%s6 + $0xa08] sm:$0xff]
      %v5003 = vld [vmem:[%s6 + $0xa10] sm:$0xff]
      %v5004 = vld [vmem:[%s6 + $0xa18] sm:$0xff]
      %v5005 = vld [vmem:[%s6 + $0xa20] sm:$0xff]
      %v5006 = vld [vmem:[%s6 + $0xa28] sm:$0xff]
      %v5007 = vld [vmem:[%s6 + $0xa30] sm:$0xff]
      %v5008 = vld [vmem:[%s6 + $0xa38] sm:$0xff]
      %v5009 = vld [vmem:[%s6 + $0xa40] sm:$0xff]
      %v5010 = vld [vmem:[%s6 + $0xa48] sm:$0xff]
      %v5011 = vld [vmem:[%s6 + $0xa50] sm:$0xff]
      %v5012 = vld [vmem:[%s6 + $0xa58] sm:$0xff]
      %v5013 = vld [vmem:[%s6 + $0xa60] sm:$0xff]
      %v5014 = vld [vmem:[%s6 + $0xa68] sm:$0xff]
      %v5015 = vld [vmem:[%s6 + $0xa70] sm:$0xff]
      %v5016 = vld [vmem:[%s6 + $0xa78] sm:$0xff]
      %v5017 = vld [vmem:[%s6 + $0xa80] sm:$0xff]
      %v5018 = vld [vmem:[%s6 + $0xa88] sm:$0xff]
      %v5019 = vld [vmem:[%s6 + $0xa90] sm:$0xff]
      %v5020 = vld [vmem:[%s6 + $0xa98] sm:$0xff]
      %v5021 = vld [vmem:[%s6 + $0xaa0] sm:$0xff]
      %v5022 = vld [vmem:[%s6 + $0xaa8] sm:$0xff]
      %v5023 = vld [vmem:[%s6 + $0xab0] sm:$0xff]
      %v5024 = vld [vmem:[%s6 + $0xab8] sm:$0xff]
      %v5025 = vld [vmem:[%s6 + $0xac0] sm:$0xff]
      %v5026 = vld [vmem:[%s6 + $0xac8] sm:$0xff]
      %v5027 = vld [vmem:[%s6 + $0xad0] sm:$0xff]
      %v5028 = vld [vmem:[%s6 + $0xad8] sm:$0xff]
      %v5029 = vld [vmem:[%s6 + $0xae0] sm:$0xff]
      %v5030 = vld [vmem:[%s6 + $0xae8] sm:$0xff]
      %v5031 = vld [vmem:[%s6 + $0xaf0] sm:$0xff]
      %v5032 = vld [vmem:[%s6 + $0xaf8] sm:$0xff]
      %v5033 = vld [vmem:[%s6 + $0xb00] sm:$0xff]
      %v5034 = vld [vmem:[%s6 + $0xb08] sm:$0xff]
      %v5035 = vld [vmem:[%s6 + $0xb10] sm:$0xff]
      %v5036 = vld [vmem:[%s6 + $0xb18] sm:$0xff]
      %v5037 = vld [vmem:[%s6 + $0xb20] sm:$0xff]
      %v5038 = vld [vmem:[%s6 + $0xb28] sm:$0xff]
      %v5039 = vld [vmem:[%s6 + $0xb30] sm:$0xff]
      %v5040 = vld [vmem:[%s6 + $0xb38] sm:$0xff]
      %v5041 = vld [vmem:[%s6 + $0xb40] sm:$0xff]
      %v5042 = vld [vmem:[%s6 + $0xb48] sm:$0xff]
      %vm5043 = vcmask 654336
      %v5045 = vsel %vm5043, %v4657, 0
      %v5048 = vsel %vm5043, %v4680, 0
      %5050 = vmatprep.subr.mxu0 0.0
      %5051 = vmatpush1.msra.mxu0 %v4681
      %5052 = vmatprep.subr.mxu0 0.0
      %5053 = vmatpush1.msra.mxu0 %v4682
      %5054 = vmatprep.subr.mxu0 0.0
      %5055 = vmatpush1.msra.mxu0 %v4683
      %5056 = vmatprep.subr.mxu0 0.0
      %5057 = vmatpush1.msra.mxu0 %v4684
      %5058 = vmatprep.subr.mxu0 0.0
      %5059 = vmatpush1.msra.mxu0 %v4685
      %5060 = vmatprep.subr.mxu0 0.0
      %5061 = vmatpush1.msra.mxu0 %v4686
      %5062 = vmatprep.subr.mxu0 0.0
      %5063 = vmatpush1.msra.mxu0 %v4687
      %5064 = vmatprep.subr.mxu0 0.0
      %5065 = vmatpush1.msra.mxu0 %v4688
      %5066 = vmatprep.subr.mxu0 0.0
      %5067 = vmatpush1.msra.mxu0 %v4689
      %5068 = vmatprep.subr.mxu0 0.0
      %5069 = vmatpush1.msra.mxu0 %v4690
      %5070 = vmatprep.subr.mxu0 0.0
      %5071 = vmatpush1.msra.mxu0 %v4691
      %5072 = vmatprep.subr.mxu0 0.0
      %5073 = vmatpush1.msra.mxu0 %v4692
      %5074 = vmatprep.subr.mxu0 0.0
      %5075 = vmatpush1.msra.mxu0 %v4693
      %5076 = vmatprep.subr.mxu0 0.0
      %5077 = vmatpush1.msra.mxu0 %v4694
      %5078 = vmatprep.subr.mxu0 0.0
      %5079 = vmatpush1.msra.mxu0 %v4695
      %5080 = vmatprep.subr.mxu0 0.0
      %5081 = vmatpush1.msra.mxu0 %v4696
      %5082 = vmatprep.subr.mxu0 0.0
      %5083 = vmatpush1.msra.mxu0 %v4697
      %5084 = vmatprep.subr.mxu0 0.0
      %5085 = vmatpush1.msra.mxu0 %v4698
      %5086 = vmatprep.subr.mxu0 0.0
      %5087 = vmatpush1.msra.mxu0 %v4699
      %5088 = vmatprep.subr.mxu0 0.0
      %5089 = vmatpush1.msra.mxu0 %v4700
      %5090 = vmatprep.subr.mxu0 0.0
      %5091 = vmatpush1.msra.mxu0 %v4701
      %5092 = vmatprep.subr.mxu0 0.0
      %5093 = vmatpush1.msra.mxu0 %v4702
      %5094 = vmatprep.subr.mxu0 0.0
      %5095 = vmatpush1.msra.mxu0 %v4703
      %5096 = vmatprep.subr.mxu0 0.0
      %5097 = vmatpush1.msra.mxu0 %v4704
      %5098 = vmatprep.subr.mxu0 0.0
      %5099 = vmatpush1.msra.mxu0 %v4705
      %5100 = vmatprep.subr.mxu0 0.0
      %5101 = vmatpush1.msra.mxu0 %v4706
      %5102 = vmatprep.subr.mxu0 0.0
      %5103 = vmatpush1.msra.mxu0 %v4707
      %5104 = vmatprep.subr.mxu0 0.0
      %5105 = vmatpush1.msra.mxu0 %v4708
      %5106 = vmatprep.subr.mxu0 0.0
      %5107 = vmatpush1.msra.mxu0 %v4709
      %5108 = vmatprep.subr.mxu0 0.0
      %5109 = vmatpush1.msra.mxu0 %v4710
      %5110 = vmatprep.subr.mxu0 0.0
      %5111 = vmatpush1.msra.mxu0 %v4711
      %5112 = vmatprep.subr.mxu0 0.0
      %5113 = vmatpush1.msra.mxu0 %v4712
      %5114 = vmatprep.mubr.f32.mxu0 %v4636
      %5115 = vmatmul.mubr.f32.gmra.mrb[0].mxu0 %v4635
      %v5116 = vpop.f32.mrb[0].mxu0
      %v5117 = vadd.f32 0.0, %v5116
      %v5118 = vpop.f32.mrb[0].mxu0
      %5119 = vmatprep.mubr.f32.mxu0 %v4659
      %5120 = vmatmul.mubr.f32.gmra.mrb[0].mxu0 %v4658
      %v5121 = vpop.f32.mrb[0].mxu0
      %v5122 = vadd.f32 0.0, %v5121
      %v5123 = vpop.f32.mrb[0].mxu0
      %5124 = vdwg.mxu0
      %5125 = vmatprep.subr.mxu0 0.0
      %5126 = vmatpush1.msra.mxu0 %v4713
      %5127 = vmatprep.subr.mxu0 0.0
      %5128 = vmatpush1.msra.mxu0 %v4714
      %5129 = vmatprep.subr.mxu0 0.0
      %5130 = vmatpush1.msra.mxu0 %v4715
      %5131 = vmatprep.subr.mxu0 0.0
      %5132 = vmatpush1.msra.mxu0 %v4716
      %5133 = vmatprep.subr.mxu0 0.0
      %5134 = vmatpush1.msra.mxu0 %v4717
      %5135 = vmatprep.subr.mxu0 0.0
      %5136 = vmatpush1.msra.mxu0 %v4718
      %5137 = vmatprep.subr.mxu0 0.0
      %5138 = vmatpush1.msra.mxu0 %v4719
      %5139 = vmatprep.subr.mxu0 0.0
      %5140 = vmatpush1.msra.mxu0 %v4720
      %5141 = vmatprep.subr.mxu0 0.0
      %5142 = vmatpush1.msra.mxu0 %v4721
      %5143 = vmatprep.subr.mxu0 0.0
      %5144 = vmatpush1.msra.mxu0 %v4722
      %5145 = vmatprep.subr.mxu0 0.0
      %5146 = vmatpush1.msra.mxu0 %v4723
      %5147 = vmatprep.subr.mxu0 0.0
      %5148 = vmatpush1.msra.mxu0 %v4724
      %5149 = vmatprep.subr.mxu0 0.0
      %5150 = vmatpush1.msra.mxu0 %v4725
      %5151 = vmatprep.subr.mxu0 0.0
      %5152 = vmatpush1.msra.mxu0 %v4726
      %5153 = vmatprep.subr.mxu0 0.0
      %5154 = vmatpush1.msra.mxu0 %v4727
      %5155 = vmatprep.subr.mxu0 0.0
      %5156 = vmatpush1.msra.mxu0 %v4728
      %5157 = vmatprep.subr.mxu0 0.0
      %5158 = vmatpush1.msra.mxu0 %v4729
      %5159 = vmatprep.subr.mxu0 0.0
      %5160 = vmatpush1.msra.mxu0 %v4730
      %5161 = vmatprep.subr.mxu0 0.0
      %5162 = vmatpush1.msra.mxu0 %v4731
      %5163 = vmatprep.subr.mxu0 0.0
      %5164 = vmatpush1.msra.mxu0 %v4732
      %5165 = vmatprep.subr.mxu0 0.0
      %5166 = vmatpush1.msra.mxu0 %v4733
      %5167 = vmatprep.subr.mxu0 0.0
      %5168 = vmatpush1.msra.mxu0 %v4734
      %5169 = vmatprep.subr.mxu0 0.0
      %5170 = vmatpush1.msra.mxu0 %v4735
      %5171 = vmatprep.subr.mxu0 0.0
      %5172 = vmatpush1.msra.mxu0 %v4736
      %5173 = vmatprep.subr.mxu0 0.0
      %5174 = vmatpush1.msra.mxu0 %v4737
      %5175 = vmatprep.subr.mxu0 0.0
      %5176 = vmatpush1.msra.mxu0 %v4738
      %5177 = vmatprep.subr.mxu0 0.0
      %5178 = vmatpush1.msra.mxu0 %v4739
      %5179 = vmatprep.subr.mxu0 0.0
      %5180 = vmatpush1.msra.mxu0 %v4740
      %5181 = vmatprep.subr.mxu0 0.0
      %5182 = vmatpush1.msra.mxu0 %v4741
      %5183 = vmatprep.subr.mxu0 0.0
      %5184 = vmatpush1.msra.mxu0 %v4742
      %5185 = vmatprep.subr.mxu0 0.0
      %5186 = vmatpush1.msra.mxu0 %v4743
      %5187 = vmatprep.subr.mxu0 0.0
      %5188 = vmatpush1.msra.mxu0 %v4744
      %5189 = vmatprep.mubr.f32.mxu0 %v4638
      %5190 = vmatmul.mubr.f32.gmra.mrb[0].mxu0 %v4637
      %v5191 = vpop.f32.mrb[0].mxu0
      %v5192 = vadd.f32 %v5117, %v5191
      %v5193 = vpop.f32.mrb[0].mxu0
      %5194 = vmatprep.mubr.f32.mxu0 %v4661
      %5195 = vmatmul.mubr.f32.gmra.mrb[0].mxu0 %v4660
      %v5196 = vpop.f32.mrb[0].mxu0
      %v5197 = vadd.f32 %v5122, %v5196
      %v5198 = vpop.f32.mrb[0].mxu0
      %5199 = vdwg.mxu0
      %5200 = vmatprep.subr.mxu0 0.0
      %5201 = vmatpush1.msra.mxu0 %v4745
      %5202 = vmatprep.subr.mxu0 0.0
      %5203 = vmatpush1.msra.mxu0 %v4746
      %5204 = vmatprep.subr.mxu0 0.0
      %5205 = vmatpush1.msra.mxu0 %v4747
      %5206 = vmatprep.subr.mxu0 0.0
      %5207 = vmatpush1.msra.mxu0 %v4748
      %5208 = vmatprep.subr.mxu0 0.0
      %5209 = vmatpush1.msra.mxu0 %v4749
      %5210 = vmatprep.subr.mxu0 0.0
      %5211 = vmatpush1.msra.mxu0 %v4750
      %5212 = vmatprep.subr.mxu0 0.0
      %5213 = vmatpush1.msra.mxu0 %v4751
      %5214 = vmatprep.subr.mxu0 0.0
      %5215 = vmatpush1.msra.mxu0 %v4752
      %5216 = vmatprep.subr.mxu0 0.0
      %5217 = vmatpush1.msra.mxu0 %v4753
      %5218 = vmatprep.subr.mxu0 0.0
      %5219 = vmatpush1.msra.mxu0 %v4754
      %5220 = vmatprep.subr.mxu0 0.0
      %5221 = vmatpush1.msra.mxu0 %v4755
      %5222 = vmatprep.subr.mxu0 0.0
      %5223 = vmatpush1.msra.mxu0 %v4756
      %5224 = vmatprep.subr.mxu0 0.0
      %5225 = vmatpush1.msra.mxu0 %v4757
      %5226 = vmatprep.subr.mxu0 0.0
      %5227 = vmatpush1.msra.mxu0 %v4758
      %5228 = vmatprep.subr.mxu0 0.0
      %5229 = vmatpush1.msra.mxu0 %v4759
      %5230 = vmatprep.subr.mxu0 0.0
      %5231 = vmatpush1.msra.mxu0 %v4760
      %5232 = vmatprep.subr.mxu0 0.0
      %5233 = vmatpush1.msra.mxu0 %v4761
      %5234 = vmatprep.subr.mxu0 0.0
      %5235 = vmatpush1.msra.mxu0 %v4762
      %5236 = vmatprep.subr.mxu0 0.0
      %5237 = vmatpush1.msra.mxu0 %v4763
      %5238 = vmatprep.subr.mxu0 0.0
      %5239 = vmatpush1.msra.mxu0 %v4764
      %5240 = vmatprep.subr.mxu0 0.0
      %5241 = vmatpush1.msra.mxu0 %v4765
      %5242 = vmatprep.subr.mxu0 0.0
      %5243 = vmatpush1.msra.mxu0 %v4766
      %5244 = vmatprep.subr.mxu0 0.0
      %5245 = vmatpush1.msra.mxu0 %v4767
      %5246 = vmatprep.subr.mxu0 0.0
      %5247 = vmatpush1.msra.mxu0 %v4768
      %5248 = vmatprep.subr.mxu0 0.0
      %5249 = vmatpush1.msra.mxu0 %v4769
      %5250 = vmatprep.subr.mxu0 0.0
      %5251 = vmatpush1.msra.mxu0 %v4770
      %5252 = vmatprep.subr.mxu0 0.0
      %5253 = vmatpush1.msra.mxu0 %v4771
      %5254 = vmatprep.subr.mxu0 0.0
      %5255 = vmatpush1.msra.mxu0 %v4772
      %5256 = vmatprep.subr.mxu0 0.0
      %5257 = vmatpush1.msra.mxu0 %v4773
      %5258 = vmatprep.subr.mxu0 0.0
      %5259 = vmatpush1.msra.mxu0 %v4774
      %5260 = vmatprep.subr.mxu0 0.0
      %5261 = vmatpush1.msra.mxu0 %v4775
      %5262 = vmatprep.subr.mxu0 0.0
      %5263 = vmatpush1.msra.mxu0 %v4776
      %5264 = vmatprep.mubr.f32.mxu0 %v4640
      %5265 = vmatmul.mubr.f32.gmra.mrb[0].mxu0 %v4639
      %v5266 = vpop.f32.mrb[0].mxu0
      %v5267 = vadd.f32 %v5192, %v5266
      %v5268 = vpop.f32.mrb[0].mxu0
      %5269 = vmatprep.mubr.f32.mxu0 %v4663
      %5270 = vmatmul.mubr.f32.gmra.mrb[0].mxu0 %v4662
      %v5271 = vpop.f32.mrb[0].mxu0
      %v5272 = vadd.f32 %v5197, %v5271
      %v5273 = vpop.f32.mrb[0].mxu0
      %5274 = vdwg.mxu0
      %5275 = vmatprep.subr.mxu0 0.0
      %5276 = vmatpush1.msra.mxu0 %v4777
      %5277 = vmatprep.subr.mxu0 0.0
      %5278 = vmatpush1.msra.mxu0 %v4778
      %5279 = vmatprep.subr.mxu0 0.0
      %5280 = vmatpush1.msra.mxu0 %v4779
      %5281 = vmatprep.subr.mxu0 0.0
      %5282 = vmatpush1.msra.mxu0 %v4780
      %5283 = vmatprep.subr.mxu0 0.0
      %5284 = vmatpush1.msra.mxu0 %v4781
      %5285 = vmatprep.subr.mxu0 0.0
      %5286 = vmatpush1.msra.mxu0 %v4782
      %5287 = vmatprep.subr.mxu0 0.0
      %5288 = vmatpush1.msra.mxu0 %v4783
      %5289 = vmatprep.subr.mxu0 0.0
      %5290 = vmatpush1.msra.mxu0 %v4784
      %5291 = vmatprep.subr.mxu0 0.0
      %5292 = vmatpush1.msra.mxu0 %v4785
      %5293 = vmatprep.subr.mxu0 0.0
      %5294 = vmatpush1.msra.mxu0 %v4786
      %5295 = vmatprep.subr.mxu0 0.0
      %5296 = vmatpush1.msra.mxu0 %v4787
      %5297 = vmatprep.subr.mxu0 0.0
      %5298 = vmatpush1.msra.mxu0 %v4788
      %5299 = vmatprep.subr.mxu0 0.0
      %5300 = vmatpush1.msra.mxu0 %v4789
      %5301 = vmatprep.subr.mxu0 0.0
      %5302 = vmatpush1.msra.mxu0 %v4790
      %5303 = vmatprep.subr.mxu0 0.0
      %5304 = vmatpush1.msra.mxu0 %v4791
      %5305 = vmatprep.subr.mxu0 0.0
      %5306 = vmatpush1.msra.mxu0 %v4792
      %5307 = vmatprep.subr.mxu0 0.0
      %5308 = vmatpush1.msra.mxu0 %v4793
      %5309 = vmatprep.subr.mxu0 0.0
      %5310 = vmatpush1.msra.mxu0 %v4794
      %5311 = vmatprep.subr.mxu0 0.0
      %5312 = vmatpush1.msra.mxu0 %v4795
      %5313 = vmatprep.subr.mxu0 0.0
      %5314 = vmatpush1.msra.mxu0 %v4796
      %5315 = vmatprep.subr.mxu0 0.0
      %5316 = vmatpush1.msra.mxu0 %v4797
      %5317 = vmatprep.subr.mxu0 0.0
      %5318 = vmatpush1.msra.mxu0 %v4798
      %5319 = vmatprep.subr.mxu0 0.0
      %5320 = vmatpush1.msra.mxu0 %v4799
      %5321 = vmatprep.subr.mxu0 0.0
      %5322 = vmatpush1.msra.mxu0 %v4800
      %5323 = vmatprep.subr.mxu0 0.0
      %5324 = vmatpush1.msra.mxu0 %v4801
      %5325 = vmatprep.subr.mxu0 0.0
      %5326 = vmatpush1.msra.mxu0 %v4802
      %5327 = vmatprep.subr.mxu0 0.0
      %5328 = vmatpush1.msra.mxu0 %v4803
      %5329 = vmatprep.subr.mxu0 0.0
      %5330 = vmatpush1.msra.mxu0 %v4804
      %5331 = vmatprep.subr.mxu0 0.0
      %5332 = vmatpush1.msra.mxu0 %v4805
      %5333 = vmatprep.subr.mxu0 0.0
      %5334 = vmatpush1.msra.mxu0 %v4806
      %5335 = vmatprep.subr.mxu0 0.0
      %5336 = vmatpush1.msra.mxu0 %v4807
      %5337 = vmatprep.subr.mxu0 0.0
      %5338 = vmatpush1.msra.mxu0 %v4808
      %5339 = vmatprep.mubr.f32.mxu0 %v4642
      %5340 = vmatmul.mubr.f32.gmra.mrb[0].mxu0 %v4641
      %v5341 = vpop.f32.mrb[0].mxu0
      %v5342 = vadd.f32 %v5267, %v5341
      %v5343 = vpop.f32.mrb[0].mxu0
      %5344 = vmatprep.mubr.f32.mxu0 %v4665
      %5345 = vmatmul.mubr.f32.gmra.mrb[0].mxu0 %v4664
      %v5346 = vpop.f32.mrb[0].mxu0
      %v5347 = vadd.f32 %v5272, %v5346
      %v5348 = vpop.f32.mrb[0].mxu0
      %5349 = vdwg.mxu0
      %5350 = vmatprep.subr.mxu0 0.0
      %5351 = vmatpush1.msra.mxu0 %v4809
      %5352 = vmatprep.subr.mxu0 0.0
      %5353 = vmatpush1.msra.mxu0 %v4810
      %5354 = vmatprep.subr.mxu0 0.0
      %5355 = vmatpush1.msra.mxu0 %v4811
      %5356 = vmatprep.subr.mxu0 0.0
      %5357 = vmatpush1.msra.mxu0 %v4812
      %5358 = vmatprep.subr.mxu0 0.0
      %5359 = vmatpush1.msra.mxu0 %v4813
      %5360 = vmatprep.subr.mxu0 0.0
      %5361 = vmatpush1.msra.mxu0 %v4814
      %5362 = vmatprep.subr.mxu0 0.0
      %5363 = vmatpush1.msra.mxu0 %v4815
      %5364 = vmatprep.subr.mxu0 0.0
      %5365 = vmatpush1.msra.mxu0 %v4816
      %5366 = vmatprep.subr.mxu0 0.0
      %5367 = vmatpush1.msra.mxu0 %v4817
      %5368 = vmatprep.subr.mxu0 0.0
      %5369 = vmatpush1.msra.mxu0 %v4818
      %5370 = vmatprep.subr.mxu0 0.0
      %5371 = vmatpush1.msra.mxu0 %v4819
      %5372 = vmatprep.subr.mxu0 0.0
      %5373 = vmatpush1.msra.mxu0 %v4820
      %5374 = vmatprep.subr.mxu0 0.0
      %5375 = vmatpush1.msra.mxu0 %v4821
      %5376 = vmatprep.subr.mxu0 0.0
      %5377 = vmatpush1.msra.mxu0 %v4822
      %5378 = vmatprep.subr.mxu0 0.0
      %5379 = vmatpush1.msra.mxu0 %v4823
      %5380 = vmatprep.subr.mxu0 0.0
      %5381 = vmatpush1.msra.mxu0 %v4824
      %5382 = vmatprep.subr.mxu0 0.0
      %5383 = vmatpush1.msra.mxu0 %v4825
      %5384 = vmatprep.subr.mxu0 0.0
      %5385 = vmatpush1.msra.mxu0 %v4826
      %5386 = vmatprep.subr.mxu0 0.0
      %5387 = vmatpush1.msra.mxu0 %v4827
      %5388 = vmatprep.subr.mxu0 0.0
      %5389 = vmatpush1.msra.mxu0 %v4828
      %5390 = vmatprep.subr.mxu0 0.0
      %5391 = vmatpush1.msra.mxu0 %v4829
      %5392 = vmatprep.subr.mxu0 0.0
      %5393 = vmatpush1.msra.mxu0 %v4830
      %5394 = vmatprep.subr.mxu0 0.0
      %5395 = vmatpush1.msra.mxu0 %v4831
      %5396 = vmatprep.subr.mxu0 0.0
      %5397 = vmatpush1.msra.mxu0 %v4832
      %5398 = vmatprep.subr.mxu0 0.0
      %5399 = vmatpush1.msra.mxu0 %v4833
      %5400 = vmatprep.subr.mxu0 0.0
      %5401 = vmatpush1.msra.mxu0 %v4834
      %5402 = vmatprep.subr.mxu0 0.0
      %5403 = vmatpush1.msra.mxu0 %v4835
      %5404 = vmatprep.subr.mxu0 0.0
      %5405 = vmatpush1.msra.mxu0 %v4836
      %5406 = vmatprep.subr.mxu0 0.0
      %5407 = vmatpush1.msra.mxu0 %v4837
      %5408 = vmatprep.subr.mxu0 0.0
      %5409 = vmatpush1.msra.mxu0 %v4838
      %5410 = vmatprep.subr.mxu0 0.0
      %5411 = vmatpush1.msra.mxu0 %v4839
      %5412 = vmatprep.subr.mxu0 0.0
      %5413 = vmatpush1.msra.mxu0 %v4840
      %5414 = vmatprep.mubr.f32.mxu0 %v4644
      %5415 = vmatmul.mubr.f32.gmra.mrb[0].mxu0 %v4643
      %v5416 = vpop.f32.mrb[0].mxu0
      %v5417 = vadd.f32 %v5342, %v5416
      %v5418 = vpop.f32.mrb[0].mxu0
      %5419 = vmatprep.mubr.f32.mxu0 %v4667
      %5420 = vmatmul.mubr.f32.gmra.mrb[0].mxu0 %v4666
      %v5421 = vpop.f32.mrb[0].mxu0
      %v5422 = vadd.f32 %v5347, %v5421
      %v5423 = vpop.f32.mrb[0].mxu0
      %5424 = vdwg.mxu0
      %5425 = vmatprep.subr.mxu0 0.0
      %5426 = vmatpush1.msra.mxu0 %v4841
      %5427 = vmatprep.subr.mxu0 0.0
      %5428 = vmatpush1.msra.mxu0 %v4842
      %5429 = vmatprep.subr.mxu0 0.0
      %5430 = vmatpush1.msra.mxu0 %v4843
      %5431 = vmatprep.subr.mxu0 0.0
      %5432 = vmatpush1.msra.mxu0 %v4844
      %5433 = vmatprep.subr.mxu0 0.0
      %5434 = vmatpush1.msra.mxu0 %v4845
      %5435 = vmatprep.subr.mxu0 0.0
      %5436 = vmatpush1.msra.mxu0 %v4846
      %5437 = vmatprep.subr.mxu0 0.0
      %5438 = vmatpush1.msra.mxu0 %v4847
      %5439 = vmatprep.subr.mxu0 0.0
      %5440 = vmatpush1.msra.mxu0 %v4848
      %5441 = vmatprep.subr.mxu0 0.0
      %5442 = vmatpush1.msra.mxu0 %v4849
      %5443 = vmatprep.subr.mxu0 0.0
      %5444 = vmatpush1.msra.mxu0 %v4850
      %5445 = vmatprep.subr.mxu0 0.0
      %5446 = vmatpush1.msra.mxu0 %v4851
      %5447 = vmatprep.subr.mxu0 0.0
      %5448 = vmatpush1.msra.mxu0 %v4852
      %5449 = vmatprep.subr.mxu0 0.0
      %5450 = vmatpush1.msra.mxu0 %v4853
      %5451 = vmatprep.subr.mxu0 0.0
      %5452 = vmatpush1.msra.mxu0 %v4854
      %5453 = vmatprep.subr.mxu0 0.0
      %5454 = vmatpush1.msra.mxu0 %v4855
      %5455 = vmatprep.subr.mxu0 0.0
      %5456 = vmatpush1.msra.mxu0 %v4856
      %5457 = vmatprep.subr.mxu0 0.0
      %5458 = vmatpush1.msra.mxu0 %v4857
      %5459 = vmatprep.subr.mxu0 0.0
      %5460 = vmatpush1.msra.mxu0 %v4858
      %5461 = vmatprep.subr.mxu0 0.0
      %5462 = vmatpush1.msra.mxu0 %v4859
      %5463 = vmatprep.subr.mxu0 0.0
      %5464 = vmatpush1.msra.mxu0 %v4860
      %5465 = vmatprep.subr.mxu0 0.0
      %5466 = vmatpush1.msra.mxu0 %v4861
      %5467 = vmatprep.subr.mxu0 0.0
      %5468 = vmatpush1.msra.mxu0 %v4862
      %5469 = vmatprep.subr.mxu0 0.0
      %5470 = vmatpush1.msra.mxu0 %v4863
      %5471 = vmatprep.subr.mxu0 0.0
      %5472 = vmatpush1.msra.mxu0 %v4864
      %5473 = vmatprep.subr.mxu0 0.0
      %5474 = vmatpush1.msra.mxu0 %v4865
      %5475 = vmatprep.subr.mxu0 0.0
      %5476 = vmatpush1.msra.mxu0 %v4866
      %5477 = vmatprep.subr.mxu0 0.0
      %5478 = vmatpush1.msra.mxu0 %v4867
      %5479 = vmatprep.subr.mxu0 0.0
      %5480 = vmatpush1.msra.mxu0 %v4868
      %5481 = vmatprep.subr.mxu0 0.0
      %5482 = vmatpush1.msra.mxu0 %v4869
      %5483 = vmatprep.subr.mxu0 0.0
      %5484 = vmatpush1.msra.mxu0 %v4870
      %5485 = vmatprep.subr.mxu0 0.0
      %5486 = vmatpush1.msra.mxu0 %v4871
      %5487 = vmatprep.subr.mxu0 0.0
      %5488 = vmatpush1.msra.mxu0 %v4872
      %5489 = vmatprep.mubr.f32.mxu0 %v4646
      %5490 = vmatmul.mubr.f32.gmra.mrb[0].mxu0 %v4645
      %v5491 = vpop.f32.mrb[0].mxu0
      %v5492 = vadd.f32 %v5417, %v5491
      %v5493 = vpop.f32.mrb[0].mxu0
      %5494 = vmatprep.mubr.f32.mxu0 %v4669
      %5495 = vmatmul.mubr.f32.gmra.mrb[0].mxu0 %v4668
      %v5496 = vpop.f32.mrb[0].mxu0
      %v5497 = vadd.f32 %v5422, %v5496
      %v5498 = vpop.f32.mrb[0].mxu0
      %5499 = vdwg.mxu0
      %5500 = vmatprep.subr.mxu0 0.0
      %5501 = vmatpush1.msra.mxu0 %v4873
      %5502 = vmatprep.subr.mxu0 0.0
      %5503 = vmatpush1.msra.mxu0 %v4874
      %5504 = vmatprep.subr.mxu0 0.0
      %5505 = vmatpush1.msra.mxu0 %v4875
      %5506 = vmatprep.subr.mxu0 0.0
      %5507 = vmatpush1.msra.mxu0 %v4876
      %5508 = vmatprep.subr.mxu0 0.0
      %5509 = vmatpush1.msra.mxu0 %v4877
      %5510 = vmatprep.subr.mxu0 0.0
      %5511 = vmatpush1.msra.mxu0 %v4878
      %5512 = vmatprep.subr.mxu0 0.0
      %5513 = vmatpush1.msra.mxu0 %v4879
      %5514 = vmatprep.subr.mxu0 0.0
      %5515 = vmatpush1.msra.mxu0 %v4880
      %5516 = vmatprep.subr.mxu0 0.0
      %5517 = vmatpush1.msra.mxu0 %v4881
      %5518 = vmatprep.subr.mxu0 0.0
      %5519 = vmatpush1.msra.mxu0 %v4882
      %5520 = vmatprep.subr.mxu0 0.0
      %5521 = vmatpush1.msra.mxu0 %v4883
      %5522 = vmatprep.subr.mxu0 0.0
      %5523 = vmatpush1.msra.mxu0 %v4884
      %5524 = vmatprep.subr.mxu0 0.0
      %5525 = vmatpush1.msra.mxu0 %v4885
      %5526 = vmatprep.subr.mxu0 0.0
      %5527 = vmatpush1.msra.mxu0 %v4886
      %5528 = vmatprep.subr.mxu0 0.0
      %5529 = vmatpush1.msra.mxu0 %v4887
      %5530 = vmatprep.subr.mxu0 0.0
      %5531 = vmatpush1.msra.mxu0 %v4888
      %5532 = vmatprep.subr.mxu0 0.0
      %5533 = vmatpush1.msra.mxu0 %v4889
      %5534 = vmatprep.subr.mxu0 0.0
      %5535 = vmatpush1.msra.mxu0 %v4890
      %5536 = vmatprep.subr.mxu0 0.0
      %5537 = vmatpush1.msra.mxu0 %v4891
      %5538 = vmatprep.subr.mxu0 0.0
      %5539 = vmatpush1.msra.mxu0 %v4892
      %5540 = vmatprep.subr.mxu0 0.0
      %5541 = vmatpush1.msra.mxu0 %v4893
      %5542 = vmatprep.subr.mxu0 0.0
      %5543 = vmatpush1.msra.mxu0 %v4894
      %5544 = vmatprep.subr.mxu0 0.0
      %5545 = vmatpush1.msra.mxu0 %v4895
      %5546 = vmatprep.subr.mxu0 0.0
      %5547 = vmatpush1.msra.mxu0 %v4896
      %5548 = vmatprep.subr.mxu0 0.0
      %5549 = vmatpush1.msra.mxu0 %v4897
      %5550 = vmatprep.subr.mxu0 0.0
      %5551 = vmatpush1.msra.mxu0 %v4898
      %5552 = vmatprep.subr.mxu0 0.0
      %5553 = vmatpush1.msra.mxu0 %v4899
      %5554 = vmatprep.subr.mxu0 0.0
      %5555 = vmatpush1.msra.mxu0 %v4900
      %5556 = vmatprep.subr.mxu0 0.0
      %5557 = vmatpush1.msra.mxu0 %v4901
      %5558 = vmatprep.subr.mxu0 0.0
      %5559 = vmatpush1.msra.mxu0 %v4902
      %5560 = vmatprep.subr.mxu0 0.0
      %5561 = vmatpush1.msra.mxu0 %v4903
      %5562 = vmatprep.subr.mxu0 0.0
      %5563 = vmatpush1.msra.mxu0 %v4904
      %5564 = vmatprep.mubr.f32.mxu0 %v4648
      %5565 = vmatmul.mubr.f32.gmra.mrb[0].mxu0 %v4647
      %v5566 = vpop.f32.mrb[0].mxu0
      %v5567 = vadd.f32 %v5492, %v5566
      %v5568 = vpop.f32.mrb[0].mxu0
      %5569 = vmatprep.mubr.f32.mxu0 %v4671
      %5570 = vmatmul.mubr.f32.gmra.mrb[0].mxu0 %v4670
      %v5571 = vpop.f32.mrb[0].mxu0
      %v5572 = vadd.f32 %v5497, %v5571
      %v5573 = vpop.f32.mrb[0].mxu0
      %5574 = vdwg.mxu0
      %5575 = vmatprep.subr.mxu0 0.0
      %5576 = vmatpush1.msra.mxu0 %v4905
      %5577 = vmatprep.subr.mxu0 0.0
      %5578 = vmatpush1.msra.mxu0 %v4906
      %5579 = vmatprep.subr.mxu0 0.0
      %5580 = vmatpush1.msra.mxu0 %v4907
      %5581 = vmatprep.subr.mxu0 0.0
      %5582 = vmatpush1.msra.mxu0 %v4908
      %5583 = vmatprep.subr.mxu0 0.0
      %5584 = vmatpush1.msra.mxu0 %v4909
      %5585 = vmatprep.subr.mxu0 0.0
      %5586 = vmatpush1.msra.mxu0 %v4910
      %5587 = vmatprep.subr.mxu0 0.0
      %5588 = vmatpush1.msra.mxu0 %v4911
      %5589 = vmatprep.subr.mxu0 0.0
      %5590 = vmatpush1.msra.mxu0 %v4912
      %5591 = vmatprep.subr.mxu0 0.0
      %5592 = vmatpush1.msra.mxu0 %v4913
      %5593 = vmatprep.subr.mxu0 0.0
      %5594 = vmatpush1.msra.mxu0 %v4914
      %5595 = vmatprep.subr.mxu0 0.0
      %5596 = vmatpush1.msra.mxu0 %v4915
      %5597 = vmatprep.subr.mxu0 0.0
      %5598 = vmatpush1.msra.mxu0 %v4916
      %5599 = vmatprep.subr.mxu0 0.0
      %5600 = vmatpush1.msra.mxu0 %v4917
      %5601 = vmatprep.subr.mxu0 0.0
      %5602 = vmatpush1.msra.mxu0 %v4918
      %5603 = vmatprep.subr.mxu0 0.0
      %5604 = vmatpush1.msra.mxu0 %v4919
      %5605 = vmatprep.subr.mxu0 0.0
      %5606 = vmatpush1.msra.mxu0 %v4920
      %5607 = vmatprep.subr.mxu0 0.0
      %5608 = vmatpush1.msra.mxu0 %v4921
      %5609 = vmatprep.subr.mxu0 0.0
      %5610 = vmatpush1.msra.mxu0 %v4922
      %5611 = vmatprep.subr.mxu0 0.0
      %5612 = vmatpush1.msra.mxu0 %v4923
      %5613 = vmatprep.subr.mxu0 0.0
      %5614 = vmatpush1.msra.mxu0 %v4924
      %5615 = vmatprep.subr.mxu0 0.0
      %5616 = vmatpush1.msra.mxu0 %v4925
      %5617 = vmatprep.subr.mxu0 0.0
      %5618 = vmatpush1.msra.mxu0 %v4926
      %5619 = vmatprep.subr.mxu0 0.0
      %5620 = vmatpush1.msra.mxu0 %v4927
      %5621 = vmatprep.subr.mxu0 0.0
      %5622 = vmatpush1.msra.mxu0 %v4928
      %5623 = vmatprep.subr.mxu0 0.0
      %5624 = vmatpush1.msra.mxu0 %v4929
      %5625 = vmatprep.subr.mxu0 0.0
      %5626 = vmatpush1.msra.mxu0 %v4930
      %5627 = vmatprep.subr.mxu0 0.0
      %5628 = vmatpush1.msra.mxu0 %v4931
      %5629 = vmatprep.subr.mxu0 0.0
      %5630 = vmatpush1.msra.mxu0 %v4932
      %5631 = vmatprep.subr.mxu0 0.0
      %5632 = vmatpush1.msra.mxu0 %v4933
      %5633 = vmatprep.subr.mxu0 0.0
      %5634 = vmatpush1.msra.mxu0 %v4934
      %5635 = vmatprep.subr.mxu0 0.0
      %5636 = vmatpush1.msra.mxu0 %v4935
      %5637 = vmatprep.subr.mxu0 0.0
      %5638 = vmatpush1.msra.mxu0 %v4936
      %5639 = vmatprep.mubr.f32.mxu0 %v4650
      %5640 = vmatmul.mubr.f32.gmra.mrb[0].mxu0 %v4649
      %v5641 = vpop.f32.mrb[0].mxu0
      %v5642 = vadd.f32 %v5567, %v5641
      %v5643 = vpop.f32.mrb[0].mxu0
      %5644 = vmatprep.mubr.f32.mxu0 %v4673
      %5645 = vmatmul.mubr.f32.gmra.mrb[0].mxu0 %v4672
      %v5646 = vpop.f32.mrb[0].mxu0
      %v5647 = vadd.f32 %v5572, %v5646
      %v5648 = vpop.f32.mrb[0].mxu0
      %5649 = vdwg.mxu0
      %5650 = vmatprep.subr.mxu0 0.0
      %5651 = vmatpush1.msra.mxu0 %v4937
      %5652 = vmatprep.subr.mxu0 0.0
      %5653 = vmatpush1.msra.mxu0 %v4938
      %5654 = vmatprep.subr.mxu0 0.0
      %5655 = vmatpush1.msra.mxu0 %v4939
      %5656 = vmatprep.subr.mxu0 0.0
      %5657 = vmatpush1.msra.mxu0 %v4940
      %5658 = vmatprep.subr.mxu0 0.0
      %5659 = vmatpush1.msra.mxu0 %v4941
      %5660 = vmatprep.subr.mxu0 0.0
      %5661 = vmatpush1.msra.mxu0 %v4942
      %5662 = vmatprep.subr.mxu0 0.0
      %5663 = vmatpush1.msra.mxu0 %v4943
      %5664 = vmatprep.subr.mxu0 0.0
      %5665 = vmatpush1.msra.mxu0 %v4944
      %5666 = vmatprep.subr.mxu0 0.0
      %5667 = vmatpush1.msra.mxu0 %v4945
      %5668 = vmatprep.subr.mxu0 0.0
      %5669 = vmatpush1.msra.mxu0 %v4946
      %5670 = vmatprep.subr.mxu0 0.0
      %5671 = vmatpush1.msra.mxu0 %v4947
      %5672 = vmatprep.subr.mxu0 0.0
      %5673 = vmatpush1.msra.mxu0 %v4948
      %5674 = vmatprep.subr.mxu0 0.0
      %5675 = vmatpush1.msra.mxu0 %v4949
      %5676 = vmatprep.subr.mxu0 0.0
      %5677 = vmatpush1.msra.mxu0 %v4950
      %5678 = vmatprep.subr.mxu0 0.0
      %5679 = vmatpush1.msra.mxu0 %v4951
      %5680 = vmatprep.subr.mxu0 0.0
      %5681 = vmatpush1.msra.mxu0 %v4952
      %5682 = vmatprep.subr.mxu0 0.0
      %5683 = vmatpush1.msra.mxu0 %v4953
      %5684 = vmatprep.subr.mxu0 0.0
      %5685 = vmatpush1.msra.mxu0 %v4954
      %5686 = vmatprep.subr.mxu0 0.0
      %5687 = vmatpush1.msra.mxu0 %v4955
      %5688 = vmatprep.subr.mxu0 0.0
      %5689 = vmatpush1.msra.mxu0 %v4956
      %5690 = vmatprep.subr.mxu0 0.0
      %5691 = vmatpush1.msra.mxu0 %v4957
      %5692 = vmatprep.subr.mxu0 0.0
      %5693 = vmatpush1.msra.mxu0 %v4958
      %5694 = vmatprep.subr.mxu0 0.0
      %5695 = vmatpush1.msra.mxu0 %v4959
      %5696 = vmatprep.subr.mxu0 0.0
      %5697 = vmatpush1.msra.mxu0 %v4960
      %5698 = vmatprep.subr.mxu0 0.0
      %5699 = vmatpush1.msra.mxu0 %v4961
      %5700 = vmatprep.subr.mxu0 0.0
      %5701 = vmatpush1.msra.mxu0 %v4962
      %5702 = vmatprep.subr.mxu0 0.0
      %5703 = vmatpush1.msra.mxu0 %v4963
      %5704 = vmatprep.subr.mxu0 0.0
      %5705 = vmatpush1.msra.mxu0 %v4964
      %5706 = vmatprep.subr.mxu0 0.0
      %5707 = vmatpush1.msra.mxu0 %v4965
      %5708 = vmatprep.subr.mxu0 0.0
      %5709 = vmatpush1.msra.mxu0 %v4966
      %5710 = vmatprep.subr.mxu0 0.0
      %5711 = vmatpush1.msra.mxu0 %v4967
      %5712 = vmatprep.subr.mxu0 0.0
      %5713 = vmatpush1.msra.mxu0 %v4968
      %5714 = vmatprep.mubr.f32.mxu0 %v4652
      %5715 = vmatmul.mubr.f32.gmra.mrb[0].mxu0 %v4651
      %v5716 = vpop.f32.mrb[0].mxu0
      %v5717 = vadd.f32 %v5642, %v5716
      %v5718 = vpop.f32.mrb[0].mxu0
      %5719 = vmatprep.mubr.f32.mxu0 %v4675
      %5720 = vmatmul.mubr.f32.gmra.mrb[0].mxu0 %v4674
      %v5721 = vpop.f32.mrb[0].mxu0
      %v5722 = vadd.f32 %v5647, %v5721
      %v5723 = vpop.f32.mrb[0].mxu0
      %5724 = vdwg.mxu0
      %5725 = vmatprep.subr.mxu0 0.0
      %5726 = vmatpush1.msra.mxu0 %v4969
      %5727 = vmatprep.subr.mxu0 0.0
      %5728 = vmatpush1.msra.mxu0 %v4970
      %5729 = vmatprep.subr.mxu0 0.0
      %5730 = vmatpush1.msra.mxu0 %v4971
      %5731 = vmatprep.subr.mxu0 0.0
      %5732 = vmatpush1.msra.mxu0 %v4972
      %5733 = vmatprep.subr.mxu0 0.0
      %5734 = vmatpush1.msra.mxu0 %v4973
      %5735 = vmatprep.subr.mxu0 0.0
      %5736 = vmatpush1.msra.mxu0 %v4974
      %5737 = vmatprep.subr.mxu0 0.0
      %5738 = vmatpush1.msra.mxu0 %v4975
      %5739 = vmatprep.subr.mxu0 0.0
      %5740 = vmatpush1.msra.mxu0 %v4976
      %5741 = vmatprep.subr.mxu0 0.0
      %5742 = vmatpush1.msra.mxu0 %v4977
      %5743 = vmatprep.subr.mxu0 0.0
      %5744 = vmatpush1.msra.mxu0 %v4978
      %5745 = vmatprep.subr.mxu0 0.0
      %5746 = vmatpush1.msra.mxu0 %v4979
      %5747 = vmatprep.subr.mxu0 0.0
      %5748 = vmatpush1.msra.mxu0 %v4980
      %5749 = vmatprep.subr.mxu0 0.0
      %5750 = vmatpush1.msra.mxu0 %v4981
      %5751 = vmatprep.subr.mxu0 0.0
      %5752 = vmatpush1.msra.mxu0 %v4982
      %5753 = vmatprep.subr.mxu0 0.0
      %5754 = vmatpush1.msra.mxu0 %v4983
      %5755 = vmatprep.subr.mxu0 0.0
      %5756 = vmatpush1.msra.mxu0 %v4984
      %5757 = vmatprep.subr.mxu0 0.0
      %5758 = vmatpush1.msra.mxu0 %v4985
      %5759 = vmatprep.subr.mxu0 0.0
      %5760 = vmatpush1.msra.mxu0 %v4986
      %5761 = vmatprep.subr.mxu0 0.0
      %5762 = vmatpush1.msra.mxu0 %v4987
      %5763 = vmatprep.subr.mxu0 0.0
      %5764 = vmatpush1.msra.mxu0 %v4988
      %5765 = vmatprep.subr.mxu0 0.0
      %5766 = vmatpush1.msra.mxu0 %v4989
      %5767 = vmatprep.subr.mxu0 0.0
      %5768 = vmatpush1.msra.mxu0 %v4990
      %5769 = vmatprep.subr.mxu0 0.0
      %5770 = vmatpush1.msra.mxu0 %v4991
      %5771 = vmatprep.subr.mxu0 0.0
      %5772 = vmatpush1.msra.mxu0 %v4992
      %5773 = vmatprep.subr.mxu0 0.0
      %5774 = vmatpush1.msra.mxu0 %v4993
      %5775 = vmatprep.subr.mxu0 0.0
      %5776 = vmatpush1.msra.mxu0 %v4994
      %5777 = vmatprep.subr.mxu0 0.0
      %5778 = vmatpush1.msra.mxu0 %v4995
      %5779 = vmatprep.subr.mxu0 0.0
      %5780 = vmatpush1.msra.mxu0 %v4996
      %5781 = vmatprep.subr.mxu0 0.0
      %5782 = vmatpush1.msra.mxu0 %v4997
      %5783 = vmatprep.subr.mxu0 0.0
      %5784 = vmatpush1.msra.mxu0 %v4998
      %5785 = vmatprep.subr.mxu0 0.0
      %5786 = vmatpush1.msra.mxu0 %v4999
      %5787 = vmatprep.subr.mxu0 0.0
      %5788 = vmatpush1.msra.mxu0 %v5000
      %5789 = vmatprep.mubr.f32.mxu0 %v4654
      %5790 = vmatmul.mubr.f32.gmra.mrb[0].mxu0 %v4653
      %v5791 = vpop.f32.mrb[0].mxu0
      %v5792 = vadd.f32 %v5717, %v5791
      %v5793 = vpop.f32.mrb[0].mxu0
      %5794 = vmatprep.mubr.f32.mxu0 %v4677
      %5795 = vmatmul.mubr.f32.gmra.mrb[0].mxu0 %v4676
      %v5796 = vpop.f32.mrb[0].mxu0
      %v5797 = vadd.f32 %v5722, %v5796
      %v5798 = vpop.f32.mrb[0].mxu0
      %5799 = vdwg.mxu0
      %5800 = vmatprep.subr.mxu0 0.0
      %5801 = vmatpush1.msra.mxu0 %v5001
      %5802 = vmatprep.subr.mxu0 0.0
      %5803 = vmatpush1.msra.mxu0 %v5002
      %5804 = vmatprep.subr.mxu0 0.0
      %5805 = vmatpush1.msra.mxu0 %v5003
      %5806 = vmatprep.subr.mxu0 0.0
      %5807 = vmatpush1.msra.mxu0 %v5004
      %5808 = vmatprep.subr.mxu0 0.0
      %5809 = vmatpush1.msra.mxu0 %v5005
      %5810 = vmatprep.subr.mxu0 0.0
      %5811 = vmatpush1.msra.mxu0 %v5006
      %5812 = vmatprep.subr.mxu0 0.0
      %5813 = vmatpush1.msra.mxu0 %v5007
      %5814 = vmatprep.subr.mxu0 0.0
      %5815 = vmatpush1.msra.mxu0 %v5008
      %5816 = vmatprep.subr.mxu0 0.0
      %5817 = vmatpush1.msra.mxu0 %v5009
      %5818 = vmatprep.subr.mxu0 0.0
      %5819 = vmatpush1.msra.mxu0 %v5010
      %5820 = vmatprep.subr.mxu0 0.0
      %5821 = vmatpush1.msra.mxu0 %v5011
      %5822 = vmatprep.subr.mxu0 0.0
      %5823 = vmatpush1.msra.mxu0 %v5012
      %5824 = vmatprep.subr.mxu0 0.0
      %5825 = vmatpush1.msra.mxu0 %v5013
      %5826 = vmatprep.subr.mxu0 0.0
      %5827 = vmatpush1.msra.mxu0 %v5014
      %5828 = vmatprep.subr.mxu0 0.0
      %5829 = vmatpush1.msra.mxu0 %v5015
      %5830 = vmatprep.subr.mxu0 0.0
      %5831 = vmatpush1.msra.mxu0 %v5016
      %5832 = vmatprep.subr.mxu0 0.0
      %5833 = vmatpush1.msra.mxu0 %v5017
      %5834 = vmatprep.subr.mxu0 0.0
      %5835 = vmatpush1.msra.mxu0 %v5018
      %5836 = vmatprep.subr.mxu0 0.0
      %5837 = vmatpush1.msra.mxu0 %v5019
      %5838 = vmatprep.subr.mxu0 0.0
      %5839 = vmatpush1.msra.mxu0 %v5020
      %5840 = vmatprep.subr.mxu0 0.0
      %5841 = vmatpush1.msra.mxu0 %v5021
      %5842 = vmatprep.subr.mxu0 0.0
      %5843 = vmatpush1.msra.mxu0 %v5022
      %5844 = vmatprep.subr.mxu0 0.0
      %5845 = vmatpush1.msra.mxu0 %v5023
      %5846 = vmatprep.subr.mxu0 0.0
      %5847 = vmatpush1.msra.mxu0 %v5024
      %5848 = vmatprep.subr.mxu0 0.0
      %5849 = vmatpush1.msra.mxu0 %v5025
      %5850 = vmatprep.subr.mxu0 0.0
      %5851 = vmatpush1.msra.mxu0 %v5026
      %5852 = vmatprep.subr.mxu0 0.0
      %5853 = vmatpush1.msra.mxu0 %v5027
      %5854 = vmatprep.subr.mxu0 0.0
      %5855 = vmatpush1.msra.mxu0 %v5028
      %5856 = vmatprep.subr.mxu0 0.0
      %5857 = vmatpush1.msra.mxu0 %v5029
      %5858 = vmatprep.subr.mxu0 0.0
      %5859 = vmatpush1.msra.mxu0 %v5030
      %5860 = vmatprep.subr.mxu0 0.0
      %5861 = vmatpush1.msra.mxu0 %v5031
      %5862 = vmatprep.subr.mxu0 0.0
      %5863 = vmatpush1.msra.mxu0 %v5032
      %5864 = vmatprep.mubr.f32.mxu0 %v4656
      %5865 = vmatmul.mubr.f32.gmra.mrb[0].mxu0 %v4655
      %v5866 = vpop.f32.mrb[0].mxu0
      %v5867 = vadd.f32 %v5792, %v5866
      %v5868 = vpop.f32.mrb[0].mxu0
      %5869 = vmatprep.mubr.f32.mxu0 %v4679
      %5870 = vmatmul.mubr.f32.gmra.mrb[0].mxu0 %v4678
      %v5871 = vpop.f32.mrb[0].mxu0
      %v5872 = vadd.f32 %v5797, %v5871
      %v5873 = vpop.f32.mrb[0].mxu0
      %5874 = vdwg.mxu0
      %5875 = vmatprep.subr.mxu0 0.0
      %5876 = vmatpush1.msra.mxu0 %v5033
      %5877 = vmatprep.subr.mxu0 0.0
      %5878 = vmatpush1.msra.mxu0 %v5034
      %5879 = vmatprep.subr.mxu0 0.0
      %5880 = vmatpush1.msra.mxu0 %v5035
      %5881 = vmatprep.subr.mxu0 0.0
      %5882 = vmatpush1.msra.mxu0 %v5036
      %5883 = vmatprep.subr.mxu0 0.0
      %5884 = vmatpush1.msra.mxu0 %v5037
      %5885 = vmatprep.subr.mxu0 0.0
      %5886 = vmatpush1.msra.mxu0 %v5038
      %5887 = vmatprep.subr.mxu0 0.0
      %5888 = vmatpush1.msra.mxu0 %v5039
      %5889 = vmatprep.subr.mxu0 0.0
      %5890 = vmatpush1.msra.mxu0 %v5040
      %5891 = vmatprep.subr.mxu0 0.0
      %5892 = vmatpush1.msra.mxu0 %v5041
      %5893 = vmatprep.subr.mxu0 0.0
      %5894 = vmatpush1.msra.mxu0 %v5042
      %5895 = vmatprep.subr.mxu0 0.0
      %5896 = vmatpush1.msra.mxu0 0.0
      %5897 = vmatprep.subr.mxu0 0.0
      %5898 = vmatpush1.msra.mxu0 0.0
      %5899 = vmatprep.subr.mxu0 0.0
      %5900 = vmatpush1.msra.mxu0 0.0
      %5901 = vmatprep.subr.mxu0 0.0
      %5902 = vmatpush1.msra.mxu0 0.0
      %5903 = vmatprep.subr.mxu0 0.0
      %5904 = vmatpush1.msra.mxu0 0.0
      %5905 = vmatprep.subr.mxu0 0.0
      %5906 = vmatpush1.msra.mxu0 0.0
      %5907 = vmatprep.subr.mxu0 0.0
      %5908 = vmatpush1.msra.mxu0 0.0
      %5909 = vmatprep.subr.mxu0 0.0
      %5910 = vmatpush1.msra.mxu0 0.0
      %5911 = vmatprep.subr.mxu0 0.0
      %5912 = vmatpush1.msra.mxu0 0.0
      %5913 = vmatprep.subr.mxu0 0.0
      %5914 = vmatpush1.msra.mxu0 0.0
      %5915 = vmatprep.subr.mxu0 0.0
      %5916 = vmatpush1.msra.mxu0 0.0
      %5917 = vmatprep.subr.mxu0 0.0
      %5918 = vmatpush1.msra.mxu0 0.0
      %5919 = vmatprep.subr.mxu0 0.0
      %5920 = vmatpush1.msra.mxu0 0.0
      %5921 = vmatprep.subr.mxu0 0.0
      %5922 = vmatpush1.msra.mxu0 0.0
      %5923 = vmatprep.subr.mxu0 0.0
      %5924 = vmatpush1.msra.mxu0 0.0
      %5925 = vmatprep.subr.mxu0 0.0
      %5926 = vmatpush1.msra.mxu0 0.0
      %5927 = vmatprep.subr.mxu0 0.0
      %5928 = vmatpush1.msra.mxu0 0.0
      %5929 = vmatprep.subr.mxu0 0.0
      %5930 = vmatpush1.msra.mxu0 0.0
      %5931 = vmatprep.subr.mxu0 0.0
      %5932 = vmatpush1.msra.mxu0 0.0
      %5933 = vmatprep.subr.mxu0 0.0
      %5934 = vmatpush1.msra.mxu0 0.0
      %5935 = vmatprep.subr.mxu0 0.0
      %5936 = vmatpush1.msra.mxu0 0.0
      %5937 = vmatprep.subr.mxu0 0.0
      %5938 = vmatpush1.msra.mxu0 0.0
      %5939 = vmatprep.mubr.f32.mxu0 0.0
      %5940 = vmatmul.mubr.f32.gmra.mrb[0].mxu0 %v5045
      %v5941 = vpop.f32.mrb[0].mxu0
      %v5942 = vadd.f32 %v5867, %v5941
      %v5943 = vpop.f32.mrb[0].mxu0
      %5944 = vmatprep.mubr.f32.mxu0 0.0
      %5945 = vmatmul.mubr.f32.gmra.mrb[0].mxu0 %v5048
      %v5946 = vpop.f32.mrb[0].mxu0
      %v5947 = vadd.f32 %v5872, %v5946
      %v5948 = vpop.f32.mrb[0].mxu0
      %5949 = vdwg.mxu0
      %5952 = vrot.lane.b32.xlu0 %v5942, 120
      %v5953 = vpop.permute.xlu0 %5952
      %5954 = vrot.lane.b32.xlu0 %v5947, 120
      %v5955 = vpop.permute.xlu0 %5954
      %5958 = vrot.lane.b32.xlu0 %v5942, 112
      %v5959 = vpop.permute.xlu0 %5958
      %5960 = vrot.lane.b32.xlu0 %v5947, 112
      %v5961 = vpop.permute.xlu0 %5960
      %5964 = vrot.lane.b32.xlu0 %v5942, 104
      %v5965 = vpop.permute.xlu0 %5964
      %5966 = vrot.lane.b32.xlu0 %v5947, 104
      %v5967 = vpop.permute.xlu0 %5966
      %5970 = vrot.lane.b32.xlu0 %v5942, 96
      %v5971 = vpop.permute.xlu0 %5970
      %5972 = vrot.lane.b32.xlu0 %v5947, 96
      %v5973 = vpop.permute.xlu0 %5972
      %5976 = vrot.lane.b32.xlu0 %v5942, 88
      %v5977 = vpop.permute.xlu0 %5976
      %5978 = vrot.lane.b32.xlu0 %v5947, 88
      %v5979 = vpop.permute.xlu0 %5978
      %5982 = vrot.lane.b32.xlu0 %v5942, 80
      %v5983 = vpop.permute.xlu0 %5982
      %5984 = vrot.lane.b32.xlu0 %v5947, 80
      %v5985 = vpop.permute.xlu0 %5984
      %5988 = vrot.lane.b32.xlu0 %v5942, 72
      %v5989 = vpop.permute.xlu0 %5988
      %5990 = vrot.lane.b32.xlu0 %v5947, 72
      %v5991 = vpop.permute.xlu0 %5990
      %5994 = vrot.lane.b32.xlu0 %v5942, 64
      %v5995 = vpop.permute.xlu0 %5994
      %5996 = vrot.lane.b32.xlu0 %v5947, 64
      %v5997 = vpop.permute.xlu0 %5996
      %6000 = vrot.lane.b32.xlu0 %v5942, 56
      %v6001 = vpop.permute.xlu0 %6000
      %6002 = vrot.lane.b32.xlu0 %v5947, 56
      %v6003 = vpop.permute.xlu0 %6002
      %6006 = vrot.lane.b32.xlu0 %v5942, 48
      %v6007 = vpop.permute.xlu0 %6006
      %6008 = vrot.lane.b32.xlu0 %v5947, 48
      %v6009 = vpop.permute.xlu0 %6008
      %6012 = vrot.lane.b32.xlu0 %v5942, 40
      %v6013 = vpop.permute.xlu0 %6012
      %6014 = vrot.lane.b32.xlu0 %v5947, 40
      %v6015 = vpop.permute.xlu0 %6014
      %6018 = vrot.lane.b32.xlu0 %v5942, 32
      %v6019 = vpop.permute.xlu0 %6018
      %6020 = vrot.lane.b32.xlu0 %v5947, 32
      %v6021 = vpop.permute.xlu0 %6020
      %6024 = vrot.lane.b32.xlu0 %v5942, 24
      %v6025 = vpop.permute.xlu0 %6024
      %6026 = vrot.lane.b32.xlu0 %v5947, 24
      %v6027 = vpop.permute.xlu0 %6026
      %6030 = vrot.lane.b32.xlu0 %v5942, 16
      %v6031 = vpop.permute.xlu0 %6030
      %6032 = vrot.lane.b32.xlu0 %v5947, 16
      %v6033 = vpop.permute.xlu0 %6032
      %6036 = vrot.lane.b32.xlu0 %v5942, 8
      %v6037 = vpop.permute.xlu0 %6036
      %6038 = vrot.lane.b32.xlu0 %v5947, 8
      %v6039 = vpop.permute.xlu0 %6038
      %v6042 = vld [vmem:[%s7] sm:$0xff]
      %v6043 = vld [vmem:[%s7 + $0x8] sm:$0xff]
      %v6044 = vld [vmem:[%s7 + $0x10] sm:$0xff]
      %v6045 = vld [vmem:[%s7 + $0x18] sm:$0xff]
      %v6046 = vld [vmem:[%s8] sm:$0xff]
      %v6047 = vld [vmem:[%s8 + $0x8] sm:$0xff]
      %6049 = vset.pattern.permute.xlu0 0
      %6050 = vperm.xlu0 %6049, %v6046
      %v6051 = vpop.permute.xlu0 %6050
      %6054 = vset.pattern.permute.xlu0 0
      %6055 = vperm.xlu0 %6054, %v6047
      %v6056 = vpop.permute.xlu0 %6055
      %6058 = vmatprep.subr.mxu0 0.0
      %6059 = vmatpush1.msra.mxu0 %v5942
      %6060 = vmatprep.subr.mxu0 0.0
      %6061 = vmatpush1.msra.mxu0 %v5947
      %6062 = vmatprep.subr.mxu0 0.0
      %6063 = vmatpush1.msra.mxu0 %v5953
      %6064 = vmatprep.subr.mxu0 0.0
      %6065 = vmatpush1.msra.mxu0 %v5955
      %6066 = vmatprep.subr.mxu0 0.0
      %6067 = vmatpush1.msra.mxu0 %v5959
      %6068 = vmatprep.subr.mxu0 0.0
      %6069 = vmatpush1.msra.mxu0 %v5961
      %6070 = vmatprep.subr.mxu0 0.0
      %6071 = vmatpush1.msra.mxu0 %v5965
      %6072 = vmatprep.subr.mxu0 0.0
      %6073 = vmatpush1.msra.mxu0 %v5967
      %6074 = vmatprep.subr.mxu0 0.0
      %6075 = vmatpush1.msra.mxu0 %v5971
      %6076 = vmatprep.subr.mxu0 0.0
      %6077 = vmatpush1.msra.mxu0 %v5973
      %6078 = vmatprep.subr.mxu0 0.0
      %6079 = vmatpush1.msra.mxu0 %v5977
      %6080 = vmatprep.subr.mxu0 0.0
      %6081 = vmatpush1.msra.mxu0 %v5979
      %6082 = vmatprep.subr.mxu0 0.0
      %6083 = vmatpush1.msra.mxu0 %v5983
      %6084 = vmatprep.subr.mxu0 0.0
      %6085 = vmatpush1.msra.mxu0 %v5985
      %6086 = vmatprep.subr.mxu0 0.0
      %6087 = vmatpush1.msra.mxu0 %v5989
      %6088 = vmatprep.subr.mxu0 0.0
      %6089 = vmatpush1.msra.mxu0 %v5991
      %6090 = vmatprep.subr.mxu0 0.0
      %6091 = vmatpush1.msra.mxu0 %v5995
      %6092 = vmatprep.subr.mxu0 0.0
      %6093 = vmatpush1.msra.mxu0 %v5997
      %6094 = vmatprep.subr.mxu0 0.0
      %6095 = vmatpush1.msra.mxu0 %v6001
      %6096 = vmatprep.subr.mxu0 0.0
      %6097 = vmatpush1.msra.mxu0 %v6003
      %6098 = vmatprep.subr.mxu0 0.0
      %6099 = vmatpush1.msra.mxu0 %v6007
      %6100 = vmatprep.subr.mxu0 0.0
      %6101 = vmatpush1.msra.mxu0 %v6009
      %6102 = vmatprep.subr.mxu0 0.0
      %6103 = vmatpush1.msra.mxu0 %v6013
      %6104 = vmatprep.subr.mxu0 0.0
      %6105 = vmatpush1.msra.mxu0 %v6015
      %6106 = vmatprep.subr.mxu0 0.0
      %6107 = vmatpush1.msra.mxu0 %v6019
      %6108 = vmatprep.subr.mxu0 0.0
      %6109 = vmatpush1.msra.mxu0 %v6021
      %6110 = vmatprep.subr.mxu0 0.0
      %6111 = vmatpush1.msra.mxu0 %v6025
      %6112 = vmatprep.subr.mxu0 0.0
      %6113 = vmatpush1.msra.mxu0 %v6027
      %6114 = vmatprep.subr.mxu0 0.0
      %6115 = vmatpush1.msra.mxu0 %v6031
      %6116 = vmatprep.subr.mxu0 0.0
      %6117 = vmatpush1.msra.mxu0 %v6033
      %6118 = vmatprep.subr.mxu0 0.0
      %6119 = vmatpush1.msra.mxu0 %v6037
      %6120 = vmatprep.subr.mxu0 0.0
      %6121 = vmatpush1.msra.mxu0 %v6039
      %6122 = vmatprep.mubr.f32.mxu0 %v6043
      %6123 = vmatmul.mubr.f32.gmra.mrb[0].mxu0 %v6042
      %v6124 = vpop.f32.mrb[0].mxu0
      %v6125 = vadd.f32 %v6051, %v6124
      %v6126 = vpop.f32.mrb[0].mxu0
      %6127 = vmatprep.mubr.f32.mxu0 %v6045
      %6128 = vmatmul.mubr.f32.gmra.mrb[0].mxu0 %v6044
      %v6129 = vpop.f32.mrb[0].mxu0
      %v6130 = vadd.f32 %v6056, %v6129
      %v6131 = vpop.f32.mrb[0].mxu0
      %6132 = vdwg.mxu0
      %vm6133 = vcmask 64512
      %v6134 = vsel %vm6133, %v6125, 0.0
      %v6135 = vsel %vm6133, %v6130, 0.0
      %6136 = vst [vmem:[%s332] sm:$0xff] %v6134
      %6137 = vst [vmem:[%s332 + $0x8] sm:$0xff] %v6135
      %p6138 = scmp.lt.s32.totalorder %s20, 1
      %s6139 = scalar_select %p6138, %s20, 1
      %s6140 = smul.addr %s6139, 2
      %s6141 = smul.addr %s6140, 8
      %s6142 = scalar_lea.vmem %s9, %s6141
      // Predicated region
      $region57: #{myconvnet_forward.1} parent=55 // pred_check
        %p6143 = pneg %p232
      $region58: #{myconvnet_forward.1} parent=55 // pred_check_branch
        %6145 = sbr.rel (%p6143) target = $region60
      $region59: #{myconvnet_forward.1} parent=55 // pred_region
        _
      $region60: #{myconvnet_forward.1} parent=55 // pred_fallthru
        _
    $region56: #{myconvnet_forward.1} parent=5 // pred_fallthru
      _
    %p6146 = scmp.le.s32.totalorder 2, %s15
    // Predicated region
    $region61: #{myconvnet_forward.1} parent=5 // pred_check
      %p6147 = pneg %p6146
    $region62: #{myconvnet_forward.1} parent=5 // pred_check_branch
      %6149 = sbr.rel (%p6147) target = $region64
    $region63: #{myconvnet_forward.1} parent=5 // pred_region
      %s6150 = ssub.s32 %s15, 2
      // Predicated region
      $region65: #{myconvnet_forward.1} parent=63 // pred_check
        %p6151 = pneg %p238
      $region66: #{myconvnet_forward.1} parent=63 // pred_check_branch
        %6153 = sbr.rel (%p6151) target = $region68
      $region67: #{myconvnet_forward.1} parent=63 // pred_region
        %p6154 = scmp.lt.s32.totalorder %s21, 1
        %s6155 = scalar_select %p6154, %s21, 1
        %s6156 = smul.addr %s6155, 2
        %s6157 = smul.addr %s6156, 8
        %s6158 = scalar_lea.vmem %s9, %s6157
      $region68: #{myconvnet_forward.1} parent=63 // pred_fallthru
        _
    $region64: #{myconvnet_forward.1} parent=5 // pred_fallthru
      _
  $region6: #{myconvnet_forward.1} parent=0 // loop_footer
    %s19 = sadd.s32 1, %s15
  $region7: #{myconvnet_forward.1} parent=0 // loop_footer_branch
    %14 = sbr.rel target = $region3
  $region8: #{myconvnet_forward.1} parent=0 // loop_exit
    _

</llo_original>
